<compile_context>
chip_gen: v5e
topology: v5e:2x2
jax: 0.10.0
libtpu: 0.0.40
codegen_flags: <defaults>
</compile_context>

<pallas_src>
import functools

import jax
import jax.numpy as jnp
from jax import lax
from jax.experimental import pallas as pl
from jax.experimental.pallas import tpu as pltpu

KH = KW = 3  # spatial 3x3 kernel; temporal extent 1 is folded away


# ---------------------------------------------------------------------------
# In-kernel helpers
# ---------------------------------------------------------------------------
def _shift_h(a, dh):
    """result[:, h] = a[:, h + dh]  (zero where out of range). Axis 1 is a major dim."""
    if dh == 0:
        return a
    tb, h, w, c = a.shape
    z = jnp.zeros((tb, 1, w, c), a.dtype)
    if dh > 0:
        return jnp.concatenate([a[:, dh:], z], axis=1)
    return jnp.concatenate([z, a[:, :h + dh]], axis=1)


def _shift_w(a, dw):
    """result[:, :, w] = a[:, :, w + dw]  (zero where out of range)."""
    if dw == 0:
        return a
    tb, h, w, c = a.shape
    z = jnp.zeros((tb, h, 1, c), a.dtype)
    if dw > 0:
        return jnp.concatenate([a[:, :, dw:, :], z], axis=2)
    return jnp.concatenate([z, a[:, :, :w + dw, :]], axis=2)


def _split_wc(xd, W, C):
    """(TB, H, W*C) lane-dense -> (TB, H, W, C) channel-minor (static lane slices + stack)."""
    cols = [xd[:, :, w * C:(w + 1) * C] for w in range(W)]
    return jnp.stack(cols, axis=2)


def _merge_wc(x4):
    """(TB, H, W, C) channel-minor -> (TB, H, W*C) lane-dense."""
    tb, h, w, c = x4.shape
    return jnp.concatenate([x4[:, :, i, :] for i in range(w)], axis=-1)


def _conv3x3_same(x, w3, b):
    """3x3 SAME conv of a (TB, H, W, C) f32 block.

    Single matmul: K = 3C (rows ordered (kh, cin)), N = 3C (cols ordered (kw, cout)),
    then the kw column groups are shift-added along W.  b: (1, C).
    """
    tb, h, w, c = x.shape
    # H-direction taps (kh = 0, 1, 2): major-dim shifts, lane concat -> (TB, H, W, 3C)
    x3 = jnp.concatenate([_shift_h(x, -1), x, _shift_h(x, 1)], axis=-1)
    y = jnp.dot(x3.reshape(tb * h * w, KH * c), w3,
                preferred_element_type=jnp.float32)           # (M, 3C)
    y = y.reshape(tb, h, w, KW * c)
    out = (y[..., c:2 * c]                                    # kw = 1 tap
           + _shift_w(y[..., :c], -1)                         # kw = 0 tap: out[w] += y0[w-1]
           + _shift_w(y[..., 2 * c:], 1))                     # kw = 2 tap: out[w] += y2[w+1]
    return out + b.reshape(1, 1, 1, c)


def resblock_kernel(x_ref, w1_ref, b1_ref, w2_ref, b2_ref, o_ref, *, W, C):
    # x_ref/o_ref: (TB, H, W*C) lane-dense; w*_ref: (3C, 3C); b*_ref: (1, C)
    x_dense = x_ref[...].astype(jnp.float32)          # dense load
    x = _split_wc(x_dense, W, C)                      # channel-minor view for the matmuls
    h1 = jnp.maximum(_conv3x3_same(x, w1_ref[...], b1_ref[...]), 0.0)
    h2 = _conv3x3_same(h1, w2_ref[...], b2_ref[...])
    o_ref[...] = (x_dense + _merge_wc(h2)).astype(o_ref.dtype)   # lane-dense store


# ---------------------------------------------------------------------------
# Wrapper
# ---------------------------------------------------------------------------
def _vmem_capacity_bytes():
    try:
        cap = int(getattr(pltpu.get_tpu_info(), "vmem_capacity_bytes", 0))
        if cap > 0:
            return cap
    except Exception:
        pass
    return 64 * 1024 * 1024   # conservative fallback (v7x per-TensorCore VMEM)


def _choose_tb(B, H, W, C, budget_bytes):
    """Images per grid step: as large as the VMEM budget allows, but keep >=4 grid steps
    (>=2 for tiny B) so megacore sharding and DMA/compute overlap engage."""
    per_img = H * W * C * 4 * 16          # peak f32 working set per image (with headroom)
    tb = max(1, min(B, budget_bytes // max(per_img, 1)))
    min_steps = 4 if B >= 4 else max(B, 1)
    tb = min(tb, max(1, -(-B // min_steps)))
    return int(tb)


def residual_block_nobn_3d(x, w1, b1, w2, b2):
    """Forward of ResidualBlock_noBN_3D.

    x:  (N, C, D, H, W) float32  (PyTorch NCDHW)
    w*: (C, C, 1, 3, 3) float32  (PyTorch Conv3d weight, OIDHW)
    b*: (C,)            float32
    """
    N, C, D, H, W = x.shape
    B = N * D
    WC = W * C
    # channels-last, (N, D) folded into the batch; (W, C) folded into the lane dim.
    xf = jnp.transpose(x, (0, 2, 3, 4, 1)).reshape(B, H, WC)

    def w_to_mat(w):
        # OIDHW (Cout, Cin, 1, 3, 3) -> (kh, cin, kw, cout) -> (3*Cin, 3*Cout)
        return jnp.transpose(w[:, :, 0, :, :], (2, 1, 3, 0)).reshape(KH * C, KW * C)

    w1m, w2m = w_to_mat(w1), w_to_mat(w2)
    b1r, b2r = b1.reshape(1, C), b2.reshape(1, C)

    vmem_cap = _vmem_capacity_bytes()
    budget = int(vmem_cap * 0.40)
    vmem_limit = int(vmem_cap * 0.70)

    TB = _choose_tb(B, H, W, C, budget)
    nb = -(-B // TB)            # cdiv
    Bp = nb * TB
    if Bp != B:                 # pad batch so the grid divides evenly; sliced off below
        xf = jnp.concatenate([xf, jnp.zeros((Bp - B, H, WC), xf.dtype)], axis=0)

    kernel = functools.partial(resblock_kernel, W=W, C=C)
    out = pl.pallas_call(
        kernel,
        out_shape=jax.ShapeDtypeStruct((Bp, H, WC), x.dtype),
        grid_spec=pltpu.PrefetchScalarGridSpec(
            num_scalar_prefetch=0,
            grid=(nb,),
            in_specs=[
                pl.BlockSpec((TB, H, WC), lambda b: (b, 0, 0)),
                pl.BlockSpec((KH * C, KW * C), lambda b: (0, 0)),
                pl.BlockSpec((1, C), lambda b: (0, 0)),
                pl.BlockSpec((KH * C, KW * C), lambda b: (0, 0)),
                pl.BlockSpec((1, C), lambda b: (0, 0)),
            ],
            out_specs=pl.BlockSpec((TB, H, WC), lambda b: (b, 0, 0)),
        ),
        compiler_params=pltpu.CompilerParams(
            dimension_semantics=("parallel",),     # no cross-step carry
            vmem_limit_bytes=vmem_limit),
    )(xf, w1m, b1r, w2m, b2r)

    out = out[:B].reshape(N, D, H, W, C)
    return jnp.transpose(out, (0, 4, 1, 2, 3))


# ---------------------------------------------------------------------------
# Pure-JAX reference (matches the PyTorch forward)
# ---------------------------------------------------------------------------
def reference(x, w1, b1, w2, b2):
    N, C, D, H, W = x.shape
    xf = jnp.transpose(x, (0, 2, 3, 4, 1)).reshape(N * D, H, W, C)

    def to_hwio(w):
        return jnp.transpose(w[:, :, 0, :, :], (2, 3, 1, 0))

    def conv(inp, w, b):
        return lax.conv_general_dilated(
            inp, to_hwio(w), window_strides=(1, 1), padding='SAME',
            dimension_numbers=('NHWC', 'HWIO', 'NHWC'),
            precision=lax.Precision.HIGHEST) + b

    o = jnp.maximum(conv(xf, w1, b1), 0.0)
    o = conv(o, w2, b2)
    o = xf + o
    return jnp.transpose(o.reshape(N, D, H, W, C), (0, 4, 1, 2, 3))


if __name__ == "__main__":
    # small shapes consistent with the module: nf channels, input (N, C, D, H, W)
    nf, N, D, H, W = 32, 2, 3, 16, 16

    key = jax.random.PRNGKey(0)
    kx, k1, k2, kb1, kb2 = jax.random.split(key, 5)

    x = jax.random.normal(kx, (N, nf, D, H, W), jnp.float32)

    # deterministic synthetic parameters in PyTorch Conv3d layout (O, I, 1, 3, 3)
    scale = 1.0 / jnp.sqrt(jnp.float32(nf * KH * KW))
    w1 = jax.random.normal(k1, (nf, nf, 1, KH, KW), jnp.float32) * scale
    w2 = jax.random.normal(k2, (nf, nf, 1, KH, KW), jnp.float32) * scale
    b1 = jax.random.normal(kb1, (nf,), jnp.float32) * 0.1
    b2 = jax.random.normal(kb2, (nf,), jnp.float32) * 0.1

    fwd = jax.jit(residual_block_nobn_3d)
    out = jax.block_until_ready(fwd(x, w1, b1, w2, b2))

    ref = reference(x, w1, b1, w2, b2)
    assert out.shape == (N, nf, D, H, W)
    err = jnp.max(jnp.abs(out - ref))
    assert jnp.allclose(out, ref, atol=2e-4, rtol=2e-4), f"max abs diff = {err}"

    print("KERNEL_OK")
</pallas_src>

<mosaic_0001>
module attributes {stable_mosaic.version = 11 : i64} {
  func.func @resblock_kernel(%arg0: i32, %arg1: memref<2x16x512xf32, #tpu.memory_space<vmem>>, %arg2: memref<96x96xf32, #tpu.memory_space<vmem>>, %arg3: memref<1x32xf32, #tpu.memory_space<vmem>>, %arg4: memref<96x96xf32, #tpu.memory_space<vmem>>, %arg5: memref<1x32xf32, #tpu.memory_space<vmem>>, %arg6: memref<2x16x512xf32, #tpu.memory_space<vmem>>) attributes {dimension_semantics = [#tpu.dimension_semantics<parallel>], iteration_bounds = array<i64: 3>, scalar_prefetch = 0 : i64, scratch_operands = 0 : i64, tpu.core_type = #tpu.core_type<tc>, window_params = [{transform_indices = @transform_0, window_bounds = array<i64: 2, 16, 512>}, {pipeline_mode = #tpu.pipeline_mode<synchronous>, transform_indices = @transform_1, window_bounds = array<i64: 96, 96>}, {pipeline_mode = #tpu.pipeline_mode<synchronous>, transform_indices = @transform_2, window_bounds = array<i64: 1, 32>}, {pipeline_mode = #tpu.pipeline_mode<synchronous>, transform_indices = @transform_3, window_bounds = array<i64: 96, 96>}, {pipeline_mode = #tpu.pipeline_mode<synchronous>, transform_indices = @transform_4, window_bounds = array<i64: 1, 32>}, {transform_indices = @transform_5, window_bounds = array<i64: 2, 16, 512>}]} {
    %c0 = arith.constant 0 : index
    %c0_0 = arith.constant 0 : index
    %c0_1 = arith.constant 0 : index
    %0 = vector.load %arg1[%c0, %c0_0, %c0_1] : memref<2x16x512xf32, #tpu.memory_space<vmem>>, vector<2x16x512xf32>
    %1 = vector.extract_strided_slice %0 {offsets = [0, 0, 0], sizes = [2, 16, 32], strides = [1, 1, 1]} : vector<2x16x512xf32> to vector<2x16x32xf32>
    %2 = vector.extract_strided_slice %0 {offsets = [0, 0, 32], sizes = [2, 16, 32], strides = [1, 1, 1]} : vector<2x16x512xf32> to vector<2x16x32xf32>
    %3 = vector.extract_strided_slice %0 {offsets = [0, 0, 64], sizes = [2, 16, 32], strides = [1, 1, 1]} : vector<2x16x512xf32> to vector<2x16x32xf32>
    %4 = vector.extract_strided_slice %0 {offsets = [0, 0, 96], sizes = [2, 16, 32], strides = [1, 1, 1]} : vector<2x16x512xf32> to vector<2x16x32xf32>
    %5 = vector.extract_strided_slice %0 {offsets = [0, 0, 128], sizes = [2, 16, 32], strides = [1, 1, 1]} : vector<2x16x512xf32> to vector<2x16x32xf32>
    %6 = vector.extract_strided_slice %0 {offsets = [0, 0, 160], sizes = [2, 16, 32], strides = [1, 1, 1]} : vector<2x16x512xf32> to vector<2x16x32xf32>
    %7 = vector.extract_strided_slice %0 {offsets = [0, 0, 192], sizes = [2, 16, 32], strides = [1, 1, 1]} : vector<2x16x512xf32> to vector<2x16x32xf32>
    %8 = vector.extract_strided_slice %0 {offsets = [0, 0, 224], sizes = [2, 16, 32], strides = [1, 1, 1]} : vector<2x16x512xf32> to vector<2x16x32xf32>
    %9 = vector.extract_strided_slice %0 {offsets = [0, 0, 256], sizes = [2, 16, 32], strides = [1, 1, 1]} : vector<2x16x512xf32> to vector<2x16x32xf32>
    %10 = vector.extract_strided_slice %0 {offsets = [0, 0, 288], sizes = [2, 16, 32], strides = [1, 1, 1]} : vector<2x16x512xf32> to vector<2x16x32xf32>
    %11 = vector.extract_strided_slice %0 {offsets = [0, 0, 320], sizes = [2, 16, 32], strides = [1, 1, 1]} : vector<2x16x512xf32> to vector<2x16x32xf32>
    %12 = vector.extract_strided_slice %0 {offsets = [0, 0, 352], sizes = [2, 16, 32], strides = [1, 1, 1]} : vector<2x16x512xf32> to vector<2x16x32xf32>
    %13 = vector.extract_strided_slice %0 {offsets = [0, 0, 384], sizes = [2, 16, 32], strides = [1, 1, 1]} : vector<2x16x512xf32> to vector<2x16x32xf32>
    %14 = vector.extract_strided_slice %0 {offsets = [0, 0, 416], sizes = [2, 16, 32], strides = [1, 1, 1]} : vector<2x16x512xf32> to vector<2x16x32xf32>
    %15 = vector.extract_strided_slice %0 {offsets = [0, 0, 448], sizes = [2, 16, 32], strides = [1, 1, 1]} : vector<2x16x512xf32> to vector<2x16x32xf32>
    %16 = vector.extract_strided_slice %0 {offsets = [0, 0, 480], sizes = [2, 16, 32], strides = [1, 1, 1]} : vector<2x16x512xf32> to vector<2x16x32xf32>
    %17 = vector.shape_cast %1 : vector<2x16x32xf32> to vector<2x16x1x32xf32>
    %18 = vector.shape_cast %2 : vector<2x16x32xf32> to vector<2x16x1x32xf32>
    %19 = vector.shape_cast %3 : vector<2x16x32xf32> to vector<2x16x1x32xf32>
    %20 = vector.shape_cast %4 : vector<2x16x32xf32> to vector<2x16x1x32xf32>
    %21 = vector.shape_cast %5 : vector<2x16x32xf32> to vector<2x16x1x32xf32>
    %22 = vector.shape_cast %6 : vector<2x16x32xf32> to vector<2x16x1x32xf32>
    %23 = vector.shape_cast %7 : vector<2x16x32xf32> to vector<2x16x1x32xf32>
    %24 = vector.shape_cast %8 : vector<2x16x32xf32> to vector<2x16x1x32xf32>
    %25 = vector.shape_cast %9 : vector<2x16x32xf32> to vector<2x16x1x32xf32>
    %26 = vector.shape_cast %10 : vector<2x16x32xf32> to vector<2x16x1x32xf32>
    %27 = vector.shape_cast %11 : vector<2x16x32xf32> to vector<2x16x1x32xf32>
    %28 = vector.shape_cast %12 : vector<2x16x32xf32> to vector<2x16x1x32xf32>
    %29 = vector.shape_cast %13 : vector<2x16x32xf32> to vector<2x16x1x32xf32>
    %30 = vector.shape_cast %14 : vector<2x16x32xf32> to vector<2x16x1x32xf32>
    %31 = vector.shape_cast %15 : vector<2x16x32xf32> to vector<2x16x1x32xf32>
    %32 = vector.shape_cast %16 : vector<2x16x32xf32> to vector<2x16x1x32xf32>
    %33 = tpu.concatenate %17, %18, %19, %20, %21, %22, %23, %24, %25, %26, %27, %28, %29, %30, %31, %32 in 2 : vector<2x16x1x32xf32>, vector<2x16x1x32xf32>, vector<2x16x1x32xf32>, vector<2x16x1x32xf32>, vector<2x16x1x32xf32>, vector<2x16x1x32xf32>, vector<2x16x1x32xf32>, vector<2x16x1x32xf32>, vector<2x16x1x32xf32>, vector<2x16x1x32xf32>, vector<2x16x1x32xf32>, vector<2x16x1x32xf32>, vector<2x16x1x32xf32>, vector<2x16x1x32xf32>, vector<2x16x1x32xf32>, vector<2x16x1x32xf32> -> vector<2x16x16x32xf32>
    %c0_2 = arith.constant 0 : index
    %c0_3 = arith.constant 0 : index
    %34 = vector.load %arg2[%c0_2, %c0_3] : memref<96x96xf32, #tpu.memory_space<vmem>>, vector<96x96xf32>
    %c0_4 = arith.constant 0 : index
    %c0_5 = arith.constant 0 : index
    %35 = vector.load %arg3[%c0_4, %c0_5] : memref<1x32xf32, #tpu.memory_space<vmem>>, vector<1x32xf32>
    %cst = arith.constant 0.000000e+00 : f32
    %36 = vector.broadcast %cst : f32 to vector<2x1x16x32xf32>
    %37 = vector.extract_strided_slice %33 {offsets = [0, 0, 0, 0], sizes = [2, 15, 16, 32], strides = [1, 1, 1, 1]} : vector<2x16x16x32xf32> to vector<2x15x16x32xf32>
    %38 = tpu.concatenate %36, %37 in 1 : vector<2x1x16x32xf32>, vector<2x15x16x32xf32> -> vector<2x16x16x32xf32>
    %cst_6 = arith.constant 0.000000e+00 : f32
    %39 = vector.broadcast %cst_6 : f32 to vector<2x1x16x32xf32>
    %40 = vector.extract_strided_slice %33 {offsets = [0, 1, 0, 0], sizes = [2, 15, 16, 32], strides = [1, 1, 1, 1]} : vector<2x16x16x32xf32> to vector<2x15x16x32xf32>
    %41 = tpu.concatenate %40, %39 in 1 : vector<2x15x16x32xf32>, vector<2x1x16x32xf32> -> vector<2x16x16x32xf32>
    %42 = tpu.concatenate %38, %33, %41 in 3 : vector<2x16x16x32xf32>, vector<2x16x16x32xf32>, vector<2x16x16x32xf32> -> vector<2x16x16x96xf32>
    %43 = vector.shape_cast %42 : vector<2x16x16x96xf32> to vector<512x96xf32>
    %cst_7 = arith.constant dense<0.000000e+00> : vector<512x96xf32>
    %44 = tpu.matmul %43, %34, %cst_7 {dimension_numbers = #tpu.dot_dimension_numbers<[1], [0], [0], [1], [0, 0, 1, 1], [], []>} : vector<512x96xf32>, vector<96x96xf32>, vector<512x96xf32> -> vector<512x96xf32>
    %45 = vector.shape_cast %44 : vector<512x96xf32> to vector<2x16x16x96xf32>
    %46 = vector.extract_strided_slice %45 {offsets = [0, 0, 0, 32], sizes = [2, 16, 16, 32], strides = [1, 1, 1, 1]} : vector<2x16x16x96xf32> to vector<2x16x16x32xf32>
    %47 = vector.extract_strided_slice %45 {offsets = [0, 0, 0, 0], sizes = [2, 16, 16, 32], strides = [1, 1, 1, 1]} : vector<2x16x16x96xf32> to vector<2x16x16x32xf32>
    %cst_8 = arith.constant 0.000000e+00 : f32
    %48 = vector.broadcast %cst_8 : f32 to vector<2x16x1x32xf32>
    %49 = vector.extract_strided_slice %47 {offsets = [0, 0, 0, 0], sizes = [2, 16, 15, 32], strides = [1, 1, 1, 1]} : vector<2x16x16x32xf32> to vector<2x16x15x32xf32>
    %50 = tpu.concatenate %48, %49 in 2 : vector<2x16x1x32xf32>, vector<2x16x15x32xf32> -> vector<2x16x16x32xf32>
    %51 = arith.addf %46, %50 : vector<2x16x16x32xf32>
    %52 = vector.extract_strided_slice %45 {offsets = [0, 0, 0, 64], sizes = [2, 16, 16, 32], strides = [1, 1, 1, 1]} : vector<2x16x16x96xf32> to vector<2x16x16x32xf32>
    %cst_9 = arith.constant 0.000000e+00 : f32
    %53 = vector.broadcast %cst_9 : f32 to vector<2x16x1x32xf32>
    %54 = vector.extract_strided_slice %52 {offsets = [0, 0, 1, 0], sizes = [2, 16, 15, 32], strides = [1, 1, 1, 1]} : vector<2x16x16x32xf32> to vector<2x16x15x32xf32>
    %55 = tpu.concatenate %54, %53 in 2 : vector<2x16x15x32xf32>, vector<2x16x1x32xf32> -> vector<2x16x16x32xf32>
    %56 = arith.addf %51, %55 : vector<2x16x16x32xf32>
    %57 = vector.shape_cast %35 : vector<1x32xf32> to vector<1x1x1x32xf32>
    %58 = vector.broadcast %57 : vector<1x1x1x32xf32> to vector<2x16x16x32xf32>
    %59 = arith.addf %56, %58 : vector<2x16x16x32xf32>
    %cst_10 = arith.constant 0.000000e+00 : f32
    %60 = vector.broadcast %cst_10 : f32 to vector<2x16x16x32xf32>
    %61 = arith.maximumf %59, %60 : vector<2x16x16x32xf32>
    %c0_11 = arith.constant 0 : index
    %c0_12 = arith.constant 0 : index
    %62 = vector.load %arg4[%c0_11, %c0_12] : memref<96x96xf32, #tpu.memory_space<vmem>>, vector<96x96xf32>
    %c0_13 = arith.constant 0 : index
    %c0_14 = arith.constant 0 : index
    %63 = vector.load %arg5[%c0_13, %c0_14] : memref<1x32xf32, #tpu.memory_space<vmem>>, vector<1x32xf32>
    %cst_15 = arith.constant 0.000000e+00 : f32
    %64 = vector.broadcast %cst_15 : f32 to vector<2x1x16x32xf32>
    %65 = vector.extract_strided_slice %61 {offsets = [0, 0, 0, 0], sizes = [2, 15, 16, 32], strides = [1, 1, 1, 1]} : vector<2x16x16x32xf32> to vector<2x15x16x32xf32>
    %66 = tpu.concatenate %64, %65 in 1 : vector<2x1x16x32xf32>, vector<2x15x16x32xf32> -> vector<2x16x16x32xf32>
    %cst_16 = arith.constant 0.000000e+00 : f32
    %67 = vector.broadcast %cst_16 : f32 to vector<2x1x16x32xf32>
    %68 = vector.extract_strided_slice %61 {offsets = [0, 1, 0, 0], sizes = [2, 15, 16, 32], strides = [1, 1, 1, 1]} : vector<2x16x16x32xf32> to vector<2x15x16x32xf32>
    %69 = tpu.concatenate %68, %67 in 1 : vector<2x15x16x32xf32>, vector<2x1x16x32xf32> -> vector<2x16x16x32xf32>
    %70 = tpu.concatenate %66, %61, %69 in 3 : vector<2x16x16x32xf32>, vector<2x16x16x32xf32>, vector<2x16x16x32xf32> -> vector<2x16x16x96xf32>
    %71 = vector.shape_cast %70 : vector<2x16x16x96xf32> to vector<512x96xf32>
    %cst_17 = arith.constant dense<0.000000e+00> : vector<512x96xf32>
    %72 = tpu.matmul %71, %62, %cst_17 {dimension_numbers = #tpu.dot_dimension_numbers<[1], [0], [0], [1], [0, 0, 1, 1], [], []>} : vector<512x96xf32>, vector<96x96xf32>, vector<512x96xf32> -> vector<512x96xf32>
    %73 = vector.shape_cast %72 : vector<512x96xf32> to vector<2x16x16x96xf32>
    %74 = vector.extract_strided_slice %73 {offsets = [0, 0, 0, 32], sizes = [2, 16, 16, 32], strides = [1, 1, 1, 1]} : vector<2x16x16x96xf32> to vector<2x16x16x32xf32>
    %75 = vector.extract_strided_slice %73 {offsets = [0, 0, 0, 0], sizes = [2, 16, 16, 32], strides = [1, 1, 1, 1]} : vector<2x16x16x96xf32> to vector<2x16x16x32xf32>
    %cst_18 = arith.constant 0.000000e+00 : f32
    %76 = vector.broadcast %cst_18 : f32 to vector<2x16x1x32xf32>
    %77 = vector.extract_strided_slice %75 {offsets = [0, 0, 0, 0], sizes = [2, 16, 15, 32], strides = [1, 1, 1, 1]} : vector<2x16x16x32xf32> to vector<2x16x15x32xf32>
    %78 = tpu.concatenate %76, %77 in 2 : vector<2x16x1x32xf32>, vector<2x16x15x32xf32> -> vector<2x16x16x32xf32>
    %79 = arith.addf %74, %78 : vector<2x16x16x32xf32>
    %80 = vector.extract_strided_slice %73 {offsets = [0, 0, 0, 64], sizes = [2, 16, 16, 32], strides = [1, 1, 1, 1]} : vector<2x16x16x96xf32> to vector<2x16x16x32xf32>
    %cst_19 = arith.constant 0.000000e+00 : f32
    %81 = vector.broadcast %cst_19 : f32 to vector<2x16x1x32xf32>
    %82 = vector.extract_strided_slice %80 {offsets = [0, 0, 1, 0], sizes = [2, 16, 15, 32], strides = [1, 1, 1, 1]} : vector<2x16x16x32xf32> to vector<2x16x15x32xf32>
    %83 = tpu.concatenate %82, %81 in 2 : vector<2x16x15x32xf32>, vector<2x16x1x32xf32> -> vector<2x16x16x32xf32>
    %84 = arith.addf %79, %83 : vector<2x16x16x32xf32>
    %85 = vector.shape_cast %63 : vector<1x32xf32> to vector<1x1x1x32xf32>
    %86 = vector.broadcast %85 : vector<1x1x1x32xf32> to vector<2x16x16x32xf32>
    %87 = arith.addf %84, %86 : vector<2x16x16x32xf32>
    %88 = vector.extract_strided_slice %87 {offsets = [0, 0, 0, 0], sizes = [2, 16, 1, 32], strides = [1, 1, 1, 1]} : vector<2x16x16x32xf32> to vector<2x16x1x32xf32>
    %89 = vector.shape_cast %88 : vector<2x16x1x32xf32> to vector<2x16x32xf32>
    %90 = vector.extract_strided_slice %87 {offsets = [0, 0, 1, 0], sizes = [2, 16, 1, 32], strides = [1, 1, 1, 1]} : vector<2x16x16x32xf32> to vector<2x16x1x32xf32>
    %91 = vector.shape_cast %90 : vector<2x16x1x32xf32> to vector<2x16x32xf32>
    %92 = vector.extract_strided_slice %87 {offsets = [0, 0, 2, 0], sizes = [2, 16, 1, 32], strides = [1, 1, 1, 1]} : vector<2x16x16x32xf32> to vector<2x16x1x32xf32>
    %93 = vector.shape_cast %92 : vector<2x16x1x32xf32> to vector<2x16x32xf32>
    %94 = vector.extract_strided_slice %87 {offsets = [0, 0, 3, 0], sizes = [2, 16, 1, 32], strides = [1, 1, 1, 1]} : vector<2x16x16x32xf32> to vector<2x16x1x32xf32>
    %95 = vector.shape_cast %94 : vector<2x16x1x32xf32> to vector<2x16x32xf32>
    %96 = vector.extract_strided_slice %87 {offsets = [0, 0, 4, 0], sizes = [2, 16, 1, 32], strides = [1, 1, 1, 1]} : vector<2x16x16x32xf32> to vector<2x16x1x32xf32>
    %97 = vector.shape_cast %96 : vector<2x16x1x32xf32> to vector<2x16x32xf32>
    %98 = vector.extract_strided_slice %87 {offsets = [0, 0, 5, 0], sizes = [2, 16, 1, 32], strides = [1, 1, 1, 1]} : vector<2x16x16x32xf32> to vector<2x16x1x32xf32>
    %99 = vector.shape_cast %98 : vector<2x16x1x32xf32> to vector<2x16x32xf32>
    %100 = vector.extract_strided_slice %87 {offsets = [0, 0, 6, 0], sizes = [2, 16, 1, 32], strides = [1, 1, 1, 1]} : vector<2x16x16x32xf32> to vector<2x16x1x32xf32>
    %101 = vector.shape_cast %100 : vector<2x16x1x32xf32> to vector<2x16x32xf32>
    %102 = vector.extract_strided_slice %87 {offsets = [0, 0, 7, 0], sizes = [2, 16, 1, 32], strides = [1, 1, 1, 1]} : vector<2x16x16x32xf32> to vector<2x16x1x32xf32>
    %103 = vector.shape_cast %102 : vector<2x16x1x32xf32> to vector<2x16x32xf32>
    %104 = vector.extract_strided_slice %87 {offsets = [0, 0, 8, 0], sizes = [2, 16, 1, 32], strides = [1, 1, 1, 1]} : vector<2x16x16x32xf32> to vector<2x16x1x32xf32>
    %105 = vector.shape_cast %104 : vector<2x16x1x32xf32> to vector<2x16x32xf32>
    %106 = vector.extract_strided_slice %87 {offsets = [0, 0, 9, 0], sizes = [2, 16, 1, 32], strides = [1, 1, 1, 1]} : vector<2x16x16x32xf32> to vector<2x16x1x32xf32>
    %107 = vector.shape_cast %106 : vector<2x16x1x32xf32> to vector<2x16x32xf32>
    %108 = vector.extract_strided_slice %87 {offsets = [0, 0, 10, 0], sizes = [2, 16, 1, 32], strides = [1, 1, 1, 1]} : vector<2x16x16x32xf32> to vector<2x16x1x32xf32>
    %109 = vector.shape_cast %108 : vector<2x16x1x32xf32> to vector<2x16x32xf32>
    %110 = vector.extract_strided_slice %87 {offsets = [0, 0, 11, 0], sizes = [2, 16, 1, 32], strides = [1, 1, 1, 1]} : vector<2x16x16x32xf32> to vector<2x16x1x32xf32>
    %111 = vector.shape_cast %110 : vector<2x16x1x32xf32> to vector<2x16x32xf32>
    %112 = vector.extract_strided_slice %87 {offsets = [0, 0, 12, 0], sizes = [2, 16, 1, 32], strides = [1, 1, 1, 1]} : vector<2x16x16x32xf32> to vector<2x16x1x32xf32>
    %113 = vector.shape_cast %112 : vector<2x16x1x32xf32> to vector<2x16x32xf32>
    %114 = vector.extract_strided_slice %87 {offsets = [0, 0, 13, 0], sizes = [2, 16, 1, 32], strides = [1, 1, 1, 1]} : vector<2x16x16x32xf32> to vector<2x16x1x32xf32>
    %115 = vector.shape_cast %114 : vector<2x16x1x32xf32> to vector<2x16x32xf32>
    %116 = vector.extract_strided_slice %87 {offsets = [0, 0, 14, 0], sizes = [2, 16, 1, 32], strides = [1, 1, 1, 1]} : vector<2x16x16x32xf32> to vector<2x16x1x32xf32>
    %117 = vector.shape_cast %116 : vector<2x16x1x32xf32> to vector<2x16x32xf32>
    %118 = vector.extract_strided_slice %87 {offsets = [0, 0, 15, 0], sizes = [2, 16, 1, 32], strides = [1, 1, 1, 1]} : vector<2x16x16x32xf32> to vector<2x16x1x32xf32>
    %119 = vector.shape_cast %118 : vector<2x16x1x32xf32> to vector<2x16x32xf32>
    %120 = tpu.concatenate %89, %91, %93, %95, %97, %99, %101, %103, %105, %107, %109, %111, %113, %115, %117, %119 in 2 : vector<2x16x32xf32>, vector<2x16x32xf32>, vector<2x16x32xf32>, vector<2x16x32xf32>, vector<2x16x32xf32>, vector<2x16x32xf32>, vector<2x16x32xf32>, vector<2x16x32xf32>, vector<2x16x32xf32>, vector<2x16x32xf32>, vector<2x16x32xf32>, vector<2x16x32xf32>, vector<2x16x32xf32>, vector<2x16x32xf32>, vector<2x16x32xf32>, vector<2x16x32xf32> -> vector<2x16x512xf32>
    %121 = arith.addf %0, %120 : vector<2x16x512xf32>
    %c0_20 = arith.constant 0 : index
    %c0_21 = arith.constant 0 : index
    %c0_22 = arith.constant 0 : index
    %122 = vector.load %arg6[%c0_20, %c0_21, %c0_22] : memref<2x16x512xf32, #tpu.memory_space<vmem>>, vector<2x16x512xf32>
    tpu.vector_store %arg6[%c0_20, %c0_21, %c0_22], %121 {strides = array<i32>} : memref<2x16x512xf32, #tpu.memory_space<vmem>>, vector<2x16x512xf32>,
    return
  }
  func.func @transform_0(%arg0: i32) -> (i32, i32, i32) {
    %c0_i32 = arith.constant 0 : i32
    %c0_i32_0 = arith.constant 0 : i32
    %c0_i32_1 = arith.constant 0 : i32
    return %arg0, %c0_i32, %c0_i32_0 : i32, i32, i32
  }
  func.func @transform_1(%arg0: i32) -> (i32, i32) {
    %c0_i32 = arith.constant 0 : i32
    %c0_i32_0 = arith.constant 0 : i32
    %c0_i32_1 = arith.constant 0 : i32
    return %c0_i32, %c0_i32_0 : i32, i32
  }
  func.func @transform_2(%arg0: i32) -> (i32, i32) {
    %c0_i32 = arith.constant 0 : i32
    %c0_i32_0 = arith.constant 0 : i32
    %c0_i32_1 = arith.constant 0 : i32
    return %c0_i32, %c0_i32_0 : i32, i32
  }
  func.func @transform_3(%arg0: i32) -> (i32, i32) {
    %c0_i32 = arith.constant 0 : i32
    %c0_i32_0 = arith.constant 0 : i32
    %c0_i32_1 = arith.constant 0 : i32
    return %c0_i32, %c0_i32_0 : i32, i32
  }
  func.func @transform_4(%arg0: i32) -> (i32, i32) {
    %c0_i32 = arith.constant 0 : i32
    %c0_i32_0 = arith.constant 0 : i32
    %c0_i32_1 = arith.constant 0 : i32
    return %c0_i32, %c0_i32_0 : i32, i32
  }
  func.func @transform_5(%arg0: i32) -> (i32, i32, i32) {
    %c0_i32 = arith.constant 0 : i32
    %c0_i32_0 = arith.constant 0 : i32
    %c0_i32_1 = arith.constant 0 : i32
    return %arg0, %c0_i32, %c0_i32_0 : i32, i32, i32
  }
}

</mosaic_0001>

<llo_original>
// kernel: residual_block_nobn_3d.1
$region0: #{residual_block_nobn_3d.1}
  #allocation0 [shape = 'u32[]', space=smem, size = 0x4, offset = 0x4, fixed_abs, tag = 'smem constant byte address 0x4 - core index']
  #allocation1 [shape = 'u32[72,128]{1,0:T(1,128)}', space=vmem, size = 0x9000, scoped, tag = 'internal scratch']
  %s0 = inlined_call_operand.vmem [shape: f32[6,16,512], index: 0, kind: input, shape index: {}]
  %s1 = inlined_call_operand.vmem [shape: f32[96,96], index: 1, kind: input, shape index: {}]
  %s2 = inlined_call_operand.vmem [shape: f32[1,32], index: 2, kind: input, shape index: {}]
  %s3 = inlined_call_operand.vmem [shape: f32[96,96], index: 3, kind: input, shape index: {}]
  %s4 = inlined_call_operand.vmem [shape: f32[1,32], index: 4, kind: input, shape index: {}]
  %s5 = inlined_call_operand.vmem [shape: f32[6,16,512], index: 5, kind: output, shape index: {}]
  %s6 = sld [smem:[#allocation0]]
  $region53: #{residual_block_nobn_3d.1} parent=0
    _
  %s8 = ssub.s32 1, %s6
  %s9 = scalar_select 0, %s8, %s6
  loop: start=0, step=1, limit=5
  $region2: #{residual_block_nobn_3d.1} parent=0 // loop_pre_header
    _
  $region3: #{residual_block_nobn_3d.1} parent=0 // loop_header
    %s11 = sphi 0, %s15
    %p12 = scmp.ge.s32.totalorder %s11, 5
    %s21 = sphi 0, %s23
    %s24 = sphi 0, %s21
    %s25 = sphi 0, %s24
    %s41 = sphi 0, %s25
    %s45 = sphi 0, %s45
    %s47 = sphi 0, %s45
    %s48 = sphi 0, %s47
    %s62 = sphi 0, %s48
    %s66 = sphi 0, %s66
    %s68 = sphi 0, %s66
    %s69 = sphi 0, %s68
    %s83 = sphi 0, %s69
    %s87 = sphi 0, %s87
    %s89 = sphi 0, %s87
    %s90 = sphi 0, %s89
    %s104 = sphi 0, %s90
    %s108 = sphi 0, %s108
    %s110 = sphi 0, %s108
    %s111 = sphi 0, %s110
    %s125 = sphi 0, %s111
    %s131 = sphi 0, %s133
    %s134 = sphi 0, %s131
    %s135 = sphi 0, %s134
    %s151 = sphi 0, %s135
  $region4: #{residual_block_nobn_3d.1} parent=0 // loop_header_branch
    %14 = sbr.rel (%p12) target = $region8
  $region5: #{residual_block_nobn_3d.1} parent=0 // loop_body
    %s16 = ssub.s32 %s11, 1
    %s17 = ssub.s32 %s11, 2
    %s18 = sadd.s32 %s11, 1
    %s19 = ssub.s32 %s11, %s18
    %p20 = scmp.eq.s32.totalorder %s19, 0
    %s22 = sadd.s32 %s21, 1
    %s23 = scalar_select %p20, %s21, %s22
    %p26 = pneg %p20
    %p27 = scmp.eq.s32.totalorder %s11, 2
    %p28 = por %p26, %p27
    %p29 = scmp.ne.s32.totalorder %s21, %s24
    %p30 = scmp.eq.s32.totalorder %s11, 0
    %p31 = por %p29, %p30
    %p32 = scmp.ne.s32.totalorder %s21, %s24
    %p33 = scmp.eq.s32.totalorder %s16, 2
    %p34 = por %p32, %p33
    %p35 = scmp.ne.s32.totalorder %s24, %s25
    %p36 = scmp.eq.s32.totalorder %s16, 0
    %p37 = por %p35, %p36
    %p38 = scmp.ne.s32.totalorder %s24, %s25
    %p39 = scmp.eq.s32.totalorder %s17, 2
    %p40 = por %p38, %p39
    %p42 = scmp.ne.s32.totalorder %s25, %s41
    %p43 = scmp.eq.s32.totalorder %s17, 0
    %p44 = por %p42, %p43
    %s46 = sadd.s32 %s45, 1
    %p49 = scmp.eq.s32.totalorder %s11, 2
    %p50 = scmp.ne.s32.totalorder %s45, %s47
    %p51 = scmp.eq.s32.totalorder %s11, 0
    %p52 = por %p50, %p51
    %p53 = scmp.ne.s32.totalorder %s45, %s47
    %p54 = scmp.eq.s32.totalorder %s16, 2
    %p55 = por %p53, %p54
    %p56 = scmp.ne.s32.totalorder %s47, %s48
    %p57 = scmp.eq.s32.totalorder %s16, 0
    %p58 = por %p56, %p57
    %p59 = scmp.ne.s32.totalorder %s47, %s48
    %p60 = scmp.eq.s32.totalorder %s17, 2
    %p61 = por %p59, %p60
    %p63 = scmp.ne.s32.totalorder %s48, %s62
    %p64 = scmp.eq.s32.totalorder %s17, 0
    %p65 = por %p63, %p64
    %s67 = sadd.s32 %s66, 1
    %p70 = scmp.eq.s32.totalorder %s11, 2
    %p71 = scmp.ne.s32.totalorder %s66, %s68
    %p72 = scmp.eq.s32.totalorder %s11, 0
    %p73 = por %p71, %p72
    %p74 = scmp.ne.s32.totalorder %s66, %s68
    %p75 = scmp.eq.s32.totalorder %s16, 2
    %p76 = por %p74, %p75
    %p77 = scmp.ne.s32.totalorder %s68, %s69
    %p78 = scmp.eq.s32.totalorder %s16, 0
    %p79 = por %p77, %p78
    %p80 = scmp.ne.s32.totalorder %s68, %s69
    %p81 = scmp.eq.s32.totalorder %s17, 2
    %p82 = por %p80, %p81
    %p84 = scmp.ne.s32.totalorder %s69, %s83
    %p85 = scmp.eq.s32.totalorder %s17, 0
    %p86 = por %p84, %p85
    %s88 = sadd.s32 %s87, 1
    %p91 = scmp.eq.s32.totalorder %s11, 2
    %p92 = scmp.ne.s32.totalorder %s87, %s89
    %p93 = scmp.eq.s32.totalorder %s11, 0
    %p94 = por %p92, %p93
    %p95 = scmp.ne.s32.totalorder %s87, %s89
    %p96 = scmp.eq.s32.totalorder %s16, 2
    %p97 = por %p95, %p96
    %p98 = scmp.ne.s32.totalorder %s89, %s90
    %p99 = scmp.eq.s32.totalorder %s16, 0
    %p100 = por %p98, %p99
    %p101 = scmp.ne.s32.totalorder %s89, %s90
    %p102 = scmp.eq.s32.totalorder %s17, 2
    %p103 = por %p101, %p102
    %p105 = scmp.ne.s32.totalorder %s90, %s104
    %p106 = scmp.eq.s32.totalorder %s17, 0
    %p107 = por %p105, %p106
    %s109 = sadd.s32 %s108, 1
    %p112 = scmp.eq.s32.totalorder %s11, 2
    %p113 = scmp.ne.s32.totalorder %s108, %s110
    %p114 = scmp.eq.s32.totalorder %s11, 0
    %p115 = por %p113, %p114
    %p116 = scmp.ne.s32.totalorder %s108, %s110
    %p117 = scmp.eq.s32.totalorder %s16, 2
    %p118 = por %p116, %p117
    %p119 = scmp.ne.s32.totalorder %s110, %s111
    %p120 = scmp.eq.s32.totalorder %s16, 0
    %p121 = por %p119, %p120
    %p122 = scmp.ne.s32.totalorder %s110, %s111
    %p123 = scmp.eq.s32.totalorder %s17, 2
    %p124 = por %p122, %p123
    %p126 = scmp.ne.s32.totalorder %s111, %s125
    %p127 = scmp.eq.s32.totalorder %s17, 0
    %p128 = por %p126, %p127
    %s129 = ssub.s32 %s11, %s18
    %p130 = scmp.eq.s32.totalorder %s129, 0
    %s132 = sadd.s32 %s131, 1
    %s133 = scalar_select %p130, %s131, %s132
    %p136 = pneg %p130
    %p137 = scmp.eq.s32.totalorder %s11, 2
    %p138 = por %p136, %p137
    %p139 = scmp.ne.s32.totalorder %s131, %s134
    %p140 = scmp.eq.s32.totalorder %s11, 0
    %p141 = por %p139, %p140
    %p142 = scmp.ne.s32.totalorder %s131, %s134
    %p143 = scmp.eq.s32.totalorder %s16, 2
    %p144 = por %p142, %p143
    %p145 = scmp.ne.s32.totalorder %s134, %s135
    %p146 = scmp.eq.s32.totalorder %s16, 0
    %p147 = por %p145, %p146
    %p148 = scmp.ne.s32.totalorder %s134, %s135
    %p149 = scmp.eq.s32.totalorder %s17, 2
    %p150 = por %p148, %p149
    %p152 = scmp.ne.s32.totalorder %s135, %s151
    %p153 = scmp.eq.s32.totalorder %s17, 0
    %p154 = por %p152, %p153
    %p155 = scmp.le.s32.totalorder 1, %s11
    %p156 = scmp.lt.s32.totalorder %s11, 4
    %p157 = pnand %p155, %p156
    %p158 = pneg %p157
    // Predicated region
    $region9: #{residual_block_nobn_3d.1} parent=5 // pred_check
      _
    $region10: #{residual_block_nobn_3d.1} parent=5 // pred_check_branch
      %160 = sbr.rel (%p157) target = $region12
    $region11: #{residual_block_nobn_3d.1} parent=5 // pred_region
      %s161 = ssub.s32 %s11, 1
      // Predicated region
      $region13: #{residual_block_nobn_3d.1} parent=11 // pred_check
        %p162 = pneg %p58
      $region14: #{residual_block_nobn_3d.1} parent=11 // pred_check_branch
        %164 = sbr.rel (%p162) target = $region16
      $region15: #{residual_block_nobn_3d.1} parent=11 // pred_region
        _
      $region16: #{residual_block_nobn_3d.1} parent=11 // pred_fallthru
        _
      // Predicated region
      $region17: #{residual_block_nobn_3d.1} parent=11 // pred_check
        %p165 = pneg %p79
      $region18: #{residual_block_nobn_3d.1} parent=11 // pred_check_branch
        %167 = sbr.rel (%p165) target = $region20
      $region19: #{residual_block_nobn_3d.1} parent=11 // pred_region
        _
      $region20: #{residual_block_nobn_3d.1} parent=11 // pred_fallthru
        _
      // Predicated region
      $region21: #{residual_block_nobn_3d.1} parent=11 // pred_check
        %p168 = pneg %p100
      $region22: #{residual_block_nobn_3d.1} parent=11 // pred_check_branch
        %170 = sbr.rel (%p168) target = $region24
      $region23: #{residual_block_nobn_3d.1} parent=11 // pred_region
        _
      $region24: #{residual_block_nobn_3d.1} parent=11 // pred_fallthru
        _
      // Predicated region
      $region25: #{residual_block_nobn_3d.1} parent=11 // pred_check
        %p171 = pneg %p121
      $region26: #{residual_block_nobn_3d.1} parent=11 // pred_check_branch
        %173 = sbr.rel (%p171) target = $region28
      $region27: #{residual_block_nobn_3d.1} parent=11 // pred_region
        _
      $region28: #{residual_block_nobn_3d.1} parent=11 // pred_fallthru
        _
    $region12: #{residual_block_nobn_3d.1} parent=5 // pred_fallthru
      _
    %p174 = scmp.lt.s32.totalorder %s11, 3
    // Predicated region
    $region29: #{residual_block_nobn_3d.1} parent=5 // pred_check
      %p175 = pneg %p174
    $region30: #{residual_block_nobn_3d.1} parent=5 // pred_check_branch
      %177 = sbr.rel (%p175) target = $region32
    $region31: #{residual_block_nobn_3d.1} parent=5 // pred_region
      // Predicated region
      $region33: #{residual_block_nobn_3d.1} parent=31 // pred_check
        %p178 = pneg %p31
      $region34: #{residual_block_nobn_3d.1} parent=31 // pred_check_branch
        %180 = sbr.rel (%p178) target = $region36
      $region35: #{residual_block_nobn_3d.1} parent=31 // pred_region
        %s181 = smul.u32 2, %s11
        %p182 = scmp.lt.s32.totalorder %s181, 5
        %s183 = scalar_select %p182, %s181, 5
        %s184 = smul.addr %s183, 8
        %s185 = smul.addr %s184, 8
        %s186 = scalar_lea.vmem %s0, %s185
        %s187 = smul.u32 2, %s11
      $region36: #{residual_block_nobn_3d.1} parent=31 // pred_fallthru
        _
    $region32: #{residual_block_nobn_3d.1} parent=5 // pred_fallthru
      _
    %p188 = scmp.le.s32.totalorder 1, %s11
    %p189 = scmp.lt.s32.totalorder %s11, 4
    %p190 = pnand %p188, %p189
    %p191 = pneg %p190
    // Predicated region
    $region37: #{residual_block_nobn_3d.1} parent=5 // pred_check
      _
    $region38: #{residual_block_nobn_3d.1} parent=5 // pred_check_branch
      %193 = sbr.rel (%p190) target = $region40
    $region39: #{residual_block_nobn_3d.1} parent=5 // pred_region
      %s194 = ssub.s32 %s11, 1
      %s195 = smul.u32 2, %s16
      %p196 = scmp.lt.s32.totalorder %s195, 5
      %s197 = scalar_select %p196, %s195, 5
      %s198 = smul.addr %s197, 8
      %s199 = smul.addr %s198, 8
      %s200 = scalar_lea.vmem %s0, %s199
      %p201 = pneg %p37
      %p202 = pneg %p34
      %p203 = pneg %p58
      %p204 = pneg %p55
      %p205 = pneg %p79
      %p206 = pneg %p76
      %p207 = pneg %p100
      %p208 = pneg %p97
      %p209 = pneg %p121
      %p210 = pneg %p118
      %p211 = pneg %p147
      %p212 = pneg %p144
      %s213 = smul.u32 2, %s16
      %p214 = scmp.lt.s32.totalorder %s213, 5
      %s215 = scalar_select %p214, %s213, 5
      %s216 = smul.addr %s215, 8
      %s217 = smul.addr %s216, 8
      %s218 = scalar_lea.vmem %s5, %s217
      %s219 = smul.u32 2, %s16
      %p220 = scmp.lt.s32.totalorder %s219, 5
      %s221 = scalar_select %p220, %s219, 5
      %s222 = smul.addr %s221, 8
      %s223 = smul.addr %s222, 8
      %s224 = scalar_lea.vmem %s0, %s223
      %s225 = smul.u32 2, %s16
      %s226 = smul.u32 2, %s16
      %p227 = scmp.lt.s32.totalorder %s226, 5
      %s228 = scalar_select %p227, %s226, 5
      %s229 = smul.addr %s228, 8
      %s230 = smul.addr %s229, 8
      %s231 = scalar_lea.vmem %s5, %s230
      %s232 = smul.u32 2, %s16
      %v233 = vld [vmem:[%s224] sm:$0xff]
      %v234 = vld [vmem:[%s224 + $0x8] sm:$0xff]
      %v235 = vld [vmem:[%s224 + $0x10] sm:$0xff]
      %v236 = vld [vmem:[%s224 + $0x18] sm:$0xff]
      %v237 = vld [vmem:[%s224 + $0x20] sm:$0xff]
      %v238 = vld [vmem:[%s224 + $0x28] sm:$0xff]
      %v239 = vld [vmem:[%s224 + $0x30] sm:$0xff]
      %v240 = vld [vmem:[%s224 + $0x38] sm:$0xff]
      %v241 = vld [vmem:[%s224 + $0x40] sm:$0xff]
      %v242 = vld [vmem:[%s224 + $0x48] sm:$0xff]
      %v243 = vld [vmem:[%s224 + $0x50] sm:$0xff]
      %v244 = vld [vmem:[%s224 + $0x58] sm:$0xff]
      %v245 = vld [vmem:[%s224 + $0x60] sm:$0xff]
      %v246 = vld [vmem:[%s224 + $0x68] sm:$0xff]
      %v247 = vld [vmem:[%s224 + $0x70] sm:$0xff]
      %v248 = vld [vmem:[%s224 + $0x78] sm:$0xff]
      %v253 = vrot.slane %v233, 1
      %v254 = vrot.slane %v233, 2
      %v255 = vrot.slane %v233, 3
      %v256 = vrot.slane %v233, 4
      %v257 = vrot.slane %v233, 5
      %v258 = vrot.slane %v233, 6
      %v259 = vrot.slane %v233, 7
      %v260 = vrot.slane %v237, 1
      %v261 = vrot.slane %v237, 2
      %v262 = vrot.slane %v237, 3
      %v263 = vrot.slane %v237, 4
      %v264 = vrot.slane %v237, 5
      %v265 = vrot.slane %v237, 6
      %v266 = vrot.slane %v237, 7
      %v267 = vrot.slane %v241, 1
      %v268 = vrot.slane %v241, 2
      %v269 = vrot.slane %v241, 3
      %v270 = vrot.slane %v241, 4
      %v271 = vrot.slane %v241, 5
      %v272 = vrot.slane %v241, 6
      %v273 = vrot.slane %v241, 7
      %v274 = vrot.slane %v245, 1
      %v275 = vrot.slane %v245, 2
      %v276 = vrot.slane %v245, 3
      %v277 = vrot.slane %v245, 4
      %v278 = vrot.slane %v245, 5
      %v279 = vrot.slane %v245, 6
      %v280 = vrot.slane %v245, 7
      %v313 = vrot.slane %v234, 1
      %v314 = vrot.slane %v234, 2
      %v315 = vrot.slane %v234, 3
      %v316 = vrot.slane %v234, 4
      %v317 = vrot.slane %v234, 5
      %v318 = vrot.slane %v234, 6
      %v319 = vrot.slane %v234, 7
      %v320 = vrot.slane %v238, 1
      %v321 = vrot.slane %v238, 2
      %v322 = vrot.slane %v238, 3
      %v323 = vrot.slane %v238, 4
      %v324 = vrot.slane %v238, 5
      %v325 = vrot.slane %v238, 6
      %v326 = vrot.slane %v238, 7
      %v327 = vrot.slane %v242, 1
      %v328 = vrot.slane %v242, 2
      %v329 = vrot.slane %v242, 3
      %v330 = vrot.slane %v242, 4
      %v331 = vrot.slane %v242, 5
      %v332 = vrot.slane %v242, 6
      %v333 = vrot.slane %v242, 7
      %v334 = vrot.slane %v246, 1
      %v335 = vrot.slane %v246, 2
      %v336 = vrot.slane %v246, 3
      %v337 = vrot.slane %v246, 4
      %v338 = vrot.slane %v246, 5
      %v339 = vrot.slane %v246, 6
      %v340 = vrot.slane %v246, 7
      %v345 = vrot.slane %v235, 1
      %v346 = vrot.slane %v235, 2
      %v347 = vrot.slane %v235, 3
      %v348 = vrot.slane %v235, 4
      %v349 = vrot.slane %v235, 5
      %v350 = vrot.slane %v235, 6
      %v351 = vrot.slane %v235, 7
      %v352 = vrot.slane %v239, 1
      %v353 = vrot.slane %v239, 2
      %v354 = vrot.slane %v239, 3
      %v355 = vrot.slane %v239, 4
      %v356 = vrot.slane %v239, 5
      %v357 = vrot.slane %v239, 6
      %v358 = vrot.slane %v239, 7
      %v359 = vrot.slane %v243, 1
      %v360 = vrot.slane %v243, 2
      %v361 = vrot.slane %v243, 3
      %v362 = vrot.slane %v243, 4
      %v363 = vrot.slane %v243, 5
      %v364 = vrot.slane %v243, 6
      %v365 = vrot.slane %v243, 7
      %v366 = vrot.slane %v247, 1
      %v367 = vrot.slane %v247, 2
      %v368 = vrot.slane %v247, 3
      %v369 = vrot.slane %v247, 4
      %v370 = vrot.slane %v247, 5
      %v371 = vrot.slane %v247, 6
      %v372 = vrot.slane %v247, 7
      %v405 = vrot.slane %v236, 1
      %v406 = vrot.slane %v236, 2
      %v407 = vrot.slane %v236, 3
      %v408 = vrot.slane %v236, 4
      %v409 = vrot.slane %v236, 5
      %v410 = vrot.slane %v236, 6
      %v411 = vrot.slane %v236, 7
      %v412 = vrot.slane %v240, 1
      %v413 = vrot.slane %v240, 2
      %v414 = vrot.slane %v240, 3
      %v415 = vrot.slane %v240, 4
      %v416 = vrot.slane %v240, 5
      %v417 = vrot.slane %v240, 6
      %v418 = vrot.slane %v240, 7
      %v419 = vrot.slane %v244, 1
      %v420 = vrot.slane %v244, 2
      %v421 = vrot.slane %v244, 3
      %v422 = vrot.slane %v244, 4
      %v423 = vrot.slane %v244, 5
      %v424 = vrot.slane %v244, 6
      %v425 = vrot.slane %v244, 7
      %v426 = vrot.slane %v248, 1
      %v427 = vrot.slane %v248, 2
      %v428 = vrot.slane %v248, 3
      %v429 = vrot.slane %v248, 4
      %v430 = vrot.slane %v248, 5
      %v431 = vrot.slane %v248, 6
      %v432 = vrot.slane %v248, 7
      %v433 = vperm.slane %v233, 0
      %v434 = vperm.slane %v253, 0
      %v435 = vperm.slane %v254, 0
      %v436 = vperm.slane %v255, 0
      %v437 = vperm.slane %v256, 0
      %v438 = vperm.slane %v257, 0
      %v439 = vperm.slane %v258, 0
      %v440 = vperm.slane %v259, 0
      %v441 = vperm.slane %v237, 0
      %v442 = vperm.slane %v260, 0
      %v443 = vperm.slane %v261, 0
      %v444 = vperm.slane %v262, 0
      %v445 = vperm.slane %v263, 0
      %v446 = vperm.slane %v264, 0
      %v447 = vperm.slane %v265, 0
      %v448 = vperm.slane %v266, 0
      %v449 = vperm.slane %v241, 0
      %v450 = vperm.slane %v267, 0
      %v451 = vperm.slane %v268, 0
      %v452 = vperm.slane %v269, 0
      %v453 = vperm.slane %v270, 0
      %v454 = vperm.slane %v271, 0
      %v455 = vperm.slane %v272, 0
      %v456 = vperm.slane %v273, 0
      %v457 = vperm.slane %v245, 0
      %v458 = vperm.slane %v274, 0
      %v459 = vperm.slane %v275, 0
      %v460 = vperm.slane %v276, 0
      %v461 = vperm.slane %v277, 0
      %v462 = vperm.slane %v278, 0
      %v463 = vperm.slane %v279, 0
      %v464 = vperm.slane %v280, 0
      %465 = vrot.lane.b32.xlu0 %v433, 96
      %v466 = vpop.permute.xlu0 %465
      %467 = vrot.lane.b32.xlu0 %v434, 96
      %v468 = vpop.permute.xlu0 %467
      %469 = vrot.lane.b32.xlu0 %v435, 96
      %v470 = vpop.permute.xlu0 %469
      %471 = vrot.lane.b32.xlu0 %v436, 96
      %v472 = vpop.permute.xlu0 %471
      %473 = vrot.lane.b32.xlu0 %v437, 96
      %v474 = vpop.permute.xlu0 %473
      %475 = vrot.lane.b32.xlu0 %v438, 96
      %v476 = vpop.permute.xlu0 %475
      %477 = vrot.lane.b32.xlu0 %v439, 96
      %v478 = vpop.permute.xlu0 %477
      %479 = vrot.lane.b32.xlu0 %v440, 96
      %v480 = vpop.permute.xlu0 %479
      %481 = vrot.lane.b32.xlu0 %v441, 96
      %v482 = vpop.permute.xlu0 %481
      %483 = vrot.lane.b32.xlu0 %v442, 96
      %v484 = vpop.permute.xlu0 %483
      %485 = vrot.lane.b32.xlu0 %v443, 96
      %v486 = vpop.permute.xlu0 %485
      %487 = vrot.lane.b32.xlu0 %v444, 96
      %v488 = vpop.permute.xlu0 %487
      %489 = vrot.lane.b32.xlu0 %v445, 96
      %v490 = vpop.permute.xlu0 %489
      %491 = vrot.lane.b32.xlu0 %v446, 96
      %v492 = vpop.permute.xlu0 %491
      %493 = vrot.lane.b32.xlu0 %v447, 96
      %v494 = vpop.permute.xlu0 %493
      %495 = vrot.lane.b32.xlu0 %v448, 96
      %v496 = vpop.permute.xlu0 %495
      %497 = vrot.lane.b32.xlu0 %v449, 96
      %v498 = vpop.permute.xlu0 %497
      %499 = vrot.lane.b32.xlu0 %v450, 96
      %v500 = vpop.permute.xlu0 %499
      %501 = vrot.lane.b32.xlu0 %v451, 96
      %v502 = vpop.permute.xlu0 %501
      %503 = vrot.lane.b32.xlu0 %v452, 96
      %v504 = vpop.permute.xlu0 %503
      %505 = vrot.lane.b32.xlu0 %v453, 96
      %v506 = vpop.permute.xlu0 %505
      %507 = vrot.lane.b32.xlu0 %v454, 96
      %v508 = vpop.permute.xlu0 %507
      %509 = vrot.lane.b32.xlu0 %v455, 96
      %v510 = vpop.permute.xlu0 %509
      %511 = vrot.lane.b32.xlu0 %v456, 96
      %v512 = vpop.permute.xlu0 %511
      %513 = vrot.lane.b32.xlu0 %v457, 96
      %v514 = vpop.permute.xlu0 %513
      %515 = vrot.lane.b32.xlu0 %v458, 96
      %v516 = vpop.permute.xlu0 %515
      %517 = vrot.lane.b32.xlu0 %v459, 96
      %v518 = vpop.permute.xlu0 %517
      %519 = vrot.lane.b32.xlu0 %v460, 96
      %v520 = vpop.permute.xlu0 %519
      %521 = vrot.lane.b32.xlu0 %v461, 96
      %v522 = vpop.permute.xlu0 %521
      %523 = vrot.lane.b32.xlu0 %v462, 96
      %v524 = vpop.permute.xlu0 %523
      %525 = vrot.lane.b32.xlu0 %v463, 96
      %v526 = vpop.permute.xlu0 %525
      %527 = vrot.lane.b32.xlu0 %v464, 96
      %v528 = vpop.permute.xlu0 %527
      %561 = vrot.lane.b32.xlu0 %v433, 64
      %v562 = vpop.permute.xlu0 %561
      %563 = vrot.lane.b32.xlu0 %v434, 64
      %v564 = vpop.permute.xlu0 %563
      %565 = vrot.lane.b32.xlu0 %v435, 64
      %v566 = vpop.permute.xlu0 %565
      %567 = vrot.lane.b32.xlu0 %v436, 64
      %v568 = vpop.permute.xlu0 %567
      %569 = vrot.lane.b32.xlu0 %v437, 64
      %v570 = vpop.permute.xlu0 %569
      %571 = vrot.lane.b32.xlu0 %v438, 64
      %v572 = vpop.permute.xlu0 %571
      %573 = vrot.lane.b32.xlu0 %v439, 64
      %v574 = vpop.permute.xlu0 %573
      %575 = vrot.lane.b32.xlu0 %v440, 64
      %v576 = vpop.permute.xlu0 %575
      %577 = vrot.lane.b32.xlu0 %v441, 64
      %v578 = vpop.permute.xlu0 %577
      %579 = vrot.lane.b32.xlu0 %v442, 64
      %v580 = vpop.permute.xlu0 %579
      %581 = vrot.lane.b32.xlu0 %v443, 64
      %v582 = vpop.permute.xlu0 %581
      %583 = vrot.lane.b32.xlu0 %v444, 64
      %v584 = vpop.permute.xlu0 %583
      %585 = vrot.lane.b32.xlu0 %v445, 64
      %v586 = vpop.permute.xlu0 %585
      %587 = vrot.lane.b32.xlu0 %v446, 64
      %v588 = vpop.permute.xlu0 %587
      %589 = vrot.lane.b32.xlu0 %v447, 64
      %v590 = vpop.permute.xlu0 %589
      %591 = vrot.lane.b32.xlu0 %v448, 64
      %v592 = vpop.permute.xlu0 %591
      %593 = vrot.lane.b32.xlu0 %v449, 64
      %v594 = vpop.permute.xlu0 %593
      %595 = vrot.lane.b32.xlu0 %v450, 64
      %v596 = vpop.permute.xlu0 %595
      %597 = vrot.lane.b32.xlu0 %v451, 64
      %v598 = vpop.permute.xlu0 %597
      %599 = vrot.lane.b32.xlu0 %v452, 64
      %v600 = vpop.permute.xlu0 %599
      %601 = vrot.lane.b32.xlu0 %v453, 64
      %v602 = vpop.permute.xlu0 %601
      %603 = vrot.lane.b32.xlu0 %v454, 64
      %v604 = vpop.permute.xlu0 %603
      %605 = vrot.lane.b32.xlu0 %v455, 64
      %v606 = vpop.permute.xlu0 %605
      %607 = vrot.lane.b32.xlu0 %v456, 64
      %v608 = vpop.permute.xlu0 %607
      %609 = vrot.lane.b32.xlu0 %v457, 64
      %v610 = vpop.permute.xlu0 %609
      %611 = vrot.lane.b32.xlu0 %v458, 64
      %v612 = vpop.permute.xlu0 %611
      %613 = vrot.lane.b32.xlu0 %v459, 64
      %v614 = vpop.permute.xlu0 %613
      %615 = vrot.lane.b32.xlu0 %v460, 64
      %v616 = vpop.permute.xlu0 %615
      %617 = vrot.lane.b32.xlu0 %v461, 64
      %v618 = vpop.permute.xlu0 %617
      %619 = vrot.lane.b32.xlu0 %v462, 64
      %v620 = vpop.permute.xlu0 %619
      %621 = vrot.lane.b32.xlu0 %v463, 64
      %v622 = vpop.permute.xlu0 %621
      %623 = vrot.lane.b32.xlu0 %v464, 64
      %v624 = vpop.permute.xlu0 %623
      %657 = vrot.lane.b32.xlu0 %v433, 32
      %v658 = vpop.permute.xlu0 %657
      %659 = vrot.lane.b32.xlu0 %v434, 32
      %v660 = vpop.permute.xlu0 %659
      %661 = vrot.lane.b32.xlu0 %v435, 32
      %v662 = vpop.permute.xlu0 %661
      %663 = vrot.lane.b32.xlu0 %v436, 32
      %v664 = vpop.permute.xlu0 %663
      %665 = vrot.lane.b32.xlu0 %v437, 32
      %v666 = vpop.permute.xlu0 %665
      %667 = vrot.lane.b32.xlu0 %v438, 32
      %v668 = vpop.permute.xlu0 %667
      %669 = vrot.lane.b32.xlu0 %v439, 32
      %v670 = vpop.permute.xlu0 %669
      %671 = vrot.lane.b32.xlu0 %v440, 32
      %v672 = vpop.permute.xlu0 %671
      %673 = vrot.lane.b32.xlu0 %v441, 32
      %v674 = vpop.permute.xlu0 %673
      %675 = vrot.lane.b32.xlu0 %v442, 32
      %v676 = vpop.permute.xlu0 %675
      %677 = vrot.lane.b32.xlu0 %v443, 32
      %v678 = vpop.permute.xlu0 %677
      %679 = vrot.lane.b32.xlu0 %v444, 32
      %v680 = vpop.permute.xlu0 %679
      %681 = vrot.lane.b32.xlu0 %v445, 32
      %v682 = vpop.permute.xlu0 %681
      %683 = vrot.lane.b32.xlu0 %v446, 32
      %v684 = vpop.permute.xlu0 %683
      %685 = vrot.lane.b32.xlu0 %v447, 32
      %v686 = vpop.permute.xlu0 %685
      %687 = vrot.lane.b32.xlu0 %v448, 32
      %v688 = vpop.permute.xlu0 %687
      %689 = vrot.lane.b32.xlu0 %v449, 32
      %v690 = vpop.permute.xlu0 %689
      %691 = vrot.lane.b32.xlu0 %v450, 32
      %v692 = vpop.permute.xlu0 %691
      %693 = vrot.lane.b32.xlu0 %v451, 32
      %v694 = vpop.permute.xlu0 %693
      %695 = vrot.lane.b32.xlu0 %v452, 32
      %v696 = vpop.permute.xlu0 %695
      %697 = vrot.lane.b32.xlu0 %v453, 32
      %v698 = vpop.permute.xlu0 %697
      %699 = vrot.lane.b32.xlu0 %v454, 32
      %v700 = vpop.permute.xlu0 %699
      %701 = vrot.lane.b32.xlu0 %v455, 32
      %v702 = vpop.permute.xlu0 %701
      %703 = vrot.lane.b32.xlu0 %v456, 32
      %v704 = vpop.permute.xlu0 %703
      %705 = vrot.lane.b32.xlu0 %v457, 32
      %v706 = vpop.permute.xlu0 %705
      %707 = vrot.lane.b32.xlu0 %v458, 32
      %v708 = vpop.permute.xlu0 %707
      %709 = vrot.lane.b32.xlu0 %v459, 32
      %v710 = vpop.permute.xlu0 %709
      %711 = vrot.lane.b32.xlu0 %v460, 32
      %v712 = vpop.permute.xlu0 %711
      %713 = vrot.lane.b32.xlu0 %v461, 32
      %v714 = vpop.permute.xlu0 %713
      %715 = vrot.lane.b32.xlu0 %v462, 32
      %v716 = vpop.permute.xlu0 %715
      %717 = vrot.lane.b32.xlu0 %v463, 32
      %v718 = vpop.permute.xlu0 %717
      %719 = vrot.lane.b32.xlu0 %v464, 32
      %v720 = vpop.permute.xlu0 %719
      %v753 = vperm.slane %v234, 0
      %v754 = vperm.slane %v313, 0
      %v755 = vperm.slane %v314, 0
      %v756 = vperm.slane %v315, 0
      %v757 = vperm.slane %v316, 0
      %v758 = vperm.slane %v317, 0
      %v759 = vperm.slane %v318, 0
      %v760 = vperm.slane %v319, 0
      %v761 = vperm.slane %v238, 0
      %v762 = vperm.slane %v320, 0
      %v763 = vperm.slane %v321, 0
      %v764 = vperm.slane %v322, 0
      %v765 = vperm.slane %v323, 0
      %v766 = vperm.slane %v324, 0
      %v767 = vperm.slane %v325, 0
      %v768 = vperm.slane %v326, 0
      %v769 = vperm.slane %v242, 0
      %v770 = vperm.slane %v327, 0
      %v771 = vperm.slane %v328, 0
      %v772 = vperm.slane %v329, 0
      %v773 = vperm.slane %v330, 0
      %v774 = vperm.slane %v331, 0
      %v775 = vperm.slane %v332, 0
      %v776 = vperm.slane %v333, 0
      %v777 = vperm.slane %v246, 0
      %v778 = vperm.slane %v334, 0
      %v779 = vperm.slane %v335, 0
      %v780 = vperm.slane %v336, 0
      %v781 = vperm.slane %v337, 0
      %v782 = vperm.slane %v338, 0
      %v783 = vperm.slane %v339, 0
      %v784 = vperm.slane %v340, 0
      %817 = vrot.lane.b32.xlu0 %v753, 96
      %v818 = vpop.permute.xlu0 %817
      %819 = vrot.lane.b32.xlu0 %v754, 96
      %v820 = vpop.permute.xlu0 %819
      %821 = vrot.lane.b32.xlu0 %v755, 96
      %v822 = vpop.permute.xlu0 %821
      %823 = vrot.lane.b32.xlu0 %v756, 96
      %v824 = vpop.permute.xlu0 %823
      %825 = vrot.lane.b32.xlu0 %v757, 96
      %v826 = vpop.permute.xlu0 %825
      %827 = vrot.lane.b32.xlu0 %v758, 96
      %v828 = vpop.permute.xlu0 %827
      %829 = vrot.lane.b32.xlu0 %v759, 96
      %v830 = vpop.permute.xlu0 %829
      %831 = vrot.lane.b32.xlu0 %v760, 96
      %v832 = vpop.permute.xlu0 %831
      %833 = vrot.lane.b32.xlu0 %v761, 96
      %v834 = vpop.permute.xlu0 %833
      %835 = vrot.lane.b32.xlu0 %v762, 96
      %v836 = vpop.permute.xlu0 %835
      %837 = vrot.lane.b32.xlu0 %v763, 96
      %v838 = vpop.permute.xlu0 %837
      %839 = vrot.lane.b32.xlu0 %v764, 96
      %v840 = vpop.permute.xlu0 %839
      %841 = vrot.lane.b32.xlu0 %v765, 96
      %v842 = vpop.permute.xlu0 %841
      %843 = vrot.lane.b32.xlu0 %v766, 96
      %v844 = vpop.permute.xlu0 %843
      %845 = vrot.lane.b32.xlu0 %v767, 96
      %v846 = vpop.permute.xlu0 %845
      %847 = vrot.lane.b32.xlu0 %v768, 96
      %v848 = vpop.permute.xlu0 %847
      %849 = vrot.lane.b32.xlu0 %v769, 96
      %v850 = vpop.permute.xlu0 %849
      %851 = vrot.lane.b32.xlu0 %v770, 96
      %v852 = vpop.permute.xlu0 %851
      %853 = vrot.lane.b32.xlu0 %v771, 96
      %v854 = vpop.permute.xlu0 %853
      %855 = vrot.lane.b32.xlu0 %v772, 96
      %v856 = vpop.permute.xlu0 %855
      %857 = vrot.lane.b32.xlu0 %v773, 96
      %v858 = vpop.permute.xlu0 %857
      %859 = vrot.lane.b32.xlu0 %v774, 96
      %v860 = vpop.permute.xlu0 %859
      %861 = vrot.lane.b32.xlu0 %v775, 96
      %v862 = vpop.permute.xlu0 %861
      %863 = vrot.lane.b32.xlu0 %v776, 96
      %v864 = vpop.permute.xlu0 %863
      %865 = vrot.lane.b32.xlu0 %v777, 96
      %v866 = vpop.permute.xlu0 %865
      %867 = vrot.lane.b32.xlu0 %v778, 96
      %v868 = vpop.permute.xlu0 %867
      %869 = vrot.lane.b32.xlu0 %v779, 96
      %v870 = vpop.permute.xlu0 %869
      %871 = vrot.lane.b32.xlu0 %v780, 96
      %v872 = vpop.permute.xlu0 %871
      %873 = vrot.lane.b32.xlu0 %v781, 96
      %v874 = vpop.permute.xlu0 %873
      %875 = vrot.lane.b32.xlu0 %v782, 96
      %v876 = vpop.permute.xlu0 %875
      %877 = vrot.lane.b32.xlu0 %v783, 96
      %v878 = vpop.permute.xlu0 %877
      %879 = vrot.lane.b32.xlu0 %v784, 96
      %v880 = vpop.permute.xlu0 %879
      %913 = vrot.lane.b32.xlu0 %v753, 64
      %v914 = vpop.permute.xlu0 %913
      %915 = vrot.lane.b32.xlu0 %v754, 64
      %v916 = vpop.permute.xlu0 %915
      %917 = vrot.lane.b32.xlu0 %v755, 64
      %v918 = vpop.permute.xlu0 %917
      %919 = vrot.lane.b32.xlu0 %v756, 64
      %v920 = vpop.permute.xlu0 %919
      %921 = vrot.lane.b32.xlu0 %v757, 64
      %v922 = vpop.permute.xlu0 %921
      %923 = vrot.lane.b32.xlu0 %v758, 64
      %v924 = vpop.permute.xlu0 %923
      %925 = vrot.lane.b32.xlu0 %v759, 64
      %v926 = vpop.permute.xlu0 %925
      %927 = vrot.lane.b32.xlu0 %v760, 64
      %v928 = vpop.permute.xlu0 %927
      %929 = vrot.lane.b32.xlu0 %v761, 64
      %v930 = vpop.permute.xlu0 %929
      %931 = vrot.lane.b32.xlu0 %v762, 64
      %v932 = vpop.permute.xlu0 %931
      %933 = vrot.lane.b32.xlu0 %v763, 64
      %v934 = vpop.permute.xlu0 %933
      %935 = vrot.lane.b32.xlu0 %v764, 64
      %v936 = vpop.permute.xlu0 %935
      %937 = vrot.lane.b32.xlu0 %v765, 64
      %v938 = vpop.permute.xlu0 %937
      %939 = vrot.lane.b32.xlu0 %v766, 64
      %v940 = vpop.permute.xlu0 %939
      %941 = vrot.lane.b32.xlu0 %v767, 64
      %v942 = vpop.permute.xlu0 %941
      %943 = vrot.lane.b32.xlu0 %v768, 64
      %v944 = vpop.permute.xlu0 %943
      %945 = vrot.lane.b32.xlu0 %v769, 64
      %v946 = vpop.permute.xlu0 %945
      %947 = vrot.lane.b32.xlu0 %v770, 64
      %v948 = vpop.permute.xlu0 %947
      %949 = vrot.lane.b32.xlu0 %v771, 64
      %v950 = vpop.permute.xlu0 %949
      %951 = vrot.lane.b32.xlu0 %v772, 64
      %v952 = vpop.permute.xlu0 %951
      %953 = vrot.lane.b32.xlu0 %v773, 64
      %v954 = vpop.permute.xlu0 %953
      %955 = vrot.lane.b32.xlu0 %v774, 64
      %v956 = vpop.permute.xlu0 %955
      %957 = vrot.lane.b32.xlu0 %v775, 64
      %v958 = vpop.permute.xlu0 %957
      %959 = vrot.lane.b32.xlu0 %v776, 64
      %v960 = vpop.permute.xlu0 %959
      %961 = vrot.lane.b32.xlu0 %v777, 64
      %v962 = vpop.permute.xlu0 %961
      %963 = vrot.lane.b32.xlu0 %v778, 64
      %v964 = vpop.permute.xlu0 %963
      %965 = vrot.lane.b32.xlu0 %v779, 64
      %v966 = vpop.permute.xlu0 %965
      %967 = vrot.lane.b32.xlu0 %v780, 64
      %v968 = vpop.permute.xlu0 %967
      %969 = vrot.lane.b32.xlu0 %v781, 64
      %v970 = vpop.permute.xlu0 %969
      %971 = vrot.lane.b32.xlu0 %v782, 64
      %v972 = vpop.permute.xlu0 %971
      %973 = vrot.lane.b32.xlu0 %v783, 64
      %v974 = vpop.permute.xlu0 %973
      %975 = vrot.lane.b32.xlu0 %v784, 64
      %v976 = vpop.permute.xlu0 %975
      %1009 = vrot.lane.b32.xlu0 %v753, 32
      %v1010 = vpop.permute.xlu0 %1009
      %1011 = vrot.lane.b32.xlu0 %v754, 32
      %v1012 = vpop.permute.xlu0 %1011
      %1013 = vrot.lane.b32.xlu0 %v755, 32
      %v1014 = vpop.permute.xlu0 %1013
      %1015 = vrot.lane.b32.xlu0 %v756, 32
      %v1016 = vpop.permute.xlu0 %1015
      %1017 = vrot.lane.b32.xlu0 %v757, 32
      %v1018 = vpop.permute.xlu0 %1017
      %1019 = vrot.lane.b32.xlu0 %v758, 32
      %v1020 = vpop.permute.xlu0 %1019
      %1021 = vrot.lane.b32.xlu0 %v759, 32
      %v1022 = vpop.permute.xlu0 %1021
      %1023 = vrot.lane.b32.xlu0 %v760, 32
      %v1024 = vpop.permute.xlu0 %1023
      %1025 = vrot.lane.b32.xlu0 %v761, 32
      %v1026 = vpop.permute.xlu0 %1025
      %1027 = vrot.lane.b32.xlu0 %v762, 32
      %v1028 = vpop.permute.xlu0 %1027
      %1029 = vrot.lane.b32.xlu0 %v763, 32
      %v1030 = vpop.permute.xlu0 %1029
      %1031 = vrot.lane.b32.xlu0 %v764, 32
      %v1032 = vpop.permute.xlu0 %1031
      %1033 = vrot.lane.b32.xlu0 %v765, 32
      %v1034 = vpop.permute.xlu0 %1033
      %1035 = vrot.lane.b32.xlu0 %v766, 32
      %v1036 = vpop.permute.xlu0 %1035
      %1037 = vrot.lane.b32.xlu0 %v767, 32
      %v1038 = vpop.permute.xlu0 %1037
      %1039 = vrot.lane.b32.xlu0 %v768, 32
      %v1040 = vpop.permute.xlu0 %1039
      %1041 = vrot.lane.b32.xlu0 %v769, 32
      %v1042 = vpop.permute.xlu0 %1041
      %1043 = vrot.lane.b32.xlu0 %v770, 32
      %v1044 = vpop.permute.xlu0 %1043
      %1045 = vrot.lane.b32.xlu0 %v771, 32
      %v1046 = vpop.permute.xlu0 %1045
      %1047 = vrot.lane.b32.xlu0 %v772, 32
      %v1048 = vpop.permute.xlu0 %1047
      %1049 = vrot.lane.b32.xlu0 %v773, 32
      %v1050 = vpop.permute.xlu0 %1049
      %1051 = vrot.lane.b32.xlu0 %v774, 32
      %v1052 = vpop.permute.xlu0 %1051
      %1053 = vrot.lane.b32.xlu0 %v775, 32
      %v1054 = vpop.permute.xlu0 %1053
      %1055 = vrot.lane.b32.xlu0 %v776, 32
      %v1056 = vpop.permute.xlu0 %1055
      %1057 = vrot.lane.b32.xlu0 %v777, 32
      %v1058 = vpop.permute.xlu0 %1057
      %1059 = vrot.lane.b32.xlu0 %v778, 32
      %v1060 = vpop.permute.xlu0 %1059
      %1061 = vrot.lane.b32.xlu0 %v779, 32
      %v1062 = vpop.permute.xlu0 %1061
      %1063 = vrot.lane.b32.xlu0 %v780, 32
      %v1064 = vpop.permute.xlu0 %1063
      %1065 = vrot.lane.b32.xlu0 %v781, 32
      %v1066 = vpop.permute.xlu0 %1065
      %1067 = vrot.lane.b32.xlu0 %v782, 32
      %v1068 = vpop.permute.xlu0 %1067
      %1069 = vrot.lane.b32.xlu0 %v783, 32
      %v1070 = vpop.permute.xlu0 %1069
      %1071 = vrot.lane.b32.xlu0 %v784, 32
      %v1072 = vpop.permute.xlu0 %1071
      %v1105 = vperm.slane %v235, 0
      %v1106 = vperm.slane %v345, 0
      %v1107 = vperm.slane %v346, 0
      %v1108 = vperm.slane %v347, 0
      %v1109 = vperm.slane %v348, 0
      %v1110 = vperm.slane %v349, 0
      %v1111 = vperm.slane %v350, 0
      %v1112 = vperm.slane %v351, 0
      %v1113 = vperm.slane %v239, 0
      %v1114 = vperm.slane %v352, 0
      %v1115 = vperm.slane %v353, 0
      %v1116 = vperm.slane %v354, 0
      %v1117 = vperm.slane %v355, 0
      %v1118 = vperm.slane %v356, 0
      %v1119 = vperm.slane %v357, 0
      %v1120 = vperm.slane %v358, 0
      %v1121 = vperm.slane %v243, 0
      %v1122 = vperm.slane %v359, 0
      %v1123 = vperm.slane %v360, 0
      %v1124 = vperm.slane %v361, 0
      %v1125 = vperm.slane %v362, 0
      %v1126 = vperm.slane %v363, 0
      %v1127 = vperm.slane %v364, 0
      %v1128 = vperm.slane %v365, 0
      %v1129 = vperm.slane %v247, 0
      %v1130 = vperm.slane %v366, 0
      %v1131 = vperm.slane %v367, 0
      %v1132 = vperm.slane %v368, 0
      %v1133 = vperm.slane %v369, 0
      %v1134 = vperm.slane %v370, 0
      %v1135 = vperm.slane %v371, 0
      %v1136 = vperm.slane %v372, 0
      %1137 = vrot.lane.b32.xlu0 %v1105, 96
      %v1138 = vpop.permute.xlu0 %1137
      %1139 = vrot.lane.b32.xlu0 %v1106, 96
      %v1140 = vpop.permute.xlu0 %1139
      %1141 = vrot.lane.b32.xlu0 %v1107, 96
      %v1142 = vpop.permute.xlu0 %1141
      %1143 = vrot.lane.b32.xlu0 %v1108, 96
      %v1144 = vpop.permute.xlu0 %1143
      %1145 = vrot.lane.b32.xlu0 %v1109, 96
      %v1146 = vpop.permute.xlu0 %1145
      %1147 = vrot.lane.b32.xlu0 %v1110, 96
      %v1148 = vpop.permute.xlu0 %1147
      %1149 = vrot.lane.b32.xlu0 %v1111, 96
      %v1150 = vpop.permute.xlu0 %1149
      %1151 = vrot.lane.b32.xlu0 %v1112, 96
      %v1152 = vpop.permute.xlu0 %1151
      %1153 = vrot.lane.b32.xlu0 %v1113, 96
      %v1154 = vpop.permute.xlu0 %1153
      %1155 = vrot.lane.b32.xlu0 %v1114, 96
      %v1156 = vpop.permute.xlu0 %1155
      %1157 = vrot.lane.b32.xlu0 %v1115, 96
      %v1158 = vpop.permute.xlu0 %1157
      %1159 = vrot.lane.b32.xlu0 %v1116, 96
      %v1160 = vpop.permute.xlu0 %1159
      %1161 = vrot.lane.b32.xlu0 %v1117, 96
      %v1162 = vpop.permute.xlu0 %1161
      %1163 = vrot.lane.b32.xlu0 %v1118, 96
      %v1164 = vpop.permute.xlu0 %1163
      %1165 = vrot.lane.b32.xlu0 %v1119, 96
      %v1166 = vpop.permute.xlu0 %1165
      %1167 = vrot.lane.b32.xlu0 %v1120, 96
      %v1168 = vpop.permute.xlu0 %1167
      %1169 = vrot.lane.b32.xlu0 %v1121, 96
      %v1170 = vpop.permute.xlu0 %1169
      %1171 = vrot.lane.b32.xlu0 %v1122, 96
      %v1172 = vpop.permute.xlu0 %1171
      %1173 = vrot.lane.b32.xlu0 %v1123, 96
      %v1174 = vpop.permute.xlu0 %1173
      %1175 = vrot.lane.b32.xlu0 %v1124, 96
      %v1176 = vpop.permute.xlu0 %1175
      %1177 = vrot.lane.b32.xlu0 %v1125, 96
      %v1178 = vpop.permute.xlu0 %1177
      %1179 = vrot.lane.b32.xlu0 %v1126, 96
      %v1180 = vpop.permute.xlu0 %1179
      %1181 = vrot.lane.b32.xlu0 %v1127, 96
      %v1182 = vpop.permute.xlu0 %1181
      %1183 = vrot.lane.b32.xlu0 %v1128, 96
      %v1184 = vpop.permute.xlu0 %1183
      %1185 = vrot.lane.b32.xlu0 %v1129, 96
      %v1186 = vpop.permute.xlu0 %1185
      %1187 = vrot.lane.b32.xlu0 %v1130, 96
      %v1188 = vpop.permute.xlu0 %1187
      %1189 = vrot.lane.b32.xlu0 %v1131, 96
      %v1190 = vpop.permute.xlu0 %1189
      %1191 = vrot.lane.b32.xlu0 %v1132, 96
      %v1192 = vpop.permute.xlu0 %1191
      %1193 = vrot.lane.b32.xlu0 %v1133, 96
      %v1194 = vpop.permute.xlu0 %1193
      %1195 = vrot.lane.b32.xlu0 %v1134, 96
      %v1196 = vpop.permute.xlu0 %1195
      %1197 = vrot.lane.b32.xlu0 %v1135, 96
      %v1198 = vpop.permute.xlu0 %1197
      %1199 = vrot.lane.b32.xlu0 %v1136, 96
      %v1200 = vpop.permute.xlu0 %1199
      %1233 = vrot.lane.b32.xlu0 %v1105, 64
      %v1234 = vpop.permute.xlu0 %1233
      %1235 = vrot.lane.b32.xlu0 %v1106, 64
      %v1236 = vpop.permute.xlu0 %1235
      %1237 = vrot.lane.b32.xlu0 %v1107, 64
      %v1238 = vpop.permute.xlu0 %1237
      %1239 = vrot.lane.b32.xlu0 %v1108, 64
      %v1240 = vpop.permute.xlu0 %1239
      %1241 = vrot.lane.b32.xlu0 %v1109, 64
      %v1242 = vpop.permute.xlu0 %1241
      %1243 = vrot.lane.b32.xlu0 %v1110, 64
      %v1244 = vpop.permute.xlu0 %1243
      %1245 = vrot.lane.b32.xlu0 %v1111, 64
      %v1246 = vpop.permute.xlu0 %1245
      %1247 = vrot.lane.b32.xlu0 %v1112, 64
      %v1248 = vpop.permute.xlu0 %1247
      %1249 = vrot.lane.b32.xlu0 %v1113, 64
      %v1250 = vpop.permute.xlu0 %1249
      %1251 = vrot.lane.b32.xlu0 %v1114, 64
      %v1252 = vpop.permute.xlu0 %1251
      %1253 = vrot.lane.b32.xlu0 %v1115, 64
      %v1254 = vpop.permute.xlu0 %1253
      %1255 = vrot.lane.b32.xlu0 %v1116, 64
      %v1256 = vpop.permute.xlu0 %1255
      %1257 = vrot.lane.b32.xlu0 %v1117, 64
      %v1258 = vpop.permute.xlu0 %1257
      %1259 = vrot.lane.b32.xlu0 %v1118, 64
      %v1260 = vpop.permute.xlu0 %1259
      %1261 = vrot.lane.b32.xlu0 %v1119, 64
      %v1262 = vpop.permute.xlu0 %1261
      %1263 = vrot.lane.b32.xlu0 %v1120, 64
      %v1264 = vpop.permute.xlu0 %1263
      %1265 = vrot.lane.b32.xlu0 %v1121, 64
      %v1266 = vpop.permute.xlu0 %1265
      %1267 = vrot.lane.b32.xlu0 %v1122, 64
      %v1268 = vpop.permute.xlu0 %1267
      %1269 = vrot.lane.b32.xlu0 %v1123, 64
      %v1270 = vpop.permute.xlu0 %1269
      %1271 = vrot.lane.b32.xlu0 %v1124, 64
      %v1272 = vpop.permute.xlu0 %1271
      %1273 = vrot.lane.b32.xlu0 %v1125, 64
      %v1274 = vpop.permute.xlu0 %1273
      %1275 = vrot.lane.b32.xlu0 %v1126, 64
      %v1276 = vpop.permute.xlu0 %1275
      %1277 = vrot.lane.b32.xlu0 %v1127, 64
      %v1278 = vpop.permute.xlu0 %1277
      %1279 = vrot.lane.b32.xlu0 %v1128, 64
      %v1280 = vpop.permute.xlu0 %1279
      %1281 = vrot.lane.b32.xlu0 %v1129, 64
      %v1282 = vpop.permute.xlu0 %1281
      %1283 = vrot.lane.b32.xlu0 %v1130, 64
      %v1284 = vpop.permute.xlu0 %1283
      %1285 = vrot.lane.b32.xlu0 %v1131, 64
      %v1286 = vpop.permute.xlu0 %1285
      %1287 = vrot.lane.b32.xlu0 %v1132, 64
      %v1288 = vpop.permute.xlu0 %1287
      %1289 = vrot.lane.b32.xlu0 %v1133, 64
      %v1290 = vpop.permute.xlu0 %1289
      %1291 = vrot.lane.b32.xlu0 %v1134, 64
      %v1292 = vpop.permute.xlu0 %1291
      %1293 = vrot.lane.b32.xlu0 %v1135, 64
      %v1294 = vpop.permute.xlu0 %1293
      %1295 = vrot.lane.b32.xlu0 %v1136, 64
      %v1296 = vpop.permute.xlu0 %1295
      %1329 = vrot.lane.b32.xlu0 %v1105, 32
      %v1330 = vpop.permute.xlu0 %1329
      %1331 = vrot.lane.b32.xlu0 %v1106, 32
      %v1332 = vpop.permute.xlu0 %1331
      %1333 = vrot.lane.b32.xlu0 %v1107, 32
      %v1334 = vpop.permute.xlu0 %1333
      %1335 = vrot.lane.b32.xlu0 %v1108, 32
      %v1336 = vpop.permute.xlu0 %1335
      %1337 = vrot.lane.b32.xlu0 %v1109, 32
      %v1338 = vpop.permute.xlu0 %1337
      %1339 = vrot.lane.b32.xlu0 %v1110, 32
      %v1340 = vpop.permute.xlu0 %1339
      %1341 = vrot.lane.b32.xlu0 %v1111, 32
      %v1342 = vpop.permute.xlu0 %1341
      %1343 = vrot.lane.b32.xlu0 %v1112, 32
      %v1344 = vpop.permute.xlu0 %1343
      %1345 = vrot.lane.b32.xlu0 %v1113, 32
      %v1346 = vpop.permute.xlu0 %1345
      %1347 = vrot.lane.b32.xlu0 %v1114, 32
      %v1348 = vpop.permute.xlu0 %1347
      %1349 = vrot.lane.b32.xlu0 %v1115, 32
      %v1350 = vpop.permute.xlu0 %1349
      %1351 = vrot.lane.b32.xlu0 %v1116, 32
      %v1352 = vpop.permute.xlu0 %1351
      %1353 = vrot.lane.b32.xlu0 %v1117, 32
      %v1354 = vpop.permute.xlu0 %1353
      %1355 = vrot.lane.b32.xlu0 %v1118, 32
      %v1356 = vpop.permute.xlu0 %1355
      %1357 = vrot.lane.b32.xlu0 %v1119, 32
      %v1358 = vpop.permute.xlu0 %1357
      %1359 = vrot.lane.b32.xlu0 %v1120, 32
      %v1360 = vpop.permute.xlu0 %1359
      %1361 = vrot.lane.b32.xlu0 %v1121, 32
      %v1362 = vpop.permute.xlu0 %1361
      %1363 = vrot.lane.b32.xlu0 %v1122, 32
      %v1364 = vpop.permute.xlu0 %1363
      %1365 = vrot.lane.b32.xlu0 %v1123, 32
      %v1366 = vpop.permute.xlu0 %1365
      %1367 = vrot.lane.b32.xlu0 %v1124, 32
      %v1368 = vpop.permute.xlu0 %1367
      %1369 = vrot.lane.b32.xlu0 %v1125, 32
      %v1370 = vpop.permute.xlu0 %1369
      %1371 = vrot.lane.b32.xlu0 %v1126, 32
      %v1372 = vpop.permute.xlu0 %1371
      %1373 = vrot.lane.b32.xlu0 %v1127, 32
      %v1374 = vpop.permute.xlu0 %1373
      %1375 = vrot.lane.b32.xlu0 %v1128, 32
      %v1376 = vpop.permute.xlu0 %1375
      %1377 = vrot.lane.b32.xlu0 %v1129, 32
      %v1378 = vpop.permute.xlu0 %1377
      %1379 = vrot.lane.b32.xlu0 %v1130, 32
      %v1380 = vpop.permute.xlu0 %1379
      %1381 = vrot.lane.b32.xlu0 %v1131, 32
      %v1382 = vpop.permute.xlu0 %1381
      %1383 = vrot.lane.b32.xlu0 %v1132, 32
      %v1384 = vpop.permute.xlu0 %1383
      %1385 = vrot.lane.b32.xlu0 %v1133, 32
      %v1386 = vpop.permute.xlu0 %1385
      %1387 = vrot.lane.b32.xlu0 %v1134, 32
      %v1388 = vpop.permute.xlu0 %1387
      %1389 = vrot.lane.b32.xlu0 %v1135, 32
      %v1390 = vpop.permute.xlu0 %1389
      %1391 = vrot.lane.b32.xlu0 %v1136, 32
      %v1392 = vpop.permute.xlu0 %1391
      %v1425 = vperm.slane %v236, 0
      %v1426 = vperm.slane %v405, 0
      %v1427 = vperm.slane %v406, 0
      %v1428 = vperm.slane %v407, 0
      %v1429 = vperm.slane %v408, 0
      %v1430 = vperm.slane %v409, 0
      %v1431 = vperm.slane %v410, 0
      %v1432 = vperm.slane %v411, 0
      %v1433 = vperm.slane %v240, 0
      %v1434 = vperm.slane %v412, 0
      %v1435 = vperm.slane %v413, 0
      %v1436 = vperm.slane %v414, 0
      %v1437 = vperm.slane %v415, 0
      %v1438 = vperm.slane %v416, 0
      %v1439 = vperm.slane %v417, 0
      %v1440 = vperm.slane %v418, 0
      %v1441 = vperm.slane %v244, 0
      %v1442 = vperm.slane %v419, 0
      %v1443 = vperm.slane %v420, 0
      %v1444 = vperm.slane %v421, 0
      %v1445 = vperm.slane %v422, 0
      %v1446 = vperm.slane %v423, 0
      %v1447 = vperm.slane %v424, 0
      %v1448 = vperm.slane %v425, 0
      %v1449 = vperm.slane %v248, 0
      %v1450 = vperm.slane %v426, 0
      %v1451 = vperm.slane %v427, 0
      %v1452 = vperm.slane %v428, 0
      %v1453 = vperm.slane %v429, 0
      %v1454 = vperm.slane %v430, 0
      %v1455 = vperm.slane %v431, 0
      %v1456 = vperm.slane %v432, 0
      %1489 = vrot.lane.b32.xlu0 %v1425, 96
      %v1490 = vpop.permute.xlu0 %1489
      %1491 = vrot.lane.b32.xlu0 %v1426, 96
      %v1492 = vpop.permute.xlu0 %1491
      %1493 = vrot.lane.b32.xlu0 %v1427, 96
      %v1494 = vpop.permute.xlu0 %1493
      %1495 = vrot.lane.b32.xlu0 %v1428, 96
      %v1496 = vpop.permute.xlu0 %1495
      %1497 = vrot.lane.b32.xlu0 %v1429, 96
      %v1498 = vpop.permute.xlu0 %1497
      %1499 = vrot.lane.b32.xlu0 %v1430, 96
      %v1500 = vpop.permute.xlu0 %1499
      %1501 = vrot.lane.b32.xlu0 %v1431, 96
      %v1502 = vpop.permute.xlu0 %1501
      %1503 = vrot.lane.b32.xlu0 %v1432, 96
      %v1504 = vpop.permute.xlu0 %1503
      %1505 = vrot.lane.b32.xlu0 %v1433, 96
      %v1506 = vpop.permute.xlu0 %1505
      %1507 = vrot.lane.b32.xlu0 %v1434, 96
      %v1508 = vpop.permute.xlu0 %1507
      %1509 = vrot.lane.b32.xlu0 %v1435, 96
      %v1510 = vpop.permute.xlu0 %1509
      %1511 = vrot.lane.b32.xlu0 %v1436, 96
      %v1512 = vpop.permute.xlu0 %1511
      %1513 = vrot.lane.b32.xlu0 %v1437, 96
      %v1514 = vpop.permute.xlu0 %1513
      %1515 = vrot.lane.b32.xlu0 %v1438, 96
      %v1516 = vpop.permute.xlu0 %1515
      %1517 = vrot.lane.b32.xlu0 %v1439, 96
      %v1518 = vpop.permute.xlu0 %1517
      %1519 = vrot.lane.b32.xlu0 %v1440, 96
      %v1520 = vpop.permute.xlu0 %1519
      %1521 = vrot.lane.b32.xlu0 %v1441, 96
      %v1522 = vpop.permute.xlu0 %1521
      %1523 = vrot.lane.b32.xlu0 %v1442, 96
      %v1524 = vpop.permute.xlu0 %1523
      %1525 = vrot.lane.b32.xlu0 %v1443, 96
      %v1526 = vpop.permute.xlu0 %1525
      %1527 = vrot.lane.b32.xlu0 %v1444, 96
      %v1528 = vpop.permute.xlu0 %1527
      %1529 = vrot.lane.b32.xlu0 %v1445, 96
      %v1530 = vpop.permute.xlu0 %1529
      %1531 = vrot.lane.b32.xlu0 %v1446, 96
      %v1532 = vpop.permute.xlu0 %1531
      %1533 = vrot.lane.b32.xlu0 %v1447, 96
      %v1534 = vpop.permute.xlu0 %1533
      %1535 = vrot.lane.b32.xlu0 %v1448, 96
      %v1536 = vpop.permute.xlu0 %1535
      %1537 = vrot.lane.b32.xlu0 %v1449, 96
      %v1538 = vpop.permute.xlu0 %1537
      %1539 = vrot.lane.b32.xlu0 %v1450, 96
      %v1540 = vpop.permute.xlu0 %1539
      %1541 = vrot.lane.b32.xlu0 %v1451, 96
      %v1542 = vpop.permute.xlu0 %1541
      %1543 = vrot.lane.b32.xlu0 %v1452, 96
      %v1544 = vpop.permute.xlu0 %1543
      %1545 = vrot.lane.b32.xlu0 %v1453, 96
      %v1546 = vpop.permute.xlu0 %1545
      %1547 = vrot.lane.b32.xlu0 %v1454, 96
      %v1548 = vpop.permute.xlu0 %1547
      %1549 = vrot.lane.b32.xlu0 %v1455, 96
      %v1550 = vpop.permute.xlu0 %1549
      %1551 = vrot.lane.b32.xlu0 %v1456, 96
      %v1552 = vpop.permute.xlu0 %1551
      %1585 = vrot.lane.b32.xlu0 %v1425, 64
      %v1586 = vpop.permute.xlu0 %1585
      %1587 = vrot.lane.b32.xlu0 %v1426, 64
      %v1588 = vpop.permute.xlu0 %1587
      %1589 = vrot.lane.b32.xlu0 %v1427, 64
      %v1590 = vpop.permute.xlu0 %1589
      %1591 = vrot.lane.b32.xlu0 %v1428, 64
      %v1592 = vpop.permute.xlu0 %1591
      %1593 = vrot.lane.b32.xlu0 %v1429, 64
      %v1594 = vpop.permute.xlu0 %1593
      %1595 = vrot.lane.b32.xlu0 %v1430, 64
      %v1596 = vpop.permute.xlu0 %1595
      %1597 = vrot.lane.b32.xlu0 %v1431, 64
      %v1598 = vpop.permute.xlu0 %1597
      %1599 = vrot.lane.b32.xlu0 %v1432, 64
      %v1600 = vpop.permute.xlu0 %1599
      %1601 = vrot.lane.b32.xlu0 %v1433, 64
      %v1602 = vpop.permute.xlu0 %1601
      %1603 = vrot.lane.b32.xlu0 %v1434, 64
      %v1604 = vpop.permute.xlu0 %1603
      %1605 = vrot.lane.b32.xlu0 %v1435, 64
      %v1606 = vpop.permute.xlu0 %1605
      %1607 = vrot.lane.b32.xlu0 %v1436, 64
      %v1608 = vpop.permute.xlu0 %1607
      %1609 = vrot.lane.b32.xlu0 %v1437, 64
      %v1610 = vpop.permute.xlu0 %1609
      %1611 = vrot.lane.b32.xlu0 %v1438, 64
      %v1612 = vpop.permute.xlu0 %1611
      %1613 = vrot.lane.b32.xlu0 %v1439, 64
      %v1614 = vpop.permute.xlu0 %1613
      %1615 = vrot.lane.b32.xlu0 %v1440, 64
      %v1616 = vpop.permute.xlu0 %1615
      %1617 = vrot.lane.b32.xlu0 %v1441, 64
      %v1618 = vpop.permute.xlu0 %1617
      %1619 = vrot.lane.b32.xlu0 %v1442, 64
      %v1620 = vpop.permute.xlu0 %1619
      %1621 = vrot.lane.b32.xlu0 %v1443, 64
      %v1622 = vpop.permute.xlu0 %1621
      %1623 = vrot.lane.b32.xlu0 %v1444, 64
      %v1624 = vpop.permute.xlu0 %1623
      %1625 = vrot.lane.b32.xlu0 %v1445, 64
      %v1626 = vpop.permute.xlu0 %1625
      %1627 = vrot.lane.b32.xlu0 %v1446, 64
      %v1628 = vpop.permute.xlu0 %1627
      %1629 = vrot.lane.b32.xlu0 %v1447, 64
      %v1630 = vpop.permute.xlu0 %1629
      %1631 = vrot.lane.b32.xlu0 %v1448, 64
      %v1632 = vpop.permute.xlu0 %1631
      %1633 = vrot.lane.b32.xlu0 %v1449, 64
      %v1634 = vpop.permute.xlu0 %1633
      %1635 = vrot.lane.b32.xlu0 %v1450, 64
      %v1636 = vpop.permute.xlu0 %1635
      %1637 = vrot.lane.b32.xlu0 %v1451, 64
      %v1638 = vpop.permute.xlu0 %1637
      %1639 = vrot.lane.b32.xlu0 %v1452, 64
      %v1640 = vpop.permute.xlu0 %1639
      %1641 = vrot.lane.b32.xlu0 %v1453, 64
      %v1642 = vpop.permute.xlu0 %1641
      %1643 = vrot.lane.b32.xlu0 %v1454, 64
      %v1644 = vpop.permute.xlu0 %1643
      %1645 = vrot.lane.b32.xlu0 %v1455, 64
      %v1646 = vpop.permute.xlu0 %1645
      %1647 = vrot.lane.b32.xlu0 %v1456, 64
      %v1648 = vpop.permute.xlu0 %1647
      %1681 = vrot.lane.b32.xlu0 %v1425, 32
      %v1682 = vpop.permute.xlu0 %1681
      %1683 = vrot.lane.b32.xlu0 %v1426, 32
      %v1684 = vpop.permute.xlu0 %1683
      %1685 = vrot.lane.b32.xlu0 %v1427, 32
      %v1686 = vpop.permute.xlu0 %1685
      %1687 = vrot.lane.b32.xlu0 %v1428, 32
      %v1688 = vpop.permute.xlu0 %1687
      %1689 = vrot.lane.b32.xlu0 %v1429, 32
      %v1690 = vpop.permute.xlu0 %1689
      %1691 = vrot.lane.b32.xlu0 %v1430, 32
      %v1692 = vpop.permute.xlu0 %1691
      %1693 = vrot.lane.b32.xlu0 %v1431, 32
      %v1694 = vpop.permute.xlu0 %1693
      %1695 = vrot.lane.b32.xlu0 %v1432, 32
      %v1696 = vpop.permute.xlu0 %1695
      %1697 = vrot.lane.b32.xlu0 %v1433, 32
      %v1698 = vpop.permute.xlu0 %1697
      %1699 = vrot.lane.b32.xlu0 %v1434, 32
      %v1700 = vpop.permute.xlu0 %1699
      %1701 = vrot.lane.b32.xlu0 %v1435, 32
      %v1702 = vpop.permute.xlu0 %1701
      %1703 = vrot.lane.b32.xlu0 %v1436, 32
      %v1704 = vpop.permute.xlu0 %1703
      %1705 = vrot.lane.b32.xlu0 %v1437, 32
      %v1706 = vpop.permute.xlu0 %1705
      %1707 = vrot.lane.b32.xlu0 %v1438, 32
      %v1708 = vpop.permute.xlu0 %1707
      %1709 = vrot.lane.b32.xlu0 %v1439, 32
      %v1710 = vpop.permute.xlu0 %1709
      %1711 = vrot.lane.b32.xlu0 %v1440, 32
      %v1712 = vpop.permute.xlu0 %1711
      %1713 = vrot.lane.b32.xlu0 %v1441, 32
      %v1714 = vpop.permute.xlu0 %1713
      %1715 = vrot.lane.b32.xlu0 %v1442, 32
      %v1716 = vpop.permute.xlu0 %1715
      %1717 = vrot.lane.b32.xlu0 %v1443, 32
      %v1718 = vpop.permute.xlu0 %1717
      %1719 = vrot.lane.b32.xlu0 %v1444, 32
      %v1720 = vpop.permute.xlu0 %1719
      %1721 = vrot.lane.b32.xlu0 %v1445, 32
      %v1722 = vpop.permute.xlu0 %1721
      %1723 = vrot.lane.b32.xlu0 %v1446, 32
      %v1724 = vpop.permute.xlu0 %1723
      %1725 = vrot.lane.b32.xlu0 %v1447, 32
      %v1726 = vpop.permute.xlu0 %1725
      %1727 = vrot.lane.b32.xlu0 %v1448, 32
      %v1728 = vpop.permute.xlu0 %1727
      %1729 = vrot.lane.b32.xlu0 %v1449, 32
      %v1730 = vpop.permute.xlu0 %1729
      %1731 = vrot.lane.b32.xlu0 %v1450, 32
      %v1732 = vpop.permute.xlu0 %1731
      %1733 = vrot.lane.b32.xlu0 %v1451, 32
      %v1734 = vpop.permute.xlu0 %1733
      %1735 = vrot.lane.b32.xlu0 %v1452, 32
      %v1736 = vpop.permute.xlu0 %1735
      %1737 = vrot.lane.b32.xlu0 %v1453, 32
      %v1738 = vpop.permute.xlu0 %1737
      %1739 = vrot.lane.b32.xlu0 %v1454, 32
      %v1740 = vpop.permute.xlu0 %1739
      %1741 = vrot.lane.b32.xlu0 %v1455, 32
      %v1742 = vpop.permute.xlu0 %1741
      %1743 = vrot.lane.b32.xlu0 %v1456, 32
      %v1744 = vpop.permute.xlu0 %1743
      %vm1777 = vcmask 1040384
      %v1778 = vsel %vm1777, %v233, %v466
      %v1779 = vsel %vm1777, %v253, %v468
      %v1780 = vsel %vm1777, %v254, %v470
      %v1781 = vsel %vm1777, %v255, %v472
      %v1782 = vsel %vm1777, %v256, %v474
      %v1783 = vsel %vm1777, %v257, %v476
      %v1784 = vsel %vm1777, %v258, %v478
      %v1785 = vsel %vm1777, %v259, %v480
      %v1786 = vsel %vm1777, %v237, %v482
      %v1787 = vsel %vm1777, %v260, %v484
      %v1788 = vsel %vm1777, %v261, %v486
      %v1789 = vsel %vm1777, %v262, %v488
      %v1790 = vsel %vm1777, %v263, %v490
      %v1791 = vsel %vm1777, %v264, %v492
      %v1792 = vsel %vm1777, %v265, %v494
      %v1793 = vsel %vm1777, %v266, %v496
      %v1794 = vsel %vm1777, %v241, %v498
      %v1795 = vsel %vm1777, %v267, %v500
      %v1796 = vsel %vm1777, %v268, %v502
      %v1797 = vsel %vm1777, %v269, %v504
      %v1798 = vsel %vm1777, %v270, %v506
      %v1799 = vsel %vm1777, %v271, %v508
      %v1800 = vsel %vm1777, %v272, %v510
      %v1801 = vsel %vm1777, %v273, %v512
      %v1802 = vsel %vm1777, %v245, %v514
      %v1803 = vsel %vm1777, %v274, %v516
      %v1804 = vsel %vm1777, %v275, %v518
      %v1805 = vsel %vm1777, %v276, %v520
      %v1806 = vsel %vm1777, %v277, %v522
      %v1807 = vsel %vm1777, %v278, %v524
      %v1808 = vsel %vm1777, %v279, %v526
      %v1809 = vsel %vm1777, %v280, %v528
      %vm1810 = vcmask 1041408
      %v1811 = vsel %vm1810, %v1778, %v562
      %v1812 = vsel %vm1810, %v1779, %v564
      %v1813 = vsel %vm1810, %v1780, %v566
      %v1814 = vsel %vm1810, %v1781, %v568
      %v1815 = vsel %vm1810, %v1782, %v570
      %v1816 = vsel %vm1810, %v1783, %v572
      %v1817 = vsel %vm1810, %v1784, %v574
      %v1818 = vsel %vm1810, %v1785, %v576
      %v1819 = vsel %vm1810, %v1786, %v578
      %v1820 = vsel %vm1810, %v1787, %v580
      %v1821 = vsel %vm1810, %v1788, %v582
      %v1822 = vsel %vm1810, %v1789, %v584
      %v1823 = vsel %vm1810, %v1790, %v586
      %v1824 = vsel %vm1810, %v1791, %v588
      %v1825 = vsel %vm1810, %v1792, %v590
      %v1826 = vsel %vm1810, %v1793, %v592
      %v1827 = vsel %vm1810, %v1794, %v594
      %v1828 = vsel %vm1810, %v1795, %v596
      %v1829 = vsel %vm1810, %v1796, %v598
      %v1830 = vsel %vm1810, %v1797, %v600
      %v1831 = vsel %vm1810, %v1798, %v602
      %v1832 = vsel %vm1810, %v1799, %v604
      %v1833 = vsel %vm1810, %v1800, %v606
      %v1834 = vsel %vm1810, %v1801, %v608
      %v1835 = vsel %vm1810, %v1802, %v610
      %v1836 = vsel %vm1810, %v1803, %v612
      %v1837 = vsel %vm1810, %v1804, %v614
      %v1838 = vsel %vm1810, %v1805, %v616
      %v1839 = vsel %vm1810, %v1806, %v618
      %v1840 = vsel %vm1810, %v1807, %v620
      %v1841 = vsel %vm1810, %v1808, %v622
      %v1842 = vsel %vm1810, %v1809, %v624
      %vm1843 = vcmask 1042432
      %v1844 = vsel %vm1843, %v1811, %v658
      %v1845 = vsel %vm1843, %v1812, %v660
      %v1846 = vsel %vm1843, %v1813, %v662
      %v1847 = vsel %vm1843, %v1814, %v664
      %v1848 = vsel %vm1843, %v1815, %v666
      %v1849 = vsel %vm1843, %v1816, %v668
      %v1850 = vsel %vm1843, %v1817, %v670
      %v1851 = vsel %vm1843, %v1818, %v672
      %v1852 = vsel %vm1843, %v1819, %v674
      %v1853 = vsel %vm1843, %v1820, %v676
      %v1854 = vsel %vm1843, %v1821, %v678
      %v1855 = vsel %vm1843, %v1822, %v680
      %v1856 = vsel %vm1843, %v1823, %v682
      %v1857 = vsel %vm1843, %v1824, %v684
      %v1858 = vsel %vm1843, %v1825, %v686
      %v1859 = vsel %vm1843, %v1826, %v688
      %v1860 = vsel %vm1843, %v1827, %v690
      %v1861 = vsel %vm1843, %v1828, %v692
      %v1862 = vsel %vm1843, %v1829, %v694
      %v1863 = vsel %vm1843, %v1830, %v696
      %v1864 = vsel %vm1843, %v1831, %v698
      %v1865 = vsel %vm1843, %v1832, %v700
      %v1866 = vsel %vm1843, %v1833, %v702
      %v1867 = vsel %vm1843, %v1834, %v704
      %v1868 = vsel %vm1843, %v1835, %v706
      %v1869 = vsel %vm1843, %v1836, %v708
      %v1870 = vsel %vm1843, %v1837, %v710
      %v1871 = vsel %vm1843, %v1838, %v712
      %v1872 = vsel %vm1843, %v1839, %v714
      %v1873 = vsel %vm1843, %v1840, %v716
      %v1874 = vsel %vm1843, %v1841, %v718
      %v1875 = vsel %vm1843, %v1842, %v720
      %vm1876 = vcmask 1043456
      %v1877 = vsel %vm1876, %v1844, %v753
      %v1878 = vsel %vm1876, %v1845, %v754
      %v1879 = vsel %vm1876, %v1846, %v755
      %v1880 = vsel %vm1876, %v1847, %v756
      %v1881 = vsel %vm1876, %v1848, %v757
      %v1882 = vsel %vm1876, %v1849, %v758
      %v1883 = vsel %vm1876, %v1850, %v759
      %v1884 = vsel %vm1876, %v1851, %v760
      %v1885 = vsel %vm1876, %v1852, %v761
      %v1886 = vsel %vm1876, %v1853, %v762
      %v1887 = vsel %vm1876, %v1854, %v763
      %v1888 = vsel %vm1876, %v1855, %v764
      %v1889 = vsel %vm1876, %v1856, %v765
      %v1890 = vsel %vm1876, %v1857, %v766
      %v1891 = vsel %vm1876, %v1858, %v767
      %v1892 = vsel %vm1876, %v1859, %v768
      %v1893 = vsel %vm1876, %v1860, %v769
      %v1894 = vsel %vm1876, %v1861, %v770
      %v1895 = vsel %vm1876, %v1862, %v771
      %v1896 = vsel %vm1876, %v1863, %v772
      %v1897 = vsel %vm1876, %v1864, %v773
      %v1898 = vsel %vm1876, %v1865, %v774
      %v1899 = vsel %vm1876, %v1866, %v775
      %v1900 = vsel %vm1876, %v1867, %v776
      %v1901 = vsel %vm1876, %v1868, %v777
      %v1902 = vsel %vm1876, %v1869, %v778
      %v1903 = vsel %vm1876, %v1870, %v779
      %v1904 = vsel %vm1876, %v1871, %v780
      %v1905 = vsel %vm1876, %v1872, %v781
      %v1906 = vsel %vm1876, %v1873, %v782
      %v1907 = vsel %vm1876, %v1874, %v783
      %v1908 = vsel %vm1876, %v1875, %v784
      %vm1909 = vcmask 1044480
      %v1910 = vsel %vm1909, %v1877, %v818
      %v1911 = vsel %vm1909, %v1878, %v820
      %v1912 = vsel %vm1909, %v1879, %v822
      %v1913 = vsel %vm1909, %v1880, %v824
      %v1914 = vsel %vm1909, %v1881, %v826
      %v1915 = vsel %vm1909, %v1882, %v828
      %v1916 = vsel %vm1909, %v1883, %v830
      %v1917 = vsel %vm1909, %v1884, %v832
      %v1918 = vsel %vm1909, %v1885, %v834
      %v1919 = vsel %vm1909, %v1886, %v836
      %v1920 = vsel %vm1909, %v1887, %v838
      %v1921 = vsel %vm1909, %v1888, %v840
      %v1922 = vsel %vm1909, %v1889, %v842
      %v1923 = vsel %vm1909, %v1890, %v844
      %v1924 = vsel %vm1909, %v1891, %v846
      %v1925 = vsel %vm1909, %v1892, %v848
      %v1926 = vsel %vm1909, %v1893, %v850
      %v1927 = vsel %vm1909, %v1894, %v852
      %v1928 = vsel %vm1909, %v1895, %v854
      %v1929 = vsel %vm1909, %v1896, %v856
      %v1930 = vsel %vm1909, %v1897, %v858
      %v1931 = vsel %vm1909, %v1898, %v860
      %v1932 = vsel %vm1909, %v1899, %v862
      %v1933 = vsel %vm1909, %v1900, %v864
      %v1934 = vsel %vm1909, %v1901, %v866
      %v1935 = vsel %vm1909, %v1902, %v868
      %v1936 = vsel %vm1909, %v1903, %v870
      %v1937 = vsel %vm1909, %v1904, %v872
      %v1938 = vsel %vm1909, %v1905, %v874
      %v1939 = vsel %vm1909, %v1906, %v876
      %v1940 = vsel %vm1909, %v1907, %v878
      %v1941 = vsel %vm1909, %v1908, %v880
      %vm1942 = vcmask 1045504
      %v1943 = vsel %vm1942, %v1910, %v914
      %v1944 = vsel %vm1942, %v1911, %v916
      %v1945 = vsel %vm1942, %v1912, %v918
      %v1946 = vsel %vm1942, %v1913, %v920
      %v1947 = vsel %vm1942, %v1914, %v922
      %v1948 = vsel %vm1942, %v1915, %v924
      %v1949 = vsel %vm1942, %v1916, %v926
      %v1950 = vsel %vm1942, %v1917, %v928
      %v1951 = vsel %vm1942, %v1918, %v930
      %v1952 = vsel %vm1942, %v1919, %v932
      %v1953 = vsel %vm1942, %v1920, %v934
      %v1954 = vsel %vm1942, %v1921, %v936
      %v1955 = vsel %vm1942, %v1922, %v938
      %v1956 = vsel %vm1942, %v1923, %v940
      %v1957 = vsel %vm1942, %v1924, %v942
      %v1958 = vsel %vm1942, %v1925, %v944
      %v1959 = vsel %vm1942, %v1926, %v946
      %v1960 = vsel %vm1942, %v1927, %v948
      %v1961 = vsel %vm1942, %v1928, %v950
      %v1962 = vsel %vm1942, %v1929, %v952
      %v1963 = vsel %vm1942, %v1930, %v954
      %v1964 = vsel %vm1942, %v1931, %v956
      %v1965 = vsel %vm1942, %v1932, %v958
      %v1966 = vsel %vm1942, %v1933, %v960
      %v1967 = vsel %vm1942, %v1934, %v962
      %v1968 = vsel %vm1942, %v1935, %v964
      %v1969 = vsel %vm1942, %v1936, %v966
      %v1970 = vsel %vm1942, %v1937, %v968
      %v1971 = vsel %vm1942, %v1938, %v970
      %v1972 = vsel %vm1942, %v1939, %v972
      %v1973 = vsel %vm1942, %v1940, %v974
      %v1974 = vsel %vm1942, %v1941, %v976
      %vm1975 = vcmask 1046528
      %v1976 = vsel %vm1975, %v1943, %v1010
      %v1977 = vsel %vm1975, %v1944, %v1012
      %v1978 = vsel %vm1975, %v1945, %v1014
      %v1979 = vsel %vm1975, %v1946, %v1016
      %v1980 = vsel %vm1975, %v1947, %v1018
      %v1981 = vsel %vm1975, %v1948, %v1020
      %v1982 = vsel %vm1975, %v1949, %v1022
      %v1983 = vsel %vm1975, %v1950, %v1024
      %v1984 = vsel %vm1975, %v1951, %v1026
      %v1985 = vsel %vm1975, %v1952, %v1028
      %v1986 = vsel %vm1975, %v1953, %v1030
      %v1987 = vsel %vm1975, %v1954, %v1032
      %v1988 = vsel %vm1975, %v1955, %v1034
      %v1989 = vsel %vm1975, %v1956, %v1036
      %v1990 = vsel %vm1975, %v1957, %v1038
      %v1991 = vsel %vm1975, %v1958, %v1040
      %v1992 = vsel %vm1975, %v1959, %v1042
      %v1993 = vsel %vm1975, %v1960, %v1044
      %v1994 = vsel %vm1975, %v1961, %v1046
      %v1995 = vsel %vm1975, %v1962, %v1048
      %v1996 = vsel %vm1975, %v1963, %v1050
      %v1997 = vsel %vm1975, %v1964, %v1052
      %v1998 = vsel %vm1975, %v1965, %v1054
      %v1999 = vsel %vm1975, %v1966, %v1056
      %v2000 = vsel %vm1975, %v1967, %v1058
      %v2001 = vsel %vm1975, %v1968, %v1060
      %v2002 = vsel %vm1975, %v1969, %v1062
      %v2003 = vsel %vm1975, %v1970, %v1064
      %v2004 = vsel %vm1975, %v1971, %v1066
      %v2005 = vsel %vm1975, %v1972, %v1068
      %v2006 = vsel %vm1975, %v1973, %v1070
      %v2007 = vsel %vm1975, %v1974, %v1072
      %v2008 = vsel %vm1777, %v235, %v1138
      %v2009 = vsel %vm1777, %v345, %v1140
      %v2010 = vsel %vm1777, %v346, %v1142
      %v2011 = vsel %vm1777, %v347, %v1144
      %v2012 = vsel %vm1777, %v348, %v1146
      %v2013 = vsel %vm1777, %v349, %v1148
      %v2014 = vsel %vm1777, %v350, %v1150
      %v2015 = vsel %vm1777, %v351, %v1152
      %v2016 = vsel %vm1777, %v239, %v1154
      %v2017 = vsel %vm1777, %v352, %v1156
      %v2018 = vsel %vm1777, %v353, %v1158
      %v2019 = vsel %vm1777, %v354, %v1160
      %v2020 = vsel %vm1777, %v355, %v1162
      %v2021 = vsel %vm1777, %v356, %v1164
      %v2022 = vsel %vm1777, %v357, %v1166
      %v2023 = vsel %vm1777, %v358, %v1168
      %v2024 = vsel %vm1777, %v243, %v1170
      %v2025 = vsel %vm1777, %v359, %v1172
      %v2026 = vsel %vm1777, %v360, %v1174
      %v2027 = vsel %vm1777, %v361, %v1176
      %v2028 = vsel %vm1777, %v362, %v1178
      %v2029 = vsel %vm1777, %v363, %v1180
      %v2030 = vsel %vm1777, %v364, %v1182
      %v2031 = vsel %vm1777, %v365, %v1184
      %v2032 = vsel %vm1777, %v247, %v1186
      %v2033 = vsel %vm1777, %v366, %v1188
      %v2034 = vsel %vm1777, %v367, %v1190
      %v2035 = vsel %vm1777, %v368, %v1192
      %v2036 = vsel %vm1777, %v369, %v1194
      %v2037 = vsel %vm1777, %v370, %v1196
      %v2038 = vsel %vm1777, %v371, %v1198
      %v2039 = vsel %vm1777, %v372, %v1200
      %v2040 = vsel %vm1810, %v2008, %v1234
      %v2041 = vsel %vm1810, %v2009, %v1236
      %v2042 = vsel %vm1810, %v2010, %v1238
      %v2043 = vsel %vm1810, %v2011, %v1240
      %v2044 = vsel %vm1810, %v2012, %v1242
      %v2045 = vsel %vm1810, %v2013, %v1244
      %v2046 = vsel %vm1810, %v2014, %v1246
      %v2047 = vsel %vm1810, %v2015, %v1248
      %v2048 = vsel %vm1810, %v2016, %v1250
      %v2049 = vsel %vm1810, %v2017, %v1252
      %v2050 = vsel %vm1810, %v2018, %v1254
      %v2051 = vsel %vm1810, %v2019, %v1256
      %v2052 = vsel %vm1810, %v2020, %v1258
      %v2053 = vsel %vm1810, %v2021, %v1260
      %v2054 = vsel %vm1810, %v2022, %v1262
      %v2055 = vsel %vm1810, %v2023, %v1264
      %v2056 = vsel %vm1810, %v2024, %v1266
      %v2057 = vsel %vm1810, %v2025, %v1268
      %v2058 = vsel %vm1810, %v2026, %v1270
      %v2059 = vsel %vm1810, %v2027, %v1272
      %v2060 = vsel %vm1810, %v2028, %v1274
      %v2061 = vsel %vm1810, %v2029, %v1276
      %v2062 = vsel %vm1810, %v2030, %v1278
      %v2063 = vsel %vm1810, %v2031, %v1280
      %v2064 = vsel %vm1810, %v2032, %v1282
      %v2065 = vsel %vm1810, %v2033, %v1284
      %v2066 = vsel %vm1810, %v2034, %v1286
      %v2067 = vsel %vm1810, %v2035, %v1288
      %v2068 = vsel %vm1810, %v2036, %v1290
      %v2069 = vsel %vm1810, %v2037, %v1292
      %v2070 = vsel %vm1810, %v2038, %v1294
      %v2071 = vsel %vm1810, %v2039, %v1296
      %v2072 = vsel %vm1843, %v2040, %v1330
      %v2073 = vsel %vm1843, %v2041, %v1332
      %v2074 = vsel %vm1843, %v2042, %v1334
      %v2075 = vsel %vm1843, %v2043, %v1336
      %v2076 = vsel %vm1843, %v2044, %v1338
      %v2077 = vsel %vm1843, %v2045, %v1340
      %v2078 = vsel %vm1843, %v2046, %v1342
      %v2079 = vsel %vm1843, %v2047, %v1344
      %v2080 = vsel %vm1843, %v2048, %v1346
      %v2081 = vsel %vm1843, %v2049, %v1348
      %v2082 = vsel %vm1843, %v2050, %v1350
      %v2083 = vsel %vm1843, %v2051, %v1352
      %v2084 = vsel %vm1843, %v2052, %v1354
      %v2085 = vsel %vm1843, %v2053, %v1356
      %v2086 = vsel %vm1843, %v2054, %v1358
      %v2087 = vsel %vm1843, %v2055, %v1360
      %v2088 = vsel %vm1843, %v2056, %v1362
      %v2089 = vsel %vm1843, %v2057, %v1364
      %v2090 = vsel %vm1843, %v2058, %v1366
      %v2091 = vsel %vm1843, %v2059, %v1368
      %v2092 = vsel %vm1843, %v2060, %v1370
      %v2093 = vsel %vm1843, %v2061, %v1372
      %v2094 = vsel %vm1843, %v2062, %v1374
      %v2095 = vsel %vm1843, %v2063, %v1376
      %v2096 = vsel %vm1843, %v2064, %v1378
      %v2097 = vsel %vm1843, %v2065, %v1380
      %v2098 = vsel %vm1843, %v2066, %v1382
      %v2099 = vsel %vm1843, %v2067, %v1384
      %v2100 = vsel %vm1843, %v2068, %v1386
      %v2101 = vsel %vm1843, %v2069, %v1388
      %v2102 = vsel %vm1843, %v2070, %v1390
      %v2103 = vsel %vm1843, %v2071, %v1392
      %v2104 = vsel %vm1876, %v2072, %v1425
      %v2105 = vsel %vm1876, %v2073, %v1426
      %v2106 = vsel %vm1876, %v2074, %v1427
      %v2107 = vsel %vm1876, %v2075, %v1428
      %v2108 = vsel %vm1876, %v2076, %v1429
      %v2109 = vsel %vm1876, %v2077, %v1430
      %v2110 = vsel %vm1876, %v2078, %v1431
      %v2111 = vsel %vm1876, %v2079, %v1432
      %v2112 = vsel %vm1876, %v2080, %v1433
      %v2113 = vsel %vm1876, %v2081, %v1434
      %v2114 = vsel %vm1876, %v2082, %v1435
      %v2115 = vsel %vm1876, %v2083, %v1436
      %v2116 = vsel %vm1876, %v2084, %v1437
      %v2117 = vsel %vm1876, %v2085, %v1438
      %v2118 = vsel %vm1876, %v2086, %v1439
      %v2119 = vsel %vm1876, %v2087, %v1440
      %v2120 = vsel %vm1876, %v2088, %v1441
      %v2121 = vsel %vm1876, %v2089, %v1442
      %v2122 = vsel %vm1876, %v2090, %v1443
      %v2123 = vsel %vm1876, %v2091, %v1444
      %v2124 = vsel %vm1876, %v2092, %v1445
      %v2125 = vsel %vm1876, %v2093, %v1446
      %v2126 = vsel %vm1876, %v2094, %v1447
      %v2127 = vsel %vm1876, %v2095, %v1448
      %v2128 = vsel %vm1876, %v2096, %v1449
      %v2129 = vsel %vm1876, %v2097, %v1450
      %v2130 = vsel %vm1876, %v2098, %v1451
      %v2131 = vsel %vm1876, %v2099, %v1452
      %v2132 = vsel %vm1876, %v2100, %v1453
      %v2133 = vsel %vm1876, %v2101, %v1454
      %v2134 = vsel %vm1876, %v2102, %v1455
      %v2135 = vsel %vm1876, %v2103, %v1456
      %v2136 = vsel %vm1909, %v2104, %v1490
      %v2137 = vsel %vm1909, %v2105, %v1492
      %v2138 = vsel %vm1909, %v2106, %v1494
      %v2139 = vsel %vm1909, %v2107, %v1496
      %v2140 = vsel %vm1909, %v2108, %v1498
      %v2141 = vsel %vm1909, %v2109, %v1500
      %v2142 = vsel %vm1909, %v2110, %v1502
      %v2143 = vsel %vm1909, %v2111, %v1504
      %v2144 = vsel %vm1909, %v2112, %v1506
      %v2145 = vsel %vm1909, %v2113, %v1508
      %v2146 = vsel %vm1909, %v2114, %v1510
      %v2147 = vsel %vm1909, %v2115, %v1512
      %v2148 = vsel %vm1909, %v2116, %v1514
      %v2149 = vsel %vm1909, %v2117, %v1516
      %v2150 = vsel %vm1909, %v2118, %v1518
      %v2151 = vsel %vm1909, %v2119, %v1520
      %v2152 = vsel %vm1909, %v2120, %v1522
      %v2153 = vsel %vm1909, %v2121, %v1524
      %v2154 = vsel %vm1909, %v2122, %v1526
      %v2155 = vsel %vm1909, %v2123, %v1528
      %v2156 = vsel %vm1909, %v2124, %v1530
      %v2157 = vsel %vm1909, %v2125, %v1532
      %v2158 = vsel %vm1909, %v2126, %v1534
      %v2159 = vsel %vm1909, %v2127, %v1536
      %v2160 = vsel %vm1909, %v2128, %v1538
      %v2161 = vsel %vm1909, %v2129, %v1540
      %v2162 = vsel %vm1909, %v2130, %v1542
      %v2163 = vsel %vm1909, %v2131, %v1544
      %v2164 = vsel %vm1909, %v2132, %v1546
      %v2165 = vsel %vm1909, %v2133, %v1548
      %v2166 = vsel %vm1909, %v2134, %v1550
      %v2167 = vsel %vm1909, %v2135, %v1552
      %v2168 = vsel %vm1942, %v2136, %v1586
      %v2169 = vsel %vm1942, %v2137, %v1588
      %v2170 = vsel %vm1942, %v2138, %v1590
      %v2171 = vsel %vm1942, %v2139, %v1592
      %v2172 = vsel %vm1942, %v2140, %v1594
      %v2173 = vsel %vm1942, %v2141, %v1596
      %v2174 = vsel %vm1942, %v2142, %v1598
      %v2175 = vsel %vm1942, %v2143, %v1600
      %v2176 = vsel %vm1942, %v2144, %v1602
      %v2177 = vsel %vm1942, %v2145, %v1604
      %v2178 = vsel %vm1942, %v2146, %v1606
      %v2179 = vsel %vm1942, %v2147, %v1608
      %v2180 = vsel %vm1942, %v2148, %v1610
      %v2181 = vsel %vm1942, %v2149, %v1612
      %v2182 = vsel %vm1942, %v2150, %v1614
      %v2183 = vsel %vm1942, %v2151, %v1616
      %v2184 = vsel %vm1942, %v2152, %v1618
      %v2185 = vsel %vm1942, %v2153, %v1620
      %v2186 = vsel %vm1942, %v2154, %v1622
      %v2187 = vsel %vm1942, %v2155, %v1624
      %v2188 = vsel %vm1942, %v2156, %v1626
      %v2189 = vsel %vm1942, %v2157, %v1628
      %v2190 = vsel %vm1942, %v2158, %v1630
      %v2191 = vsel %vm1942, %v2159, %v1632
      %v2192 = vsel %vm1942, %v2160, %v1634
      %v2193 = vsel %vm1942, %v2161, %v1636
      %v2194 = vsel %vm1942, %v2162, %v1638
      %v2195 = vsel %vm1942, %v2163, %v1640
      %v2196 = vsel %vm1942, %v2164, %v1642
      %v2197 = vsel %vm1942, %v2165, %v1644
      %v2198 = vsel %vm1942, %v2166, %v1646
      %v2199 = vsel %vm1942, %v2167, %v1648
      %v2200 = vsel %vm1975, %v2168, %v1682
      %v2201 = vsel %vm1975, %v2169, %v1684
      %v2202 = vsel %vm1975, %v2170, %v1686
      %v2203 = vsel %vm1975, %v2171, %v1688
      %v2204 = vsel %vm1975, %v2172, %v1690
      %v2205 = vsel %vm1975, %v2173, %v1692
      %v2206 = vsel %vm1975, %v2174, %v1694
      %v2207 = vsel %vm1975, %v2175, %v1696
      %v2208 = vsel %vm1975, %v2176, %v1698
      %v2209 = vsel %vm1975, %v2177, %v1700
      %v2210 = vsel %vm1975, %v2178, %v1702
      %v2211 = vsel %vm1975, %v2179, %v1704
      %v2212 = vsel %vm1975, %v2180, %v1706
      %v2213 = vsel %vm1975, %v2181, %v1708
      %v2214 = vsel %vm1975, %v2182, %v1710
      %v2215 = vsel %vm1975, %v2183, %v1712
      %v2216 = vsel %vm1975, %v2184, %v1714
      %v2217 = vsel %vm1975, %v2185, %v1716
      %v2218 = vsel %vm1975, %v2186, %v1718
      %v2219 = vsel %vm1975, %v2187, %v1720
      %v2220 = vsel %vm1975, %v2188, %v1722
      %v2221 = vsel %vm1975, %v2189, %v1724
      %v2222 = vsel %vm1975, %v2190, %v1726
      %v2223 = vsel %vm1975, %v2191, %v1728
      %v2224 = vsel %vm1975, %v2192, %v1730
      %v2225 = vsel %vm1975, %v2193, %v1732
      %v2226 = vsel %vm1975, %v2194, %v1734
      %v2227 = vsel %vm1975, %v2195, %v1736
      %v2228 = vsel %vm1975, %v2196, %v1738
      %v2229 = vsel %vm1975, %v2197, %v1740
      %v2230 = vsel %vm1975, %v2198, %v1742
      %v2231 = vsel %vm1975, %v2199, %v1744
      %v2232 = vld [vmem:[%s1] sm:$0xff]
      %v2233 = vld [vmem:[%s1 + $0x8] sm:$0xff]
      %v2234 = vld [vmem:[%s1 + $0x10] sm:$0xff]
      %v2235 = vld [vmem:[%s1 + $0x18] sm:$0xff]
      %v2236 = vld [vmem:[%s1 + $0x20] sm:$0xff]
      %v2237 = vld [vmem:[%s1 + $0x28] sm:$0xff]
      %v2238 = vld [vmem:[%s1 + $0x30] sm:$0xff]
      %v2239 = vld [vmem:[%s1 + $0x38] sm:$0xff]
      %v2240 = vld [vmem:[%s1 + $0x40] sm:$0xff]
      %v2241 = vld [vmem:[%s1 + $0x48] sm:$0xff]
      %v2242 = vld [vmem:[%s1 + $0x50] sm:$0xff]
      %v2243 = vld [vmem:[%s1 + $0x58] sm:$0xff]
      %v2244 = vld [vmem:[%s2] sm:$0x1]
      %2309 = vrot.lane.b32.xlu0 %v1976, 32
      %v2310 = vpop.permute.xlu0 %2309
      %2311 = vrot.lane.b32.xlu0 %v2200, 32
      %v2312 = vpop.permute.xlu0 %2311
      %2313 = vrot.lane.b32.xlu0 %v1977, 32
      %v2314 = vpop.permute.xlu0 %2313
      %2315 = vrot.lane.b32.xlu0 %v2201, 32
      %v2316 = vpop.permute.xlu0 %2315
      %2317 = vrot.lane.b32.xlu0 %v1978, 32
      %v2318 = vpop.permute.xlu0 %2317
      %2319 = vrot.lane.b32.xlu0 %v2202, 32
      %v2320 = vpop.permute.xlu0 %2319
      %2321 = vrot.lane.b32.xlu0 %v1979, 32
      %v2322 = vpop.permute.xlu0 %2321
      %2323 = vrot.lane.b32.xlu0 %v2203, 32
      %v2324 = vpop.permute.xlu0 %2323
      %2325 = vrot.lane.b32.xlu0 %v1980, 32
      %v2326 = vpop.permute.xlu0 %2325
      %2327 = vrot.lane.b32.xlu0 %v2204, 32
      %v2328 = vpop.permute.xlu0 %2327
      %2329 = vrot.lane.b32.xlu0 %v1981, 32
      %v2330 = vpop.permute.xlu0 %2329
      %2331 = vrot.lane.b32.xlu0 %v2205, 32
      %v2332 = vpop.permute.xlu0 %2331
      %2333 = vrot.lane.b32.xlu0 %v1982, 32
      %v2334 = vpop.permute.xlu0 %2333
      %2335 = vrot.lane.b32.xlu0 %v2206, 32
      %v2336 = vpop.permute.xlu0 %2335
      %2337 = vrot.lane.b32.xlu0 %v1983, 32
      %v2338 = vpop.permute.xlu0 %2337
      %2339 = vrot.lane.b32.xlu0 %v2207, 32
      %v2340 = vpop.permute.xlu0 %2339
      %2341 = vrot.lane.b32.xlu0 %v1984, 32
      %v2342 = vpop.permute.xlu0 %2341
      %2343 = vrot.lane.b32.xlu0 %v2208, 32
      %v2344 = vpop.permute.xlu0 %2343
      %2345 = vrot.lane.b32.xlu0 %v1985, 32
      %v2346 = vpop.permute.xlu0 %2345
      %2347 = vrot.lane.b32.xlu0 %v2209, 32
      %v2348 = vpop.permute.xlu0 %2347
      %2349 = vrot.lane.b32.xlu0 %v1986, 32
      %v2350 = vpop.permute.xlu0 %2349
      %2351 = vrot.lane.b32.xlu0 %v2210, 32
      %v2352 = vpop.permute.xlu0 %2351
      %2353 = vrot.lane.b32.xlu0 %v1987, 32
      %v2354 = vpop.permute.xlu0 %2353
      %2355 = vrot.lane.b32.xlu0 %v2211, 32
      %v2356 = vpop.permute.xlu0 %2355
      %2357 = vrot.lane.b32.xlu0 %v1988, 32
      %v2358 = vpop.permute.xlu0 %2357
      %2359 = vrot.lane.b32.xlu0 %v2212, 32
      %v2360 = vpop.permute.xlu0 %2359
      %2361 = vrot.lane.b32.xlu0 %v1989, 32
      %v2362 = vpop.permute.xlu0 %2361
      %2363 = vrot.lane.b32.xlu0 %v2213, 32
      %v2364 = vpop.permute.xlu0 %2363
      %2365 = vrot.lane.b32.xlu0 %v1990, 32
      %v2366 = vpop.permute.xlu0 %2365
      %2367 = vrot.lane.b32.xlu0 %v2214, 32
      %v2368 = vpop.permute.xlu0 %2367
      %2369 = vrot.lane.b32.xlu0 %v1991, 32
      %v2370 = vpop.permute.xlu0 %2369
      %2371 = vrot.lane.b32.xlu0 %v2215, 32
      %v2372 = vpop.permute.xlu0 %2371
      %2373 = vrot.lane.b32.xlu0 %v1992, 32
      %v2374 = vpop.permute.xlu0 %2373
      %2375 = vrot.lane.b32.xlu0 %v2216, 32
      %v2376 = vpop.permute.xlu0 %2375
      %2377 = vrot.lane.b32.xlu0 %v1993, 32
      %v2378 = vpop.permute.xlu0 %2377
      %2379 = vrot.lane.b32.xlu0 %v2217, 32
      %v2380 = vpop.permute.xlu0 %2379
      %2381 = vrot.lane.b32.xlu0 %v1994, 32
      %v2382 = vpop.permute.xlu0 %2381
      %2383 = vrot.lane.b32.xlu0 %v2218, 32
      %v2384 = vpop.permute.xlu0 %2383
      %2385 = vrot.lane.b32.xlu0 %v1995, 32
      %v2386 = vpop.permute.xlu0 %2385
      %2387 = vrot.lane.b32.xlu0 %v2219, 32
      %v2388 = vpop.permute.xlu0 %2387
      %2389 = vrot.lane.b32.xlu0 %v1996, 32
      %v2390 = vpop.permute.xlu0 %2389
      %2391 = vrot.lane.b32.xlu0 %v2220, 32
      %v2392 = vpop.permute.xlu0 %2391
      %2393 = vrot.lane.b32.xlu0 %v1997, 32
      %v2394 = vpop.permute.xlu0 %2393
      %2395 = vrot.lane.b32.xlu0 %v2221, 32
      %v2396 = vpop.permute.xlu0 %2395
      %2397 = vrot.lane.b32.xlu0 %v1998, 32
      %v2398 = vpop.permute.xlu0 %2397
      %2399 = vrot.lane.b32.xlu0 %v2222, 32
      %v2400 = vpop.permute.xlu0 %2399
      %2401 = vrot.lane.b32.xlu0 %v1999, 32
      %v2402 = vpop.permute.xlu0 %2401
      %2403 = vrot.lane.b32.xlu0 %v2223, 32
      %v2404 = vpop.permute.xlu0 %2403
      %2405 = vrot.lane.b32.xlu0 %v2000, 32
      %v2406 = vpop.permute.xlu0 %2405
      %2407 = vrot.lane.b32.xlu0 %v2224, 32
      %v2408 = vpop.permute.xlu0 %2407
      %2409 = vrot.lane.b32.xlu0 %v2001, 32
      %v2410 = vpop.permute.xlu0 %2409
      %2411 = vrot.lane.b32.xlu0 %v2225, 32
      %v2412 = vpop.permute.xlu0 %2411
      %2413 = vrot.lane.b32.xlu0 %v2002, 32
      %v2414 = vpop.permute.xlu0 %2413
      %2415 = vrot.lane.b32.xlu0 %v2226, 32
      %v2416 = vpop.permute.xlu0 %2415
      %2417 = vrot.lane.b32.xlu0 %v2003, 32
      %v2418 = vpop.permute.xlu0 %2417
      %2419 = vrot.lane.b32.xlu0 %v2227, 32
      %v2420 = vpop.permute.xlu0 %2419
      %2421 = vrot.lane.b32.xlu0 %v2004, 32
      %v2422 = vpop.permute.xlu0 %2421
      %2423 = vrot.lane.b32.xlu0 %v2228, 32
      %v2424 = vpop.permute.xlu0 %2423
      %2425 = vrot.lane.b32.xlu0 %v2005, 32
      %v2426 = vpop.permute.xlu0 %2425
      %2427 = vrot.lane.b32.xlu0 %v2229, 32
      %v2428 = vpop.permute.xlu0 %2427
      %2429 = vrot.lane.b32.xlu0 %v2006, 32
      %v2430 = vpop.permute.xlu0 %2429
      %2431 = vrot.lane.b32.xlu0 %v2230, 32
      %v2432 = vpop.permute.xlu0 %2431
      %2433 = vrot.lane.b32.xlu0 %v2007, 32
      %v2434 = vpop.permute.xlu0 %2433
      %2435 = vrot.lane.b32.xlu0 %v2231, 32
      %v2436 = vpop.permute.xlu0 %2435
      %2502 = vrot.lane.b32.xlu0 %v1977, 64
      %v2503 = vpop.permute.xlu0 %2502
      %2504 = vrot.lane.b32.xlu0 %v2201, 64
      %v2505 = vpop.permute.xlu0 %2504
      %2506 = vrot.lane.b32.xlu0 %v1978, 64
      %v2507 = vpop.permute.xlu0 %2506
      %2508 = vrot.lane.b32.xlu0 %v2202, 64
      %v2509 = vpop.permute.xlu0 %2508
      %2510 = vrot.lane.b32.xlu0 %v1979, 64
      %v2511 = vpop.permute.xlu0 %2510
      %2512 = vrot.lane.b32.xlu0 %v2203, 64
      %v2513 = vpop.permute.xlu0 %2512
      %2514 = vrot.lane.b32.xlu0 %v1980, 64
      %v2515 = vpop.permute.xlu0 %2514
      %2516 = vrot.lane.b32.xlu0 %v2204, 64
      %v2517 = vpop.permute.xlu0 %2516
      %2518 = vrot.lane.b32.xlu0 %v1981, 64
      %v2519 = vpop.permute.xlu0 %2518
      %2520 = vrot.lane.b32.xlu0 %v2205, 64
      %v2521 = vpop.permute.xlu0 %2520
      %2522 = vrot.lane.b32.xlu0 %v1982, 64
      %v2523 = vpop.permute.xlu0 %2522
      %2524 = vrot.lane.b32.xlu0 %v2206, 64
      %v2525 = vpop.permute.xlu0 %2524
      %2526 = vrot.lane.b32.xlu0 %v1983, 64
      %v2527 = vpop.permute.xlu0 %2526
      %2528 = vrot.lane.b32.xlu0 %v2207, 64
      %v2529 = vpop.permute.xlu0 %2528
      %2530 = vrot.lane.b32.xlu0 %v1984, 64
      %v2531 = vpop.permute.xlu0 %2530
      %2532 = vrot.lane.b32.xlu0 %v2208, 64
      %v2533 = vpop.permute.xlu0 %2532
      %2534 = vrot.lane.b32.xlu0 %v1985, 64
      %v2535 = vpop.permute.xlu0 %2534
      %2536 = vrot.lane.b32.xlu0 %v2209, 64
      %v2537 = vpop.permute.xlu0 %2536
      %2538 = vrot.lane.b32.xlu0 %v1986, 64
      %v2539 = vpop.permute.xlu0 %2538
      %2540 = vrot.lane.b32.xlu0 %v2210, 64
      %v2541 = vpop.permute.xlu0 %2540
      %2542 = vrot.lane.b32.xlu0 %v1987, 64
      %v2543 = vpop.permute.xlu0 %2542
      %2544 = vrot.lane.b32.xlu0 %v2211, 64
      %v2545 = vpop.permute.xlu0 %2544
      %2546 = vrot.lane.b32.xlu0 %v1988, 64
      %v2547 = vpop.permute.xlu0 %2546
      %2548 = vrot.lane.b32.xlu0 %v2212, 64
      %v2549 = vpop.permute.xlu0 %2548
      %2550 = vrot.lane.b32.xlu0 %v1989, 64
      %v2551 = vpop.permute.xlu0 %2550
      %2552 = vrot.lane.b32.xlu0 %v2213, 64
      %v2553 = vpop.permute.xlu0 %2552
      %2554 = vrot.lane.b32.xlu0 %v1990, 64
      %v2555 = vpop.permute.xlu0 %2554
      %2556 = vrot.lane.b32.xlu0 %v2214, 64
      %v2557 = vpop.permute.xlu0 %2556
      %2558 = vrot.lane.b32.xlu0 %v1991, 64
      %v2559 = vpop.permute.xlu0 %2558
      %2560 = vrot.lane.b32.xlu0 %v2215, 64
      %v2561 = vpop.permute.xlu0 %2560
      %2562 = vrot.lane.b32.xlu0 0.0, 64
      %v2563 = vpop.permute.xlu0 %2562
      %2564 = vrot.lane.b32.xlu0 %v1993, 64
      %v2565 = vpop.permute.xlu0 %2564
      %2566 = vrot.lane.b32.xlu0 %v2217, 64
      %v2567 = vpop.permute.xlu0 %2566
      %2568 = vrot.lane.b32.xlu0 %v1994, 64
      %v2569 = vpop.permute.xlu0 %2568
      %2570 = vrot.lane.b32.xlu0 %v2218, 64
      %v2571 = vpop.permute.xlu0 %2570
      %2572 = vrot.lane.b32.xlu0 %v1995, 64
      %v2573 = vpop.permute.xlu0 %2572
      %2574 = vrot.lane.b32.xlu0 %v2219, 64
      %v2575 = vpop.permute.xlu0 %2574
      %2576 = vrot.lane.b32.xlu0 %v1996, 64
      %v2577 = vpop.permute.xlu0 %2576
      %2578 = vrot.lane.b32.xlu0 %v2220, 64
      %v2579 = vpop.permute.xlu0 %2578
      %2580 = vrot.lane.b32.xlu0 %v1997, 64
      %v2581 = vpop.permute.xlu0 %2580
      %2582 = vrot.lane.b32.xlu0 %v2221, 64
      %v2583 = vpop.permute.xlu0 %2582
      %2584 = vrot.lane.b32.xlu0 %v1998, 64
      %v2585 = vpop.permute.xlu0 %2584
      %2586 = vrot.lane.b32.xlu0 %v2222, 64
      %v2587 = vpop.permute.xlu0 %2586
      %2588 = vrot.lane.b32.xlu0 %v1999, 64
      %v2589 = vpop.permute.xlu0 %2588
      %2590 = vrot.lane.b32.xlu0 %v2223, 64
      %v2591 = vpop.permute.xlu0 %2590
      %2592 = vrot.lane.b32.xlu0 %v2000, 64
      %v2593 = vpop.permute.xlu0 %2592
      %2594 = vrot.lane.b32.xlu0 %v2224, 64
      %v2595 = vpop.permute.xlu0 %2594
      %2596 = vrot.lane.b32.xlu0 %v2001, 64
      %v2597 = vpop.permute.xlu0 %2596
      %2598 = vrot.lane.b32.xlu0 %v2225, 64
      %v2599 = vpop.permute.xlu0 %2598
      %2600 = vrot.lane.b32.xlu0 %v2002, 64
      %v2601 = vpop.permute.xlu0 %2600
      %2602 = vrot.lane.b32.xlu0 %v2226, 64
      %v2603 = vpop.permute.xlu0 %2602
      %2604 = vrot.lane.b32.xlu0 %v2003, 64
      %v2605 = vpop.permute.xlu0 %2604
      %2606 = vrot.lane.b32.xlu0 %v2227, 64
      %v2607 = vpop.permute.xlu0 %2606
      %2608 = vrot.lane.b32.xlu0 %v2004, 64
      %v2609 = vpop.permute.xlu0 %2608
      %2610 = vrot.lane.b32.xlu0 %v2228, 64
      %v2611 = vpop.permute.xlu0 %2610
      %2612 = vrot.lane.b32.xlu0 %v2005, 64
      %v2613 = vpop.permute.xlu0 %2612
      %2614 = vrot.lane.b32.xlu0 %v2229, 64
      %v2615 = vpop.permute.xlu0 %2614
      %2616 = vrot.lane.b32.xlu0 %v2006, 64
      %v2617 = vpop.permute.xlu0 %2616
      %2618 = vrot.lane.b32.xlu0 %v2230, 64
      %v2619 = vpop.permute.xlu0 %2618
      %2620 = vrot.lane.b32.xlu0 %v2007, 64
      %v2621 = vpop.permute.xlu0 %2620
      %2622 = vrot.lane.b32.xlu0 %v2231, 64
      %v2623 = vpop.permute.xlu0 %2622
      %vm2685 = vcmask 261120
      %v2686 = vsel %vm2685, 0.0, %v2310
      %v2687 = vsel %vm2685, 0.0, %v2312
      %v2688 = vsel %vm2685, %v1976, %v2314
      %v2689 = vsel %vm2685, %v2200, %v2316
      %v2690 = vsel %vm2685, %v1977, %v2318
      %v2691 = vsel %vm2685, %v2201, %v2320
      %v2692 = vsel %vm2685, %v1978, %v2322
      %v2693 = vsel %vm2685, %v2202, %v2324
      %v2694 = vsel %vm2685, %v1979, %v2326
      %v2695 = vsel %vm2685, %v2203, %v2328
      %v2696 = vsel %vm2685, %v1980, %v2330
      %v2697 = vsel %vm2685, %v2204, %v2332
      %v2698 = vsel %vm2685, %v1981, %v2334
      %v2699 = vsel %vm2685, %v2205, %v2336
      %v2700 = vsel %vm2685, %v1982, %v2338
      %v2701 = vsel %vm2685, %v2206, %v2340
      %v2702 = vsel %vm2685, %v1983, %v2342
      %v2703 = vsel %vm2685, %v2207, %v2344
      %v2704 = vsel %vm2685, %v1984, %v2346
      %v2705 = vsel %vm2685, %v2208, %v2348
      %v2706 = vsel %vm2685, %v1985, %v2350
      %v2707 = vsel %vm2685, %v2209, %v2352
      %v2708 = vsel %vm2685, %v1986, %v2354
      %v2709 = vsel %vm2685, %v2210, %v2356
      %v2710 = vsel %vm2685, %v1987, %v2358
      %v2711 = vsel %vm2685, %v2211, %v2360
      %v2712 = vsel %vm2685, %v1988, %v2362
      %v2713 = vsel %vm2685, %v2212, %v2364
      %v2714 = vsel %vm2685, %v1989, %v2366
      %v2715 = vsel %vm2685, %v2213, %v2368
      %v2716 = vsel %vm2685, %v1990, %v2370
      %v2717 = vsel %vm2685, %v2214, %v2372
      %v2718 = vsel %vm2685, 0.0, %v2374
      %v2719 = vsel %vm2685, 0.0, %v2376
      %v2720 = vsel %vm2685, %v1992, %v2378
      %v2721 = vsel %vm2685, %v2216, %v2380
      %v2722 = vsel %vm2685, %v1993, %v2382
      %v2723 = vsel %vm2685, %v2217, %v2384
      %v2724 = vsel %vm2685, %v1994, %v2386
      %v2725 = vsel %vm2685, %v2218, %v2388
      %v2726 = vsel %vm2685, %v1995, %v2390
      %v2727 = vsel %vm2685, %v2219, %v2392
      %v2728 = vsel %vm2685, %v1996, %v2394
      %v2729 = vsel %vm2685, %v2220, %v2396
      %v2730 = vsel %vm2685, %v1997, %v2398
      %v2731 = vsel %vm2685, %v2221, %v2400
      %v2732 = vsel %vm2685, %v1998, %v2402
      %v2733 = vsel %vm2685, %v2222, %v2404
      %v2734 = vsel %vm2685, %v1999, %v2406
      %v2735 = vsel %vm2685, %v2223, %v2408
      %v2736 = vsel %vm2685, %v2000, %v2410
      %v2737 = vsel %vm2685, %v2224, %v2412
      %v2738 = vsel %vm2685, %v2001, %v2414
      %v2739 = vsel %vm2685, %v2225, %v2416
      %v2740 = vsel %vm2685, %v2002, %v2418
      %v2741 = vsel %vm2685, %v2226, %v2420
      %v2742 = vsel %vm2685, %v2003, %v2422
      %v2743 = vsel %vm2685, %v2227, %v2424
      %v2744 = vsel %vm2685, %v2004, %v2426
      %v2745 = vsel %vm2685, %v2228, %v2428
      %v2746 = vsel %vm2685, %v2005, %v2430
      %v2747 = vsel %vm2685, %v2229, %v2432
      %v2748 = vsel %vm2685, %v2006, %v2434
      %v2749 = vsel %vm2685, %v2230, %v2436
      %vm2750 = vcmask 523264
      %v2751 = vsel %vm2750, %v2686, %v2503
      %v2752 = vsel %vm2750, %v2687, %v2505
      %v2753 = vsel %vm2750, %v2688, %v2507
      %v2754 = vsel %vm2750, %v2689, %v2509
      %v2755 = vsel %vm2750, %v2690, %v2511
      %v2756 = vsel %vm2750, %v2691, %v2513
      %v2757 = vsel %vm2750, %v2692, %v2515
      %v2758 = vsel %vm2750, %v2693, %v2517
      %v2759 = vsel %vm2750, %v2694, %v2519
      %v2760 = vsel %vm2750, %v2695, %v2521
      %v2761 = vsel %vm2750, %v2696, %v2523
      %v2762 = vsel %vm2750, %v2697, %v2525
      %v2763 = vsel %vm2750, %v2698, %v2527
      %v2764 = vsel %vm2750, %v2699, %v2529
      %v2765 = vsel %vm2750, %v2700, %v2531
      %v2766 = vsel %vm2750, %v2701, %v2533
      %v2767 = vsel %vm2750, %v2702, %v2535
      %v2768 = vsel %vm2750, %v2703, %v2537
      %v2769 = vsel %vm2750, %v2704, %v2539
      %v2770 = vsel %vm2750, %v2705, %v2541
      %v2771 = vsel %vm2750, %v2706, %v2543
      %v2772 = vsel %vm2750, %v2707, %v2545
      %v2773 = vsel %vm2750, %v2708, %v2547
      %v2774 = vsel %vm2750, %v2709, %v2549
      %v2775 = vsel %vm2750, %v2710, %v2551
      %v2776 = vsel %vm2750, %v2711, %v2553
      %v2777 = vsel %vm2750, %v2712, %v2555
      %v2778 = vsel %vm2750, %v2713, %v2557
      %v2779 = vsel %vm2750, %v2714, %v2559
      %v2780 = vsel %vm2750, %v2715, %v2561
      %v2781 = vsel %vm2750, %v2716, %v2563
      %v2782 = vsel %vm2750, %v2717, %v2563
      %v2783 = vsel %vm2750, %v2718, %v2565
      %v2784 = vsel %vm2750, %v2719, %v2567
      %v2785 = vsel %vm2750, %v2720, %v2569
      %v2786 = vsel %vm2750, %v2721, %v2571
      %v2787 = vsel %vm2750, %v2722, %v2573
      %v2788 = vsel %vm2750, %v2723, %v2575
      %v2789 = vsel %vm2750, %v2724, %v2577
      %v2790 = vsel %vm2750, %v2725, %v2579
      %v2791 = vsel %vm2750, %v2726, %v2581
      %v2792 = vsel %vm2750, %v2727, %v2583
      %v2793 = vsel %vm2750, %v2728, %v2585
      %v2794 = vsel %vm2750, %v2729, %v2587
      %v2795 = vsel %vm2750, %v2730, %v2589
      %v2796 = vsel %vm2750, %v2731, %v2591
      %v2797 = vsel %vm2750, %v2732, %v2593
      %v2798 = vsel %vm2750, %v2733, %v2595
      %v2799 = vsel %vm2750, %v2734, %v2597
      %v2800 = vsel %vm2750, %v2735, %v2599
      %v2801 = vsel %vm2750, %v2736, %v2601
      %v2802 = vsel %vm2750, %v2737, %v2603
      %v2803 = vsel %vm2750, %v2738, %v2605
      %v2804 = vsel %vm2750, %v2739, %v2607
      %v2805 = vsel %vm2750, %v2740, %v2609
      %v2806 = vsel %vm2750, %v2741, %v2611
      %v2807 = vsel %vm2750, %v2742, %v2613
      %v2808 = vsel %vm2750, %v2743, %v2615
      %v2809 = vsel %vm2750, %v2744, %v2617
      %v2810 = vsel %vm2750, %v2745, %v2619
      %v2811 = vsel %vm2750, %v2746, %v2621
      %v2812 = vsel %vm2750, %v2747, %v2623
      %v2813 = vsel %vm2750, %v2748, %v2563
      %v2814 = vsel %vm2750, %v2749, %v2563
      %vm2815 = vcmask 785408
      %v2817 = vsel %vm2815, %v2751, 0
      %v2820 = vsel %vm2815, %v2752, 0
      %v2823 = vsel %vm2815, %v2753, 0
      %v2826 = vsel %vm2815, %v2754, 0
      %v2829 = vsel %vm2815, %v2755, 0
      %v2832 = vsel %vm2815, %v2756, 0
      %v2835 = vsel %vm2815, %v2757, 0
      %v2838 = vsel %vm2815, %v2758, 0
      %v2841 = vsel %vm2815, %v2759, 0
      %v2844 = vsel %vm2815, %v2760, 0
      %v2847 = vsel %vm2815, %v2761, 0
      %v2850 = vsel %vm2815, %v2762, 0
      %v2853 = vsel %vm2815, %v2763, 0
      %v2856 = vsel %vm2815, %v2764, 0
      %v2859 = vsel %vm2815, %v2765, 0
      %v2862 = vsel %vm2815, %v2766, 0
      %v2865 = vsel %vm2815, %v2767, 0
      %v2868 = vsel %vm2815, %v2768, 0
      %v2871 = vsel %vm2815, %v2769, 0
      %v2874 = vsel %vm2815, %v2770, 0
      %v2877 = vsel %vm2815, %v2771, 0
      %v2880 = vsel %vm2815, %v2772, 0
      %v2883 = vsel %vm2815, %v2773, 0
      %v2886 = vsel %vm2815, %v2774, 0
      %v2889 = vsel %vm2815, %v2775, 0
      %v2892 = vsel %vm2815, %v2776, 0
      %v2895 = vsel %vm2815, %v2777, 0
      %v2898 = vsel %vm2815, %v2778, 0
      %v2901 = vsel %vm2815, %v2779, 0
      %v2904 = vsel %vm2815, %v2780, 0
      %v2907 = vsel %vm2815, %v2781, 0
      %v2910 = vsel %vm2815, %v2782, 0
      %v2913 = vsel %vm2815, %v2783, 0
      %v2916 = vsel %vm2815, %v2784, 0
      %v2919 = vsel %vm2815, %v2785, 0
      %v2922 = vsel %vm2815, %v2786, 0
      %v2925 = vsel %vm2815, %v2787, 0
      %v2928 = vsel %vm2815, %v2788, 0
      %v2931 = vsel %vm2815, %v2789, 0
      %v2934 = vsel %vm2815, %v2790, 0
      %v2937 = vsel %vm2815, %v2791, 0
      %v2940 = vsel %vm2815, %v2792, 0
      %v2943 = vsel %vm2815, %v2793, 0
      %v2946 = vsel %vm2815, %v2794, 0
      %v2949 = vsel %vm2815, %v2795, 0
      %v2952 = vsel %vm2815, %v2796, 0
      %v2955 = vsel %vm2815, %v2797, 0
      %v2958 = vsel %vm2815, %v2798, 0
      %v2961 = vsel %vm2815, %v2799, 0
      %v2964 = vsel %vm2815, %v2800, 0
      %v2967 = vsel %vm2815, %v2801, 0
      %v2970 = vsel %vm2815, %v2802, 0
      %v2973 = vsel %vm2815, %v2803, 0
      %v2976 = vsel %vm2815, %v2804, 0
      %v2979 = vsel %vm2815, %v2805, 0
      %v2982 = vsel %vm2815, %v2806, 0
      %v2985 = vsel %vm2815, %v2807, 0
      %v2988 = vsel %vm2815, %v2808, 0
      %v2991 = vsel %vm2815, %v2809, 0
      %v2994 = vsel %vm2815, %v2810, 0
      %v2997 = vsel %vm2815, %v2811, 0
      %v3000 = vsel %vm2815, %v2812, 0
      %v3003 = vsel %vm2815, %v2813, 0
      %v3006 = vsel %vm2815, %v2814, 0
      %3008 = vmatpush.msra.mxu0 0.0
      %3009 = vmatpush.msra.mxu0 0.0
      %3010 = vmatpush.msra.mxu0 0.0
      %3011 = vmatpush.msra.mxu0 0.0
      %3012 = vmatpush.msra.mxu0 %v2243
      %3013 = vmatpush.msra.mxu0 %v2242
      %3014 = vmatpush.msra.mxu0 %v2241
      %3015 = vmatpush.msra.mxu0 %v2240
      %3016 = vmatpush.msra.mxu0 %v2239
      %3017 = vmatpush.msra.mxu0 %v2238
      %3018 = vmatpush.msra.mxu0 %v2237
      %3019 = vmatpush.msra.mxu0 %v2236
      %3020 = vmatpush.msra.mxu0 %v2235
      %3021 = vmatpush.msra.mxu0 %v2234
      %3022 = vmatpush.msra.mxu0 %v2233
      %3023 = vmatpush.msra.mxu0 %v2232
      %3024 = vmatmul.f32.gmra.mxu0 %v2817
      %v3025 = vpop.f32.mrf.mxu0
      %v3026 = vadd.f32 0.0, %v3025
      %3027 = vmatmul.f32.gmra.mxu0 %v2820
      %v3028 = vpop.f32.mrf.mxu0
      %v3029 = vadd.f32 0.0, %v3028
      %3030 = vmatmul.f32.gmra.mxu0 %v2823
      %v3031 = vpop.f32.mrf.mxu0
      %v3032 = vadd.f32 0.0, %v3031
      %3033 = vmatmul.f32.gmra.mxu0 %v2826
      %v3034 = vpop.f32.mrf.mxu0
      %v3035 = vadd.f32 0.0, %v3034
      %3036 = vmatmul.f32.gmra.mxu0 %v2829
      %v3037 = vpop.f32.mrf.mxu0
      %v3038 = vadd.f32 0.0, %v3037
      %3039 = vmatmul.f32.gmra.mxu0 %v2832
      %v3040 = vpop.f32.mrf.mxu0
      %v3041 = vadd.f32 0.0, %v3040
      %3042 = vmatmul.f32.gmra.mxu0 %v2835
      %v3043 = vpop.f32.mrf.mxu0
      %v3044 = vadd.f32 0.0, %v3043
      %3045 = vmatmul.f32.gmra.mxu0 %v2838
      %v3046 = vpop.f32.mrf.mxu0
      %v3047 = vadd.f32 0.0, %v3046
      %3048 = vmatmul.f32.gmra.mxu0 %v2841
      %v3049 = vpop.f32.mrf.mxu0
      %v3050 = vadd.f32 0.0, %v3049
      %3051 = vmatmul.f32.gmra.mxu0 %v2844
      %v3052 = vpop.f32.mrf.mxu0
      %v3053 = vadd.f32 0.0, %v3052
      %3054 = vmatmul.f32.gmra.mxu0 %v2847
      %v3055 = vpop.f32.mrf.mxu0
      %v3056 = vadd.f32 0.0, %v3055
      %3057 = vmatmul.f32.gmra.mxu0 %v2850
      %v3058 = vpop.f32.mrf.mxu0
      %v3059 = vadd.f32 0.0, %v3058
      %3060 = vmatmul.f32.gmra.mxu0 %v2853
      %v3061 = vpop.f32.mrf.mxu0
      %v3062 = vadd.f32 0.0, %v3061
      %3063 = vmatmul.f32.gmra.mxu0 %v2856
      %v3064 = vpop.f32.mrf.mxu0
      %v3065 = vadd.f32 0.0, %v3064
      %3066 = vmatmul.f32.gmra.mxu0 %v2859
      %v3067 = vpop.f32.mrf.mxu0
      %v3068 = vadd.f32 0.0, %v3067
      %3069 = vmatmul.f32.gmra.mxu0 %v2862
      %v3070 = vpop.f32.mrf.mxu0
      %v3071 = vadd.f32 0.0, %v3070
      %3072 = vmatmul.f32.gmra.mxu0 %v2865
      %v3073 = vpop.f32.mrf.mxu0
      %v3074 = vadd.f32 0.0, %v3073
      %3075 = vmatmul.f32.gmra.mxu0 %v2868
      %v3076 = vpop.f32.mrf.mxu0
      %v3077 = vadd.f32 0.0, %v3076
      %3078 = vmatmul.f32.gmra.mxu0 %v2871
      %v3079 = vpop.f32.mrf.mxu0
      %v3080 = vadd.f32 0.0, %v3079
      %3081 = vmatmul.f32.gmra.mxu0 %v2874
      %v3082 = vpop.f32.mrf.mxu0
      %v3083 = vadd.f32 0.0, %v3082
      %3084 = vmatmul.f32.gmra.mxu0 %v2877
      %v3085 = vpop.f32.mrf.mxu0
      %v3086 = vadd.f32 0.0, %v3085
      %3087 = vmatmul.f32.gmra.mxu0 %v2880
      %v3088 = vpop.f32.mrf.mxu0
      %v3089 = vadd.f32 0.0, %v3088
      %3090 = vmatmul.f32.gmra.mxu0 %v2883
      %v3091 = vpop.f32.mrf.mxu0
      %v3092 = vadd.f32 0.0, %v3091
      %3093 = vmatmul.f32.gmra.mxu0 %v2886
      %v3094 = vpop.f32.mrf.mxu0
      %v3095 = vadd.f32 0.0, %v3094
      %3096 = vmatmul.f32.gmra.mxu0 %v2889
      %v3097 = vpop.f32.mrf.mxu0
      %v3098 = vadd.f32 0.0, %v3097
      %3099 = vmatmul.f32.gmra.mxu0 %v2892
      %v3100 = vpop.f32.mrf.mxu0
      %v3101 = vadd.f32 0.0, %v3100
      %3102 = vmatmul.f32.gmra.mxu0 %v2895
      %v3103 = vpop.f32.mrf.mxu0
      %v3104 = vadd.f32 0.0, %v3103
      %3105 = vmatmul.f32.gmra.mxu0 %v2898
      %v3106 = vpop.f32.mrf.mxu0
      %v3107 = vadd.f32 0.0, %v3106
      %3108 = vmatmul.f32.gmra.mxu0 %v2901
      %v3109 = vpop.f32.mrf.mxu0
      %v3110 = vadd.f32 0.0, %v3109
      %3111 = vmatmul.f32.gmra.mxu0 %v2904
      %v3112 = vpop.f32.mrf.mxu0
      %v3113 = vadd.f32 0.0, %v3112
      %3114 = vmatmul.f32.gmra.mxu0 %v2907
      %v3115 = vpop.f32.mrf.mxu0
      %v3116 = vadd.f32 0.0, %v3115
      %3117 = vmatmul.f32.gmra.mxu0 %v2910
      %v3118 = vpop.f32.mrf.mxu0
      %v3119 = vadd.f32 0.0, %v3118
      %3120 = vmatmul.f32.gmra.mxu0 %v2913
      %v3121 = vpop.f32.mrf.mxu0
      %v3122 = vadd.f32 0.0, %v3121
      %3123 = vmatmul.f32.gmra.mxu0 %v2916
      %v3124 = vpop.f32.mrf.mxu0
      %v3125 = vadd.f32 0.0, %v3124
      %3126 = vmatmul.f32.gmra.mxu0 %v2919
      %v3127 = vpop.f32.mrf.mxu0
      %v3128 = vadd.f32 0.0, %v3127
      %3129 = vmatmul.f32.gmra.mxu0 %v2922
      %v3130 = vpop.f32.mrf.mxu0
      %v3131 = vadd.f32 0.0, %v3130
      %3132 = vmatmul.f32.gmra.mxu0 %v2925
      %v3133 = vpop.f32.mrf.mxu0
      %v3134 = vadd.f32 0.0, %v3133
      %3135 = vmatmul.f32.gmra.mxu0 %v2928
      %v3136 = vpop.f32.mrf.mxu0
      %v3137 = vadd.f32 0.0, %v3136
      %3138 = vmatmul.f32.gmra.mxu0 %v2931
      %v3139 = vpop.f32.mrf.mxu0
      %v3140 = vadd.f32 0.0, %v3139
      %3141 = vmatmul.f32.gmra.mxu0 %v2934
      %v3142 = vpop.f32.mrf.mxu0
      %v3143 = vadd.f32 0.0, %v3142
      %3144 = vmatmul.f32.gmra.mxu0 %v2937
      %v3145 = vpop.f32.mrf.mxu0
      %v3146 = vadd.f32 0.0, %v3145
      %3147 = vmatmul.f32.gmra.mxu0 %v2940
      %v3148 = vpop.f32.mrf.mxu0
      %v3149 = vadd.f32 0.0, %v3148
      %3150 = vmatmul.f32.gmra.mxu0 %v2943
      %v3151 = vpop.f32.mrf.mxu0
      %v3152 = vadd.f32 0.0, %v3151
      %3153 = vmatmul.f32.gmra.mxu0 %v2946
      %v3154 = vpop.f32.mrf.mxu0
      %v3155 = vadd.f32 0.0, %v3154
      %3156 = vmatmul.f32.gmra.mxu0 %v2949
      %v3157 = vpop.f32.mrf.mxu0
      %v3158 = vadd.f32 0.0, %v3157
      %3159 = vmatmul.f32.gmra.mxu0 %v2952
      %v3160 = vpop.f32.mrf.mxu0
      %v3161 = vadd.f32 0.0, %v3160
      %3162 = vmatmul.f32.gmra.mxu0 %v2955
      %v3163 = vpop.f32.mrf.mxu0
      %v3164 = vadd.f32 0.0, %v3163
      %3165 = vmatmul.f32.gmra.mxu0 %v2958
      %v3166 = vpop.f32.mrf.mxu0
      %v3167 = vadd.f32 0.0, %v3166
      %3168 = vmatmul.f32.gmra.mxu0 %v2961
      %v3169 = vpop.f32.mrf.mxu0
      %v3170 = vadd.f32 0.0, %v3169
      %3171 = vmatmul.f32.gmra.mxu0 %v2964
      %v3172 = vpop.f32.mrf.mxu0
      %v3173 = vadd.f32 0.0, %v3172
      %3174 = vmatmul.f32.gmra.mxu0 %v2967
      %v3175 = vpop.f32.mrf.mxu0
      %v3176 = vadd.f32 0.0, %v3175
      %3177 = vmatmul.f32.gmra.mxu0 %v2970
      %v3178 = vpop.f32.mrf.mxu0
      %v3179 = vadd.f32 0.0, %v3178
      %3180 = vmatmul.f32.gmra.mxu0 %v2973
      %v3181 = vpop.f32.mrf.mxu0
      %v3182 = vadd.f32 0.0, %v3181
      %3183 = vmatmul.f32.gmra.mxu0 %v2976
      %v3184 = vpop.f32.mrf.mxu0
      %v3185 = vadd.f32 0.0, %v3184
      %3186 = vmatmul.f32.gmra.mxu0 %v2979
      %v3187 = vpop.f32.mrf.mxu0
      %v3188 = vadd.f32 0.0, %v3187
      %3189 = vmatmul.f32.gmra.mxu0 %v2982
      %v3190 = vpop.f32.mrf.mxu0
      %v3191 = vadd.f32 0.0, %v3190
      %3192 = vmatmul.f32.gmra.mxu0 %v2985
      %v3193 = vpop.f32.mrf.mxu0
      %v3194 = vadd.f32 0.0, %v3193
      %3195 = vmatmul.f32.gmra.mxu0 %v2988
      %v3196 = vpop.f32.mrf.mxu0
      %v3197 = vadd.f32 0.0, %v3196
      %3198 = vmatmul.f32.gmra.mxu0 %v2991
      %v3199 = vpop.f32.mrf.mxu0
      %v3200 = vadd.f32 0.0, %v3199
      %3201 = vmatmul.f32.gmra.mxu0 %v2994
      %v3202 = vpop.f32.mrf.mxu0
      %v3203 = vadd.f32 0.0, %v3202
      %3204 = vmatmul.f32.gmra.mxu0 %v2997
      %v3205 = vpop.f32.mrf.mxu0
      %v3206 = vadd.f32 0.0, %v3205
      %3207 = vmatmul.f32.gmra.mxu0 %v3000
      %v3208 = vpop.f32.mrf.mxu0
      %v3209 = vadd.f32 0.0, %v3208
      %3210 = vmatmul.f32.gmra.mxu0 %v3003
      %v3211 = vpop.f32.mrf.mxu0
      %v3212 = vadd.f32 0.0, %v3211
      %3213 = vmatmul.f32.gmra.mxu0 %v3006
      %v3214 = vpop.f32.mrf.mxu0
      %v3215 = vadd.f32 0.0, %v3214
      %3216 = vdwg.mxu0
      %v3281 = vrot.slane %v3026, 7
      %v3282 = vrot.slane %v3029, 7
      %v3283 = vsel %vm1777, %v3281, %v3282
      %v3284 = vrot.slane %v3032, 7
      %v3285 = vrot.slane %v3035, 7
      %v3286 = vsel %vm1777, %v3284, %v3285
      %v3287 = vrot.slane %v3038, 7
      %v3288 = vrot.slane %v3041, 7
      %v3289 = vsel %vm1777, %v3287, %v3288
      %v3290 = vrot.slane %v3044, 7
      %v3291 = vrot.slane %v3047, 7
      %v3292 = vsel %vm1777, %v3290, %v3291
      %v3293 = vrot.slane %v3050, 7
      %v3294 = vrot.slane %v3053, 7
      %v3295 = vsel %vm1777, %v3293, %v3294
      %v3296 = vrot.slane %v3056, 7
      %v3297 = vrot.slane %v3059, 7
      %v3298 = vsel %vm1777, %v3296, %v3297
      %v3299 = vrot.slane %v3062, 7
      %v3300 = vrot.slane %v3065, 7
      %v3301 = vsel %vm1777, %v3299, %v3300
      %v3302 = vrot.slane %v3068, 7
      %v3303 = vrot.slane %v3071, 7
      %v3304 = vsel %vm1777, %v3302, %v3303
      %v3305 = vrot.slane %v3074, 7
      %v3306 = vrot.slane %v3077, 7
      %v3307 = vsel %vm1777, %v3305, %v3306
      %v3308 = vrot.slane %v3080, 7
      %v3309 = vrot.slane %v3083, 7
      %v3310 = vsel %vm1777, %v3308, %v3309
      %v3311 = vrot.slane %v3086, 7
      %v3312 = vrot.slane %v3089, 7
      %v3313 = vsel %vm1777, %v3311, %v3312
      %v3314 = vrot.slane %v3092, 7
      %v3315 = vrot.slane %v3095, 7
      %v3316 = vsel %vm1777, %v3314, %v3315
      %v3317 = vrot.slane %v3098, 7
      %v3318 = vrot.slane %v3101, 7
      %v3319 = vsel %vm1777, %v3317, %v3318
      %v3320 = vrot.slane %v3104, 7
      %v3321 = vrot.slane %v3107, 7
      %v3322 = vsel %vm1777, %v3320, %v3321
      %v3323 = vrot.slane %v3110, 7
      %v3324 = vrot.slane %v3113, 7
      %v3325 = vsel %vm1777, %v3323, %v3324
      %v3326 = vrot.slane %v3116, 7
      %v3327 = vrot.slane %v3119, 7
      %v3328 = vsel %vm1777, %v3326, %v3327
      %v3329 = vrot.slane %v3122, 7
      %v3330 = vrot.slane %v3125, 7
      %v3331 = vsel %vm1777, %v3329, %v3330
      %v3332 = vrot.slane %v3128, 7
      %v3333 = vrot.slane %v3131, 7
      %v3334 = vsel %vm1777, %v3332, %v3333
      %v3335 = vrot.slane %v3134, 7
      %v3336 = vrot.slane %v3137, 7
      %v3337 = vsel %vm1777, %v3335, %v3336
      %v3338 = vrot.slane %v3140, 7
      %v3339 = vrot.slane %v3143, 7
      %v3340 = vsel %vm1777, %v3338, %v3339
      %v3341 = vrot.slane %v3146, 7
      %v3342 = vrot.slane %v3149, 7
      %v3343 = vsel %vm1777, %v3341, %v3342
      %v3344 = vrot.slane %v3152, 7
      %v3345 = vrot.slane %v3155, 7
      %v3346 = vsel %vm1777, %v3344, %v3345
      %v3347 = vrot.slane %v3158, 7
      %v3348 = vrot.slane %v3161, 7
      %v3349 = vsel %vm1777, %v3347, %v3348
      %v3350 = vrot.slane %v3164, 7
      %v3351 = vrot.slane %v3167, 7
      %v3352 = vsel %vm1777, %v3350, %v3351
      %v3353 = vrot.slane %v3170, 7
      %v3354 = vrot.slane %v3173, 7
      %v3355 = vsel %vm1777, %v3353, %v3354
      %v3356 = vrot.slane %v3176, 7
      %v3357 = vrot.slane %v3179, 7
      %v3358 = vsel %vm1777, %v3356, %v3357
      %v3359 = vrot.slane %v3182, 7
      %v3360 = vrot.slane %v3185, 7
      %v3361 = vsel %vm1777, %v3359, %v3360
      %v3362 = vrot.slane %v3188, 7
      %v3363 = vrot.slane %v3191, 7
      %v3364 = vsel %vm1777, %v3362, %v3363
      %v3365 = vrot.slane %v3194, 7
      %v3366 = vrot.slane %v3197, 7
      %v3367 = vsel %vm1777, %v3365, %v3366
      %v3368 = vrot.slane %v3200, 7
      %v3369 = vrot.slane %v3203, 7
      %v3370 = vsel %vm1777, %v3368, %v3369
      %v3371 = vrot.slane %v3206, 7
      %v3372 = vrot.slane %v3209, 7
      %v3373 = vsel %vm1777, %v3371, %v3372
      %v3374 = vrot.slane %v3212, 7
      %v3375 = vrot.slane %v3215, 7
      %v3376 = vsel %vm1777, %v3374, %v3375
      %v3409 = vsel %vm1777, 0.0, %v3281
      %v3410 = vsel %vm1777, 0.0, %v3284
      %v3411 = vsel %vm1777, 0.0, %v3287
      %v3412 = vsel %vm1777, 0.0, %v3290
      %v3413 = vsel %vm1777, 0.0, %v3293
      %v3414 = vsel %vm1777, 0.0, %v3296
      %v3415 = vsel %vm1777, 0.0, %v3299
      %v3416 = vsel %vm1777, 0.0, %v3302
      %v3417 = vsel %vm1777, 0.0, %v3305
      %v3418 = vsel %vm1777, 0.0, %v3308
      %v3419 = vsel %vm1777, 0.0, %v3311
      %v3420 = vsel %vm1777, 0.0, %v3314
      %v3421 = vsel %vm1777, 0.0, %v3317
      %v3422 = vsel %vm1777, 0.0, %v3320
      %v3423 = vsel %vm1777, 0.0, %v3323
      %v3424 = vsel %vm1777, 0.0, %v3326
      %v3425 = vsel %vm1777, 0.0, %v3329
      %v3426 = vsel %vm1777, 0.0, %v3332
      %v3427 = vsel %vm1777, 0.0, %v3335
      %v3428 = vsel %vm1777, 0.0, %v3338
      %v3429 = vsel %vm1777, 0.0, %v3341
      %v3430 = vsel %vm1777, 0.0, %v3344
      %v3431 = vsel %vm1777, 0.0, %v3347
      %v3432 = vsel %vm1777, 0.0, %v3350
      %v3433 = vsel %vm1777, 0.0, %v3353
      %v3434 = vsel %vm1777, 0.0, %v3356
      %v3435 = vsel %vm1777, 0.0, %v3359
      %v3436 = vsel %vm1777, 0.0, %v3362
      %v3437 = vsel %vm1777, 0.0, %v3365
      %v3438 = vsel %vm1777, 0.0, %v3368
      %v3439 = vsel %vm1777, 0.0, %v3371
      %v3440 = vsel %vm1777, 0.0, %v3374
      %3473 = vrot.lane.b32.xlu0 %v3409, 32
      %v3474 = vpop.permute.xlu0 %3473
      %3475 = vrot.lane.b32.xlu0 %v3283, 32
      %v3476 = vpop.permute.xlu0 %3475
      %3477 = vrot.lane.b32.xlu0 %v3410, 32
      %v3478 = vpop.permute.xlu0 %3477
      %3479 = vrot.lane.b32.xlu0 %v3286, 32
      %v3480 = vpop.permute.xlu0 %3479
      %3481 = vrot.lane.b32.xlu0 %v3411, 32
      %v3482 = vpop.permute.xlu0 %3481
      %3483 = vrot.lane.b32.xlu0 %v3289, 32
      %v3484 = vpop.permute.xlu0 %3483
      %3485 = vrot.lane.b32.xlu0 %v3412, 32
      %v3486 = vpop.permute.xlu0 %3485
      %3487 = vrot.lane.b32.xlu0 %v3292, 32
      %v3488 = vpop.permute.xlu0 %3487
      %3489 = vrot.lane.b32.xlu0 %v3413, 32
      %v3490 = vpop.permute.xlu0 %3489
      %3491 = vrot.lane.b32.xlu0 %v3295, 32
      %v3492 = vpop.permute.xlu0 %3491
      %3493 = vrot.lane.b32.xlu0 %v3414, 32
      %v3494 = vpop.permute.xlu0 %3493
      %3495 = vrot.lane.b32.xlu0 %v3298, 32
      %v3496 = vpop.permute.xlu0 %3495
      %3497 = vrot.lane.b32.xlu0 %v3415, 32
      %v3498 = vpop.permute.xlu0 %3497
      %3499 = vrot.lane.b32.xlu0 %v3301, 32
      %v3500 = vpop.permute.xlu0 %3499
      %3501 = vrot.lane.b32.xlu0 %v3416, 32
      %v3502 = vpop.permute.xlu0 %3501
      %3503 = vrot.lane.b32.xlu0 %v3304, 32
      %v3504 = vpop.permute.xlu0 %3503
      %3505 = vrot.lane.b32.xlu0 %v3417, 32
      %v3506 = vpop.permute.xlu0 %3505
      %3507 = vrot.lane.b32.xlu0 %v3307, 32
      %v3508 = vpop.permute.xlu0 %3507
      %3509 = vrot.lane.b32.xlu0 %v3418, 32
      %v3510 = vpop.permute.xlu0 %3509
      %3511 = vrot.lane.b32.xlu0 %v3310, 32
      %v3512 = vpop.permute.xlu0 %3511
      %3513 = vrot.lane.b32.xlu0 %v3419, 32
      %v3514 = vpop.permute.xlu0 %3513
      %3515 = vrot.lane.b32.xlu0 %v3313, 32
      %v3516 = vpop.permute.xlu0 %3515
      %3517 = vrot.lane.b32.xlu0 %v3420, 32
      %v3518 = vpop.permute.xlu0 %3517
      %3519 = vrot.lane.b32.xlu0 %v3316, 32
      %v3520 = vpop.permute.xlu0 %3519
      %3521 = vrot.lane.b32.xlu0 %v3421, 32
      %v3522 = vpop.permute.xlu0 %3521
      %3523 = vrot.lane.b32.xlu0 %v3319, 32
      %v3524 = vpop.permute.xlu0 %3523
      %3525 = vrot.lane.b32.xlu0 %v3422, 32
      %v3526 = vpop.permute.xlu0 %3525
      %3527 = vrot.lane.b32.xlu0 %v3322, 32
      %v3528 = vpop.permute.xlu0 %3527
      %3529 = vrot.lane.b32.xlu0 %v3423, 32
      %v3530 = vpop.permute.xlu0 %3529
      %3531 = vrot.lane.b32.xlu0 %v3325, 32
      %v3532 = vpop.permute.xlu0 %3531
      %3533 = vrot.lane.b32.xlu0 %v3424, 32
      %v3534 = vpop.permute.xlu0 %3533
      %3535 = vrot.lane.b32.xlu0 %v3328, 32
      %v3536 = vpop.permute.xlu0 %3535
      %3537 = vrot.lane.b32.xlu0 %v3425, 32
      %v3538 = vpop.permute.xlu0 %3537
      %3539 = vrot.lane.b32.xlu0 %v3331, 32
      %v3540 = vpop.permute.xlu0 %3539
      %3541 = vrot.lane.b32.xlu0 %v3426, 32
      %v3542 = vpop.permute.xlu0 %3541
      %3543 = vrot.lane.b32.xlu0 %v3334, 32
      %v3544 = vpop.permute.xlu0 %3543
      %3545 = vrot.lane.b32.xlu0 %v3427, 32
      %v3546 = vpop.permute.xlu0 %3545
      %3547 = vrot.lane.b32.xlu0 %v3337, 32
      %v3548 = vpop.permute.xlu0 %3547
      %3549 = vrot.lane.b32.xlu0 %v3428, 32
      %v3550 = vpop.permute.xlu0 %3549
      %3551 = vrot.lane.b32.xlu0 %v3340, 32
      %v3552 = vpop.permute.xlu0 %3551
      %3553 = vrot.lane.b32.xlu0 %v3429, 32
      %v3554 = vpop.permute.xlu0 %3553
      %3555 = vrot.lane.b32.xlu0 %v3343, 32
      %v3556 = vpop.permute.xlu0 %3555
      %3557 = vrot.lane.b32.xlu0 %v3430, 32
      %v3558 = vpop.permute.xlu0 %3557
      %3559 = vrot.lane.b32.xlu0 %v3346, 32
      %v3560 = vpop.permute.xlu0 %3559
      %3561 = vrot.lane.b32.xlu0 %v3431, 32
      %v3562 = vpop.permute.xlu0 %3561
      %3563 = vrot.lane.b32.xlu0 %v3349, 32
      %v3564 = vpop.permute.xlu0 %3563
      %3565 = vrot.lane.b32.xlu0 %v3432, 32
      %v3566 = vpop.permute.xlu0 %3565
      %3567 = vrot.lane.b32.xlu0 %v3352, 32
      %v3568 = vpop.permute.xlu0 %3567
      %3569 = vrot.lane.b32.xlu0 %v3433, 32
      %v3570 = vpop.permute.xlu0 %3569
      %3571 = vrot.lane.b32.xlu0 %v3355, 32
      %v3572 = vpop.permute.xlu0 %3571
      %3573 = vrot.lane.b32.xlu0 %v3434, 32
      %v3574 = vpop.permute.xlu0 %3573
      %3575 = vrot.lane.b32.xlu0 %v3358, 32
      %v3576 = vpop.permute.xlu0 %3575
      %3577 = vrot.lane.b32.xlu0 %v3435, 32
      %v3578 = vpop.permute.xlu0 %3577
      %3579 = vrot.lane.b32.xlu0 %v3361, 32
      %v3580 = vpop.permute.xlu0 %3579
      %3581 = vrot.lane.b32.xlu0 %v3436, 32
      %v3582 = vpop.permute.xlu0 %3581
      %3583 = vrot.lane.b32.xlu0 %v3364, 32
      %v3584 = vpop.permute.xlu0 %3583
      %3585 = vrot.lane.b32.xlu0 %v3437, 32
      %v3586 = vpop.permute.xlu0 %3585
      %3587 = vrot.lane.b32.xlu0 %v3367, 32
      %v3588 = vpop.permute.xlu0 %3587
      %3589 = vrot.lane.b32.xlu0 %v3438, 32
      %v3590 = vpop.permute.xlu0 %3589
      %3591 = vrot.lane.b32.xlu0 %v3370, 32
      %v3592 = vpop.permute.xlu0 %3591
      %3593 = vrot.lane.b32.xlu0 %v3439, 32
      %v3594 = vpop.permute.xlu0 %3593
      %3595 = vrot.lane.b32.xlu0 %v3373, 32
      %v3596 = vpop.permute.xlu0 %3595
      %3597 = vrot.lane.b32.xlu0 %v3440, 32
      %v3598 = vpop.permute.xlu0 %3597
      %3599 = vrot.lane.b32.xlu0 %v3376, 32
      %v3600 = vpop.permute.xlu0 %3599
      %v3665 = vadd.f32 %v3026, %v3474
      %v3666 = vadd.f32 %v3029, %v3476
      %v3667 = vadd.f32 %v3032, %v3478
      %v3668 = vadd.f32 %v3035, %v3480
      %v3669 = vadd.f32 %v3038, %v3482
      %v3670 = vadd.f32 %v3041, %v3484
      %v3671 = vadd.f32 %v3044, %v3486
      %v3672 = vadd.f32 %v3047, %v3488
      %v3673 = vadd.f32 %v3050, %v3490
      %v3674 = vadd.f32 %v3053, %v3492
      %v3675 = vadd.f32 %v3056, %v3494
      %v3676 = vadd.f32 %v3059, %v3496
      %v3677 = vadd.f32 %v3062, %v3498
      %v3678 = vadd.f32 %v3065, %v3500
      %v3679 = vadd.f32 %v3068, %v3502
      %v3680 = vadd.f32 %v3071, %v3504
      %v3681 = vadd.f32 %v3074, %v3506
      %v3682 = vadd.f32 %v3077, %v3508
      %v3683 = vadd.f32 %v3080, %v3510
      %v3684 = vadd.f32 %v3083, %v3512
      %v3685 = vadd.f32 %v3086, %v3514
      %v3686 = vadd.f32 %v3089, %v3516
      %v3687 = vadd.f32 %v3092, %v3518
      %v3688 = vadd.f32 %v3095, %v3520
      %v3689 = vadd.f32 %v3098, %v3522
      %v3690 = vadd.f32 %v3101, %v3524
      %v3691 = vadd.f32 %v3104, %v3526
      %v3692 = vadd.f32 %v3107, %v3528
      %v3693 = vadd.f32 %v3110, %v3530
      %v3694 = vadd.f32 %v3113, %v3532
      %v3695 = vadd.f32 %v3116, %v3534
      %v3696 = vadd.f32 %v3119, %v3536
      %v3697 = vadd.f32 %v3122, %v3538
      %v3698 = vadd.f32 %v3125, %v3540
      %v3699 = vadd.f32 %v3128, %v3542
      %v3700 = vadd.f32 %v3131, %v3544
      %v3701 = vadd.f32 %v3134, %v3546
      %v3702 = vadd.f32 %v3137, %v3548
      %v3703 = vadd.f32 %v3140, %v3550
      %v3704 = vadd.f32 %v3143, %v3552
      %v3705 = vadd.f32 %v3146, %v3554
      %v3706 = vadd.f32 %v3149, %v3556
      %v3707 = vadd.f32 %v3152, %v3558
      %v3708 = vadd.f32 %v3155, %v3560
      %v3709 = vadd.f32 %v3158, %v3562
      %v3710 = vadd.f32 %v3161, %v3564
      %v3711 = vadd.f32 %v3164, %v3566
      %v3712 = vadd.f32 %v3167, %v3568
      %v3713 = vadd.f32 %v3170, %v3570
      %v3714 = vadd.f32 %v3173, %v3572
      %v3715 = vadd.f32 %v3176, %v3574
      %v3716 = vadd.f32 %v3179, %v3576
      %v3717 = vadd.f32 %v3182, %v3578
      %v3718 = vadd.f32 %v3185, %v3580
      %v3719 = vadd.f32 %v3188, %v3582
      %v3720 = vadd.f32 %v3191, %v3584
      %v3721 = vadd.f32 %v3194, %v3586
      %v3722 = vadd.f32 %v3197, %v3588
      %v3723 = vadd.f32 %v3200, %v3590
      %v3724 = vadd.f32 %v3203, %v3592
      %v3725 = vadd.f32 %v3206, %v3594
      %v3726 = vadd.f32 %v3209, %v3596
      %v3727 = vadd.f32 %v3212, %v3598
      %v3728 = vadd.f32 %v3215, %v3600
      %v3729 = vrot.slane %v3026, 1
      %v3730 = vrot.slane %v3029, 1
      %v3731 = vsel %vm1975, %v3729, %v3730
      %v3732 = vrot.slane %v3032, 1
      %v3733 = vrot.slane %v3035, 1
      %v3734 = vsel %vm1975, %v3732, %v3733
      %v3735 = vrot.slane %v3038, 1
      %v3736 = vrot.slane %v3041, 1
      %v3737 = vsel %vm1975, %v3735, %v3736
      %v3738 = vrot.slane %v3044, 1
      %v3739 = vrot.slane %v3047, 1
      %v3740 = vsel %vm1975, %v3738, %v3739
      %v3741 = vrot.slane %v3050, 1
      %v3742 = vrot.slane %v3053, 1
      %v3743 = vsel %vm1975, %v3741, %v3742
      %v3744 = vrot.slane %v3056, 1
      %v3745 = vrot.slane %v3059, 1
      %v3746 = vsel %vm1975, %v3744, %v3745
      %v3747 = vrot.slane %v3062, 1
      %v3748 = vrot.slane %v3065, 1
      %v3749 = vsel %vm1975, %v3747, %v3748
      %v3750 = vrot.slane %v3068, 1
      %v3751 = vrot.slane %v3071, 1
      %v3752 = vsel %vm1975, %v3750, %v3751
      %v3753 = vrot.slane %v3074, 1
      %v3754 = vrot.slane %v3077, 1
      %v3755 = vsel %vm1975, %v3753, %v3754
      %v3756 = vrot.slane %v3080, 1
      %v3757 = vrot.slane %v3083, 1
      %v3758 = vsel %vm1975, %v3756, %v3757
      %v3759 = vrot.slane %v3086, 1
      %v3760 = vrot.slane %v3089, 1
      %v3761 = vsel %vm1975, %v3759, %v3760
      %v3762 = vrot.slane %v3092, 1
      %v3763 = vrot.slane %v3095, 1
      %v3764 = vsel %vm1975, %v3762, %v3763
      %v3765 = vrot.slane %v3098, 1
      %v3766 = vrot.slane %v3101, 1
      %v3767 = vsel %vm1975, %v3765, %v3766
      %v3768 = vrot.slane %v3104, 1
      %v3769 = vrot.slane %v3107, 1
      %v3770 = vsel %vm1975, %v3768, %v3769
      %v3771 = vrot.slane %v3110, 1
      %v3772 = vrot.slane %v3113, 1
      %v3773 = vsel %vm1975, %v3771, %v3772
      %v3774 = vrot.slane %v3116, 1
      %v3775 = vrot.slane %v3119, 1
      %v3776 = vsel %vm1975, %v3774, %v3775
      %v3777 = vrot.slane %v3122, 1
      %v3778 = vrot.slane %v3125, 1
      %v3779 = vsel %vm1975, %v3777, %v3778
      %v3780 = vrot.slane %v3128, 1
      %v3781 = vrot.slane %v3131, 1
      %v3782 = vsel %vm1975, %v3780, %v3781
      %v3783 = vrot.slane %v3134, 1
      %v3784 = vrot.slane %v3137, 1
      %v3785 = vsel %vm1975, %v3783, %v3784
      %v3786 = vrot.slane %v3140, 1
      %v3787 = vrot.slane %v3143, 1
      %v3788 = vsel %vm1975, %v3786, %v3787
      %v3789 = vrot.slane %v3146, 1
      %v3790 = vrot.slane %v3149, 1
      %v3791 = vsel %vm1975, %v3789, %v3790
      %v3792 = vrot.slane %v3152, 1
      %v3793 = vrot.slane %v3155, 1
      %v3794 = vsel %vm1975, %v3792, %v3793
      %v3795 = vrot.slane %v3158, 1
      %v3796 = vrot.slane %v3161, 1
      %v3797 = vsel %vm1975, %v3795, %v3796
      %v3798 = vrot.slane %v3164, 1
      %v3799 = vrot.slane %v3167, 1
      %v3800 = vsel %vm1975, %v3798, %v3799
      %v3801 = vrot.slane %v3170, 1
      %v3802 = vrot.slane %v3173, 1
      %v3803 = vsel %vm1975, %v3801, %v3802
      %v3804 = vrot.slane %v3176, 1
      %v3805 = vrot.slane %v3179, 1
      %v3806 = vsel %vm1975, %v3804, %v3805
      %v3807 = vrot.slane %v3182, 1
      %v3808 = vrot.slane %v3185, 1
      %v3809 = vsel %vm1975, %v3807, %v3808
      %v3810 = vrot.slane %v3188, 1
      %v3811 = vrot.slane %v3191, 1
      %v3812 = vsel %vm1975, %v3810, %v3811
      %v3813 = vrot.slane %v3194, 1
      %v3814 = vrot.slane %v3197, 1
      %v3815 = vsel %vm1975, %v3813, %v3814
      %v3816 = vrot.slane %v3200, 1
      %v3817 = vrot.slane %v3203, 1
      %v3818 = vsel %vm1975, %v3816, %v3817
      %v3819 = vrot.slane %v3206, 1
      %v3820 = vrot.slane %v3209, 1
      %v3821 = vsel %vm1975, %v3819, %v3820
      %v3822 = vrot.slane %v3212, 1
      %v3823 = vrot.slane %v3215, 1
      %v3824 = vsel %vm1975, %v3822, %v3823
      %v3857 = vsel %vm1975, %v3730, 0.0
      %v3858 = vsel %vm1975, %v3733, 0.0
      %v3859 = vsel %vm1975, %v3736, 0.0
      %v3860 = vsel %vm1975, %v3739, 0.0
      %v3861 = vsel %vm1975, %v3742, 0.0
      %v3862 = vsel %vm1975, %v3745, 0.0
      %v3863 = vsel %vm1975, %v3748, 0.0
      %v3864 = vsel %vm1975, %v3751, 0.0
      %v3865 = vsel %vm1975, %v3754, 0.0
      %v3866 = vsel %vm1975, %v3757, 0.0
      %v3867 = vsel %vm1975, %v3760, 0.0
      %v3868 = vsel %vm1975, %v3763, 0.0
      %v3869 = vsel %vm1975, %v3766, 0.0
      %v3870 = vsel %vm1975, %v3769, 0.0
      %v3871 = vsel %vm1975, %v3772, 0.0
      %v3872 = vsel %vm1975, %v3775, 0.0
      %v3873 = vsel %vm1975, %v3778, 0.0
      %v3874 = vsel %vm1975, %v3781, 0.0
      %v3875 = vsel %vm1975, %v3784, 0.0
      %v3876 = vsel %vm1975, %v3787, 0.0
      %v3877 = vsel %vm1975, %v3790, 0.0
      %v3878 = vsel %vm1975, %v3793, 0.0
      %v3879 = vsel %vm1975, %v3796, 0.0
      %v3880 = vsel %vm1975, %v3799, 0.0
      %v3881 = vsel %vm1975, %v3802, 0.0
      %v3882 = vsel %vm1975, %v3805, 0.0
      %v3883 = vsel %vm1975, %v3808, 0.0
      %v3884 = vsel %vm1975, %v3811, 0.0
      %v3885 = vsel %vm1975, %v3814, 0.0
      %v3886 = vsel %vm1975, %v3817, 0.0
      %v3887 = vsel %vm1975, %v3820, 0.0
      %v3888 = vsel %vm1975, %v3823, 0.0
      %3921 = vrot.lane.b32.xlu0 %v3731, 96
      %v3922 = vpop.permute.xlu0 %3921
      %3923 = vrot.lane.b32.xlu0 %v3857, 96
      %v3924 = vpop.permute.xlu0 %3923
      %3925 = vrot.lane.b32.xlu0 %v3734, 96
      %v3926 = vpop.permute.xlu0 %3925
      %3927 = vrot.lane.b32.xlu0 %v3858, 96
      %v3928 = vpop.permute.xlu0 %3927
      %3929 = vrot.lane.b32.xlu0 %v3737, 96
      %v3930 = vpop.permute.xlu0 %3929
      %3931 = vrot.lane.b32.xlu0 %v3859, 96
      %v3932 = vpop.permute.xlu0 %3931
      %3933 = vrot.lane.b32.xlu0 %v3740, 96
      %v3934 = vpop.permute.xlu0 %3933
      %3935 = vrot.lane.b32.xlu0 %v3860, 96
      %v3936 = vpop.permute.xlu0 %3935
      %3937 = vrot.lane.b32.xlu0 %v3743, 96
      %v3938 = vpop.permute.xlu0 %3937
      %3939 = vrot.lane.b32.xlu0 %v3861, 96
      %v3940 = vpop.permute.xlu0 %3939
      %3941 = vrot.lane.b32.xlu0 %v3746, 96
      %v3942 = vpop.permute.xlu0 %3941
      %3943 = vrot.lane.b32.xlu0 %v3862, 96
      %v3944 = vpop.permute.xlu0 %3943
      %3945 = vrot.lane.b32.xlu0 %v3749, 96
      %v3946 = vpop.permute.xlu0 %3945
      %3947 = vrot.lane.b32.xlu0 %v3863, 96
      %v3948 = vpop.permute.xlu0 %3947
      %3949 = vrot.lane.b32.xlu0 %v3752, 96
      %v3950 = vpop.permute.xlu0 %3949
      %3951 = vrot.lane.b32.xlu0 %v3864, 96
      %v3952 = vpop.permute.xlu0 %3951
      %3953 = vrot.lane.b32.xlu0 %v3755, 96
      %v3954 = vpop.permute.xlu0 %3953
      %3955 = vrot.lane.b32.xlu0 %v3865, 96
      %v3956 = vpop.permute.xlu0 %3955
      %3957 = vrot.lane.b32.xlu0 %v3758, 96
      %v3958 = vpop.permute.xlu0 %3957
      %3959 = vrot.lane.b32.xlu0 %v3866, 96
      %v3960 = vpop.permute.xlu0 %3959
      %3961 = vrot.lane.b32.xlu0 %v3761, 96
      %v3962 = vpop.permute.xlu0 %3961
      %3963 = vrot.lane.b32.xlu0 %v3867, 96
      %v3964 = vpop.permute.xlu0 %3963
      %3965 = vrot.lane.b32.xlu0 %v3764, 96
      %v3966 = vpop.permute.xlu0 %3965
      %3967 = vrot.lane.b32.xlu0 %v3868, 96
      %v3968 = vpop.permute.xlu0 %3967
      %3969 = vrot.lane.b32.xlu0 %v3767, 96
      %v3970 = vpop.permute.xlu0 %3969
      %3971 = vrot.lane.b32.xlu0 %v3869, 96
      %v3972 = vpop.permute.xlu0 %3971
      %3973 = vrot.lane.b32.xlu0 %v3770, 96
      %v3974 = vpop.permute.xlu0 %3973
      %3975 = vrot.lane.b32.xlu0 %v3870, 96
      %v3976 = vpop.permute.xlu0 %3975
      %3977 = vrot.lane.b32.xlu0 %v3773, 96
      %v3978 = vpop.permute.xlu0 %3977
      %3979 = vrot.lane.b32.xlu0 %v3871, 96
      %v3980 = vpop.permute.xlu0 %3979
      %3981 = vrot.lane.b32.xlu0 %v3776, 96
      %v3982 = vpop.permute.xlu0 %3981
      %3983 = vrot.lane.b32.xlu0 %v3872, 96
      %v3984 = vpop.permute.xlu0 %3983
      %3985 = vrot.lane.b32.xlu0 %v3779, 96
      %v3986 = vpop.permute.xlu0 %3985
      %3987 = vrot.lane.b32.xlu0 %v3873, 96
      %v3988 = vpop.permute.xlu0 %3987
      %3989 = vrot.lane.b32.xlu0 %v3782, 96
      %v3990 = vpop.permute.xlu0 %3989
      %3991 = vrot.lane.b32.xlu0 %v3874, 96
      %v3992 = vpop.permute.xlu0 %3991
      %3993 = vrot.lane.b32.xlu0 %v3785, 96
      %v3994 = vpop.permute.xlu0 %3993
      %3995 = vrot.lane.b32.xlu0 %v3875, 96
      %v3996 = vpop.permute.xlu0 %3995
      %3997 = vrot.lane.b32.xlu0 %v3788, 96
      %v3998 = vpop.permute.xlu0 %3997
      %3999 = vrot.lane.b32.xlu0 %v3876, 96
      %v4000 = vpop.permute.xlu0 %3999
      %4001 = vrot.lane.b32.xlu0 %v3791, 96
      %v4002 = vpop.permute.xlu0 %4001
      %4003 = vrot.lane.b32.xlu0 %v3877, 96
      %v4004 = vpop.permute.xlu0 %4003
      %4005 = vrot.lane.b32.xlu0 %v3794, 96
      %v4006 = vpop.permute.xlu0 %4005
      %4007 = vrot.lane.b32.xlu0 %v3878, 96
      %v4008 = vpop.permute.xlu0 %4007
      %4009 = vrot.lane.b32.xlu0 %v3797, 96
      %v4010 = vpop.permute.xlu0 %4009
      %4011 = vrot.lane.b32.xlu0 %v3879, 96
      %v4012 = vpop.permute.xlu0 %4011
      %4013 = vrot.lane.b32.xlu0 %v3800, 96
      %v4014 = vpop.permute.xlu0 %4013
      %4015 = vrot.lane.b32.xlu0 %v3880, 96
      %v4016 = vpop.permute.xlu0 %4015
      %4017 = vrot.lane.b32.xlu0 %v3803, 96
      %v4018 = vpop.permute.xlu0 %4017
      %4019 = vrot.lane.b32.xlu0 %v3881, 96
      %v4020 = vpop.permute.xlu0 %4019
      %4021 = vrot.lane.b32.xlu0 %v3806, 96
      %v4022 = vpop.permute.xlu0 %4021
      %4023 = vrot.lane.b32.xlu0 %v3882, 96
      %v4024 = vpop.permute.xlu0 %4023
      %4025 = vrot.lane.b32.xlu0 %v3809, 96
      %v4026 = vpop.permute.xlu0 %4025
      %4027 = vrot.lane.b32.xlu0 %v3883, 96
      %v4028 = vpop.permute.xlu0 %4027
      %4029 = vrot.lane.b32.xlu0 %v3812, 96
      %v4030 = vpop.permute.xlu0 %4029
      %4031 = vrot.lane.b32.xlu0 %v3884, 96
      %v4032 = vpop.permute.xlu0 %4031
      %4033 = vrot.lane.b32.xlu0 %v3815, 96
      %v4034 = vpop.permute.xlu0 %4033
      %4035 = vrot.lane.b32.xlu0 %v3885, 96
      %v4036 = vpop.permute.xlu0 %4035
      %4037 = vrot.lane.b32.xlu0 %v3818, 96
      %v4038 = vpop.permute.xlu0 %4037
      %4039 = vrot.lane.b32.xlu0 %v3886, 96
      %v4040 = vpop.permute.xlu0 %4039
      %4041 = vrot.lane.b32.xlu0 %v3821, 96
      %v4042 = vpop.permute.xlu0 %4041
      %4043 = vrot.lane.b32.xlu0 %v3887, 96
      %v4044 = vpop.permute.xlu0 %4043
      %4045 = vrot.lane.b32.xlu0 %v3824, 96
      %v4046 = vpop.permute.xlu0 %4045
      %4047 = vrot.lane.b32.xlu0 %v3888, 96
      %v4048 = vpop.permute.xlu0 %4047
      %v4113 = vadd.f32 %v3665, %v3922
      %v4114 = vadd.f32 %v3666, %v3924
      %v4115 = vadd.f32 %v3667, %v3926
      %v4116 = vadd.f32 %v3668, %v3928
      %v4117 = vadd.f32 %v3669, %v3930
      %v4118 = vadd.f32 %v3670, %v3932
      %v4119 = vadd.f32 %v3671, %v3934
      %v4120 = vadd.f32 %v3672, %v3936
      %v4121 = vadd.f32 %v3673, %v3938
      %v4122 = vadd.f32 %v3674, %v3940
      %v4123 = vadd.f32 %v3675, %v3942
      %v4124 = vadd.f32 %v3676, %v3944
      %v4125 = vadd.f32 %v3677, %v3946
      %v4126 = vadd.f32 %v3678, %v3948
      %v4127 = vadd.f32 %v3679, %v3950
      %v4128 = vadd.f32 %v3680, %v3952
      %v4129 = vadd.f32 %v3681, %v3954
      %v4130 = vadd.f32 %v3682, %v3956
      %v4131 = vadd.f32 %v3683, %v3958
      %v4132 = vadd.f32 %v3684, %v3960
      %v4133 = vadd.f32 %v3685, %v3962
      %v4134 = vadd.f32 %v3686, %v3964
      %v4135 = vadd.f32 %v3687, %v3966
      %v4136 = vadd.f32 %v3688, %v3968
      %v4137 = vadd.f32 %v3689, %v3970
      %v4138 = vadd.f32 %v3690, %v3972
      %v4139 = vadd.f32 %v3691, %v3974
      %v4140 = vadd.f32 %v3692, %v3976
      %v4141 = vadd.f32 %v3693, %v3978
      %v4142 = vadd.f32 %v3694, %v3980
      %v4143 = vadd.f32 %v3695, %v3982
      %v4144 = vadd.f32 %v3696, %v3984
      %v4145 = vadd.f32 %v3697, %v3986
      %v4146 = vadd.f32 %v3698, %v3988
      %v4147 = vadd.f32 %v3699, %v3990
      %v4148 = vadd.f32 %v3700, %v3992
      %v4149 = vadd.f32 %v3701, %v3994
      %v4150 = vadd.f32 %v3702, %v3996
      %v4151 = vadd.f32 %v3703, %v3998
      %v4152 = vadd.f32 %v3704, %v4000
      %v4153 = vadd.f32 %v3705, %v4002
      %v4154 = vadd.f32 %v3706, %v4004
      %v4155 = vadd.f32 %v3707, %v4006
      %v4156 = vadd.f32 %v3708, %v4008
      %v4157 = vadd.f32 %v3709, %v4010
      %v4158 = vadd.f32 %v3710, %v4012
      %v4159 = vadd.f32 %v3711, %v4014
      %v4160 = vadd.f32 %v3712, %v4016
      %v4161 = vadd.f32 %v3713, %v4018
      %v4162 = vadd.f32 %v3714, %v4020
      %v4163 = vadd.f32 %v3715, %v4022
      %v4164 = vadd.f32 %v3716, %v4024
      %v4165 = vadd.f32 %v3717, %v4026
      %v4166 = vadd.f32 %v3718, %v4028
      %v4167 = vadd.f32 %v3719, %v4030
      %v4168 = vadd.f32 %v3720, %v4032
      %v4169 = vadd.f32 %v3721, %v4034
      %v4170 = vadd.f32 %v3722, %v4036
      %v4171 = vadd.f32 %v3723, %v4038
      %v4172 = vadd.f32 %v3724, %v4040
      %v4173 = vadd.f32 %v3725, %v4042
      %v4174 = vadd.f32 %v3726, %v4044
      %v4175 = vadd.f32 %v3727, %v4046
      %v4176 = vadd.f32 %v3728, %v4048
      %v4178 = vperm.slane %v2244, 0
      %4179 = vrot.lane.b32.xlu0 %v4178, 32
      %v4180 = vpop.permute.xlu0 %4179
      %v4182 = vadd.f32 %v4113, %v4180
      %v4183 = vadd.f32 %v4114, %v4180
      %v4184 = vadd.f32 %v4115, %v4180
      %v4185 = vadd.f32 %v4116, %v4180
      %v4186 = vadd.f32 %v4117, %v4180
      %v4187 = vadd.f32 %v4118, %v4180
      %v4188 = vadd.f32 %v4119, %v4180
      %v4189 = vadd.f32 %v4120, %v4180
      %v4190 = vadd.f32 %v4121, %v4180
      %v4191 = vadd.f32 %v4122, %v4180
      %v4192 = vadd.f32 %v4123, %v4180
      %v4193 = vadd.f32 %v4124, %v4180
      %v4194 = vadd.f32 %v4125, %v4180
      %v4195 = vadd.f32 %v4126, %v4180
      %v4196 = vadd.f32 %v4127, %v4180
      %v4197 = vadd.f32 %v4128, %v4180
      %v4198 = vadd.f32 %v4129, %v4180
      %v4199 = vadd.f32 %v4130, %v4180
      %v4200 = vadd.f32 %v4131, %v4180
      %v4201 = vadd.f32 %v4132, %v4180
      %v4202 = vadd.f32 %v4133, %v4180
      %v4203 = vadd.f32 %v4134, %v4180
      %v4204 = vadd.f32 %v4135, %v4180
      %v4205 = vadd.f32 %v4136, %v4180
      %v4206 = vadd.f32 %v4137, %v4180
      %v4207 = vadd.f32 %v4138, %v4180
      %v4208 = vadd.f32 %v4139, %v4180
      %v4209 = vadd.f32 %v4140, %v4180
      %v4210 = vadd.f32 %v4141, %v4180
      %v4211 = vadd.f32 %v4142, %v4180
      %v4212 = vadd.f32 %v4143, %v4180
      %v4213 = vadd.f32 %v4144, %v4180
      %v4214 = vadd.f32 %v4145, %v4180
      %v4215 = vadd.f32 %v4146, %v4180
      %v4216 = vadd.f32 %v4147, %v4180
      %v4217 = vadd.f32 %v4148, %v4180
      %v4218 = vadd.f32 %v4149, %v4180
      %v4219 = vadd.f32 %v4150, %v4180
      %v4220 = vadd.f32 %v4151, %v4180
      %v4221 = vadd.f32 %v4152, %v4180
      %v4222 = vadd.f32 %v4153, %v4180
      %v4223 = vadd.f32 %v4154, %v4180
      %v4224 = vadd.f32 %v4155, %v4180
      %v4225 = vadd.f32 %v4156, %v4180
      %v4226 = vadd.f32 %v4157, %v4180
      %v4227 = vadd.f32 %v4158, %v4180
      %v4228 = vadd.f32 %v4159, %v4180
      %v4229 = vadd.f32 %v4160, %v4180
      %v4230 = vadd.f32 %v4161, %v4180
      %v4231 = vadd.f32 %v4162, %v4180
      %v4232 = vadd.f32 %v4163, %v4180
      %v4233 = vadd.f32 %v4164, %v4180
      %v4234 = vadd.f32 %v4165, %v4180
      %v4235 = vadd.f32 %v4166, %v4180
      %v4236 = vadd.f32 %v4167, %v4180
      %v4237 = vadd.f32 %v4168, %v4180
      %v4238 = vadd.f32 %v4169, %v4180
      %v4239 = vadd.f32 %v4170, %v4180
      %v4240 = vadd.f32 %v4171, %v4180
      %v4241 = vadd.f32 %v4172, %v4180
      %v4242 = vadd.f32 %v4173, %v4180
      %v4243 = vadd.f32 %v4174, %v4180
      %v4244 = vadd.f32 %v4175, %v4180
      %v4245 = vadd.f32 %v4176, %v4180
      %v4246 = vmax.f32 %v4182, 0.0
      %v4247 = vmax.f32 %v4183, 0.0
      %v4248 = vmax.f32 %v4184, 0.0
      %v4249 = vmax.f32 %v4185, 0.0
      %v4250 = vmax.f32 %v4186, 0.0
      %v4251 = vmax.f32 %v4187, 0.0
      %v4252 = vmax.f32 %v4188, 0.0
      %v4253 = vmax.f32 %v4189, 0.0
      %v4254 = vmax.f32 %v4190, 0.0
      %v4255 = vmax.f32 %v4191, 0.0
      %v4256 = vmax.f32 %v4192, 0.0
      %v4257 = vmax.f32 %v4193, 0.0
      %v4258 = vmax.f32 %v4194, 0.0
      %v4259 = vmax.f32 %v4195, 0.0
      %v4260 = vmax.f32 %v4196, 0.0
      %v4261 = vmax.f32 %v4197, 0.0
      %v4262 = vmax.f32 %v4198, 0.0
      %v4263 = vmax.f32 %v4199, 0.0
      %v4264 = vmax.f32 %v4200, 0.0
      %v4265 = vmax.f32 %v4201, 0.0
      %v4266 = vmax.f32 %v4202, 0.0
      %v4267 = vmax.f32 %v4203, 0.0
      %v4268 = vmax.f32 %v4204, 0.0
      %v4269 = vmax.f32 %v4205, 0.0
      %v4270 = vmax.f32 %v4206, 0.0
      %v4271 = vmax.f32 %v4207, 0.0
      %v4272 = vmax.f32 %v4208, 0.0
      %v4273 = vmax.f32 %v4209, 0.0
      %v4274 = vmax.f32 %v4210, 0.0
      %v4275 = vmax.f32 %v4211, 0.0
      %v4276 = vmax.f32 %v4212, 0.0
      %v4277 = vmax.f32 %v4213, 0.0
      %v4278 = vmax.f32 %v4214, 0.0
      %v4279 = vmax.f32 %v4215, 0.0
      %v4280 = vmax.f32 %v4216, 0.0
      %v4281 = vmax.f32 %v4217, 0.0
      %v4282 = vmax.f32 %v4218, 0.0
      %v4283 = vmax.f32 %v4219, 0.0
      %v4284 = vmax.f32 %v4220, 0.0
      %v4285 = vmax.f32 %v4221, 0.0
      %v4286 = vmax.f32 %v4222, 0.0
      %v4287 = vmax.f32 %v4223, 0.0
      %v4288 = vmax.f32 %v4224, 0.0
      %v4289 = vmax.f32 %v4225, 0.0
      %v4290 = vmax.f32 %v4226, 0.0
      %v4291 = vmax.f32 %v4227, 0.0
      %v4292 = vmax.f32 %v4228, 0.0
      %v4293 = vmax.f32 %v4229, 0.0
      %v4294 = vmax.f32 %v4230, 0.0
      %v4295 = vmax.f32 %v4231, 0.0
      %v4296 = vmax.f32 %v4232, 0.0
      %v4297 = vmax.f32 %v4233, 0.0
      %v4298 = vmax.f32 %v4234, 0.0
      %v4299 = vmax.f32 %v4235, 0.0
      %v4300 = vmax.f32 %v4236, 0.0
      %v4301 = vmax.f32 %v4237, 0.0
      %v4302 = vmax.f32 %v4238, 0.0
      %v4303 = vmax.f32 %v4239, 0.0
      %v4304 = vmax.f32 %v4240, 0.0
      %v4305 = vmax.f32 %v4241, 0.0
      %v4306 = vmax.f32 %v4242, 0.0
      %v4307 = vmax.f32 %v4243, 0.0
      %v4308 = vmax.f32 %v4244, 0.0
      %v4309 = vmax.f32 %v4245, 0.0
      %v4310 = vld [vmem:[%s3] sm:$0xff]
      %v4311 = vld [vmem:[%s3 + $0x8] sm:$0xff]
      %v4312 = vld [vmem:[%s3 + $0x10] sm:$0xff]
      %v4313 = vld [vmem:[%s3 + $0x18] sm:$0xff]
      %v4314 = vld [vmem:[%s3 + $0x20] sm:$0xff]
      %v4315 = vld [vmem:[%s3 + $0x28] sm:$0xff]
      %v4316 = vld [vmem:[%s3 + $0x30] sm:$0xff]
      %v4317 = vld [vmem:[%s3 + $0x38] sm:$0xff]
      %v4318 = vld [vmem:[%s3 + $0x40] sm:$0xff]
      %v4319 = vld [vmem:[%s3 + $0x48] sm:$0xff]
      %v4320 = vld [vmem:[%s3 + $0x50] sm:$0xff]
      %v4321 = vld [vmem:[%s3 + $0x58] sm:$0xff]
      %v4322 = vld [vmem:[%s4] sm:$0x1]
      %4383 = vrot.lane.b32.xlu0 %v4246, 96
      %v4384 = vpop.permute.xlu0 %4383
      %4385 = vrot.lane.b32.xlu0 %v4247, 96
      %v4386 = vpop.permute.xlu0 %4385
      %4387 = vrot.lane.b32.xlu0 %v4248, 96
      %v4388 = vpop.permute.xlu0 %4387
      %4389 = vrot.lane.b32.xlu0 %v4249, 96
      %v4390 = vpop.permute.xlu0 %4389
      %4391 = vrot.lane.b32.xlu0 %v4250, 96
      %v4392 = vpop.permute.xlu0 %4391
      %4393 = vrot.lane.b32.xlu0 %v4251, 96
      %v4394 = vpop.permute.xlu0 %4393
      %4395 = vrot.lane.b32.xlu0 %v4252, 96
      %v4396 = vpop.permute.xlu0 %4395
      %4397 = vrot.lane.b32.xlu0 %v4253, 96
      %v4398 = vpop.permute.xlu0 %4397
      %4399 = vrot.lane.b32.xlu0 %v4254, 96
      %v4400 = vpop.permute.xlu0 %4399
      %4401 = vrot.lane.b32.xlu0 %v4255, 96
      %v4402 = vpop.permute.xlu0 %4401
      %4403 = vrot.lane.b32.xlu0 %v4256, 96
      %v4404 = vpop.permute.xlu0 %4403
      %4405 = vrot.lane.b32.xlu0 %v4257, 96
      %v4406 = vpop.permute.xlu0 %4405
      %4407 = vrot.lane.b32.xlu0 %v4258, 96
      %v4408 = vpop.permute.xlu0 %4407
      %4409 = vrot.lane.b32.xlu0 %v4259, 96
      %v4410 = vpop.permute.xlu0 %4409
      %4411 = vrot.lane.b32.xlu0 %v4260, 96
      %v4412 = vpop.permute.xlu0 %4411
      %4413 = vrot.lane.b32.xlu0 %v4261, 96
      %v4414 = vpop.permute.xlu0 %4413
      %4415 = vrot.lane.b32.xlu0 %v4262, 96
      %v4416 = vpop.permute.xlu0 %4415
      %4417 = vrot.lane.b32.xlu0 %v4263, 96
      %v4418 = vpop.permute.xlu0 %4417
      %4419 = vrot.lane.b32.xlu0 %v4264, 96
      %v4420 = vpop.permute.xlu0 %4419
      %4421 = vrot.lane.b32.xlu0 %v4265, 96
      %v4422 = vpop.permute.xlu0 %4421
      %4423 = vrot.lane.b32.xlu0 %v4266, 96
      %v4424 = vpop.permute.xlu0 %4423
      %4425 = vrot.lane.b32.xlu0 %v4267, 96
      %v4426 = vpop.permute.xlu0 %4425
      %4427 = vrot.lane.b32.xlu0 %v4268, 96
      %v4428 = vpop.permute.xlu0 %4427
      %4429 = vrot.lane.b32.xlu0 %v4269, 96
      %v4430 = vpop.permute.xlu0 %4429
      %4431 = vrot.lane.b32.xlu0 %v4270, 96
      %v4432 = vpop.permute.xlu0 %4431
      %4433 = vrot.lane.b32.xlu0 %v4271, 96
      %v4434 = vpop.permute.xlu0 %4433
      %4435 = vrot.lane.b32.xlu0 %v4272, 96
      %v4436 = vpop.permute.xlu0 %4435
      %4437 = vrot.lane.b32.xlu0 %v4273, 96
      %v4438 = vpop.permute.xlu0 %4437
      %4439 = vrot.lane.b32.xlu0 %v4274, 96
      %v4440 = vpop.permute.xlu0 %4439
      %4441 = vrot.lane.b32.xlu0 %v4275, 96
      %v4442 = vpop.permute.xlu0 %4441
      %4443 = vrot.lane.b32.xlu0 %v4278, 96
      %v4444 = vpop.permute.xlu0 %4443
      %4445 = vrot.lane.b32.xlu0 %v4279, 96
      %v4446 = vpop.permute.xlu0 %4445
      %4447 = vrot.lane.b32.xlu0 %v4280, 96
      %v4448 = vpop.permute.xlu0 %4447
      %4449 = vrot.lane.b32.xlu0 %v4281, 96
      %v4450 = vpop.permute.xlu0 %4449
      %4451 = vrot.lane.b32.xlu0 %v4282, 96
      %v4452 = vpop.permute.xlu0 %4451
      %4453 = vrot.lane.b32.xlu0 %v4283, 96
      %v4454 = vpop.permute.xlu0 %4453
      %4455 = vrot.lane.b32.xlu0 %v4284, 96
      %v4456 = vpop.permute.xlu0 %4455
      %4457 = vrot.lane.b32.xlu0 %v4285, 96
      %v4458 = vpop.permute.xlu0 %4457
      %4459 = vrot.lane.b32.xlu0 %v4286, 96
      %v4460 = vpop.permute.xlu0 %4459
      %4461 = vrot.lane.b32.xlu0 %v4287, 96
      %v4462 = vpop.permute.xlu0 %4461
      %4463 = vrot.lane.b32.xlu0 %v4288, 96
      %v4464 = vpop.permute.xlu0 %4463
      %4465 = vrot.lane.b32.xlu0 %v4289, 96
      %v4466 = vpop.permute.xlu0 %4465
      %4467 = vrot.lane.b32.xlu0 %v4290, 96
      %v4468 = vpop.permute.xlu0 %4467
      %4469 = vrot.lane.b32.xlu0 %v4291, 96
      %v4470 = vpop.permute.xlu0 %4469
      %4471 = vrot.lane.b32.xlu0 %v4292, 96
      %v4472 = vpop.permute.xlu0 %4471
      %4473 = vrot.lane.b32.xlu0 %v4293, 96
      %v4474 = vpop.permute.xlu0 %4473
      %4475 = vrot.lane.b32.xlu0 %v4294, 96
      %v4476 = vpop.permute.xlu0 %4475
      %4477 = vrot.lane.b32.xlu0 %v4295, 96
      %v4478 = vpop.permute.xlu0 %4477
      %4479 = vrot.lane.b32.xlu0 %v4296, 96
      %v4480 = vpop.permute.xlu0 %4479
      %4481 = vrot.lane.b32.xlu0 %v4297, 96
      %v4482 = vpop.permute.xlu0 %4481
      %4483 = vrot.lane.b32.xlu0 %v4298, 96
      %v4484 = vpop.permute.xlu0 %4483
      %4485 = vrot.lane.b32.xlu0 %v4299, 96
      %v4486 = vpop.permute.xlu0 %4485
      %4487 = vrot.lane.b32.xlu0 %v4300, 96
      %v4488 = vpop.permute.xlu0 %4487
      %4489 = vrot.lane.b32.xlu0 %v4301, 96
      %v4490 = vpop.permute.xlu0 %4489
      %4491 = vrot.lane.b32.xlu0 %v4302, 96
      %v4492 = vpop.permute.xlu0 %4491
      %4493 = vrot.lane.b32.xlu0 %v4303, 96
      %v4494 = vpop.permute.xlu0 %4493
      %4495 = vrot.lane.b32.xlu0 %v4304, 96
      %v4496 = vpop.permute.xlu0 %4495
      %4497 = vrot.lane.b32.xlu0 %v4305, 96
      %v4498 = vpop.permute.xlu0 %4497
      %4499 = vrot.lane.b32.xlu0 %v4306, 96
      %v4500 = vpop.permute.xlu0 %4499
      %4501 = vrot.lane.b32.xlu0 %v4307, 96
      %v4502 = vpop.permute.xlu0 %4501
      %4567 = vrot.lane.b32.xlu0 %v4248, 32
      %v4568 = vpop.permute.xlu0 %4567
      %4569 = vrot.lane.b32.xlu0 %v4249, 32
      %v4570 = vpop.permute.xlu0 %4569
      %4571 = vrot.lane.b32.xlu0 %v4250, 32
      %v4572 = vpop.permute.xlu0 %4571
      %4573 = vrot.lane.b32.xlu0 %v4251, 32
      %v4574 = vpop.permute.xlu0 %4573
      %4575 = vrot.lane.b32.xlu0 %v4252, 32
      %v4576 = vpop.permute.xlu0 %4575
      %4577 = vrot.lane.b32.xlu0 %v4253, 32
      %v4578 = vpop.permute.xlu0 %4577
      %4579 = vrot.lane.b32.xlu0 %v4254, 32
      %v4580 = vpop.permute.xlu0 %4579
      %4581 = vrot.lane.b32.xlu0 %v4255, 32
      %v4582 = vpop.permute.xlu0 %4581
      %4583 = vrot.lane.b32.xlu0 %v4256, 32
      %v4584 = vpop.permute.xlu0 %4583
      %4585 = vrot.lane.b32.xlu0 %v4257, 32
      %v4586 = vpop.permute.xlu0 %4585
      %4587 = vrot.lane.b32.xlu0 %v4258, 32
      %v4588 = vpop.permute.xlu0 %4587
      %4589 = vrot.lane.b32.xlu0 %v4259, 32
      %v4590 = vpop.permute.xlu0 %4589
      %4591 = vrot.lane.b32.xlu0 %v4260, 32
      %v4592 = vpop.permute.xlu0 %4591
      %4593 = vrot.lane.b32.xlu0 %v4261, 32
      %v4594 = vpop.permute.xlu0 %4593
      %4595 = vrot.lane.b32.xlu0 %v4262, 32
      %v4596 = vpop.permute.xlu0 %4595
      %4597 = vrot.lane.b32.xlu0 %v4263, 32
      %v4598 = vpop.permute.xlu0 %4597
      %4599 = vrot.lane.b32.xlu0 %v4264, 32
      %v4600 = vpop.permute.xlu0 %4599
      %4601 = vrot.lane.b32.xlu0 %v4265, 32
      %v4602 = vpop.permute.xlu0 %4601
      %4603 = vrot.lane.b32.xlu0 %v4266, 32
      %v4604 = vpop.permute.xlu0 %4603
      %4605 = vrot.lane.b32.xlu0 %v4267, 32
      %v4606 = vpop.permute.xlu0 %4605
      %4607 = vrot.lane.b32.xlu0 %v4268, 32
      %v4608 = vpop.permute.xlu0 %4607
      %4609 = vrot.lane.b32.xlu0 %v4269, 32
      %v4610 = vpop.permute.xlu0 %4609
      %4611 = vrot.lane.b32.xlu0 %v4270, 32
      %v4612 = vpop.permute.xlu0 %4611
      %4613 = vrot.lane.b32.xlu0 %v4271, 32
      %v4614 = vpop.permute.xlu0 %4613
      %4615 = vrot.lane.b32.xlu0 %v4272, 32
      %v4616 = vpop.permute.xlu0 %4615
      %4617 = vrot.lane.b32.xlu0 %v4273, 32
      %v4618 = vpop.permute.xlu0 %4617
      %4619 = vrot.lane.b32.xlu0 %v4274, 32
      %v4620 = vpop.permute.xlu0 %4619
      %4621 = vrot.lane.b32.xlu0 %v4275, 32
      %v4622 = vpop.permute.xlu0 %4621
      %4623 = vrot.lane.b32.xlu0 %v4276, 32
      %v4624 = vpop.permute.xlu0 %4623
      %4625 = vrot.lane.b32.xlu0 %v4277, 32
      %v4626 = vpop.permute.xlu0 %4625
      %4627 = vrot.lane.b32.xlu0 0.0, 32
      %v4628 = vpop.permute.xlu0 %4627
      %4629 = vrot.lane.b32.xlu0 %v4280, 32
      %v4630 = vpop.permute.xlu0 %4629
      %4631 = vrot.lane.b32.xlu0 %v4281, 32
      %v4632 = vpop.permute.xlu0 %4631
      %4633 = vrot.lane.b32.xlu0 %v4282, 32
      %v4634 = vpop.permute.xlu0 %4633
      %4635 = vrot.lane.b32.xlu0 %v4283, 32
      %v4636 = vpop.permute.xlu0 %4635
      %4637 = vrot.lane.b32.xlu0 %v4284, 32
      %v4638 = vpop.permute.xlu0 %4637
      %4639 = vrot.lane.b32.xlu0 %v4285, 32
      %v4640 = vpop.permute.xlu0 %4639
      %4641 = vrot.lane.b32.xlu0 %v4286, 32
      %v4642 = vpop.permute.xlu0 %4641
      %4643 = vrot.lane.b32.xlu0 %v4287, 32
      %v4644 = vpop.permute.xlu0 %4643
      %4645 = vrot.lane.b32.xlu0 %v4288, 32
      %v4646 = vpop.permute.xlu0 %4645
      %4647 = vrot.lane.b32.xlu0 %v4289, 32
      %v4648 = vpop.permute.xlu0 %4647
      %4649 = vrot.lane.b32.xlu0 %v4290, 32
      %v4650 = vpop.permute.xlu0 %4649
      %4651 = vrot.lane.b32.xlu0 %v4291, 32
      %v4652 = vpop.permute.xlu0 %4651
      %4653 = vrot.lane.b32.xlu0 %v4292, 32
      %v4654 = vpop.permute.xlu0 %4653
      %4655 = vrot.lane.b32.xlu0 %v4293, 32
      %v4656 = vpop.permute.xlu0 %4655
      %4657 = vrot.lane.b32.xlu0 %v4294, 32
      %v4658 = vpop.permute.xlu0 %4657
      %4659 = vrot.lane.b32.xlu0 %v4295, 32
      %v4660 = vpop.permute.xlu0 %4659
      %4661 = vrot.lane.b32.xlu0 %v4296, 32
      %v4662 = vpop.permute.xlu0 %4661
      %4663 = vrot.lane.b32.xlu0 %v4297, 32
      %v4664 = vpop.permute.xlu0 %4663
      %4665 = vrot.lane.b32.xlu0 %v4298, 32
      %v4666 = vpop.permute.xlu0 %4665
      %4667 = vrot.lane.b32.xlu0 %v4299, 32
      %v4668 = vpop.permute.xlu0 %4667
      %4669 = vrot.lane.b32.xlu0 %v4300, 32
      %v4670 = vpop.permute.xlu0 %4669
      %4671 = vrot.lane.b32.xlu0 %v4301, 32
      %v4672 = vpop.permute.xlu0 %4671
      %4673 = vrot.lane.b32.xlu0 %v4302, 32
      %v4674 = vpop.permute.xlu0 %4673
      %4675 = vrot.lane.b32.xlu0 %v4303, 32
      %v4676 = vpop.permute.xlu0 %4675
      %4677 = vrot.lane.b32.xlu0 %v4304, 32
      %v4678 = vpop.permute.xlu0 %4677
      %4679 = vrot.lane.b32.xlu0 %v4305, 32
      %v4680 = vpop.permute.xlu0 %4679
      %4681 = vrot.lane.b32.xlu0 %v4306, 32
      %v4682 = vpop.permute.xlu0 %4681
      %4683 = vrot.lane.b32.xlu0 %v4307, 32
      %v4684 = vpop.permute.xlu0 %4683
      %4685 = vrot.lane.b32.xlu0 %v4308, 32
      %v4686 = vpop.permute.xlu0 %4685
      %4687 = vrot.lane.b32.xlu0 %v4309, 32
      %v4688 = vpop.permute.xlu0 %4687
      %v4750 = vsel %vm2685, 0.0, %v4246
      %v4751 = vsel %vm2685, 0.0, %v4247
      %v4752 = vsel %vm2685, %v4384, %v4248
      %v4753 = vsel %vm2685, %v4386, %v4249
      %v4754 = vsel %vm2685, %v4388, %v4250
      %v4755 = vsel %vm2685, %v4390, %v4251
      %v4756 = vsel %vm2685, %v4392, %v4252
      %v4757 = vsel %vm2685, %v4394, %v4253
      %v4758 = vsel %vm2685, %v4396, %v4254
      %v4759 = vsel %vm2685, %v4398, %v4255
      %v4760 = vsel %vm2685, %v4400, %v4256
      %v4761 = vsel %vm2685, %v4402, %v4257
      %v4762 = vsel %vm2685, %v4404, %v4258
      %v4763 = vsel %vm2685, %v4406, %v4259
      %v4764 = vsel %vm2685, %v4408, %v4260
      %v4765 = vsel %vm2685, %v4410, %v4261
      %v4766 = vsel %vm2685, %v4412, %v4262
      %v4767 = vsel %vm2685, %v4414, %v4263
      %v4768 = vsel %vm2685, %v4416, %v4264
      %v4769 = vsel %vm2685, %v4418, %v4265
      %v4770 = vsel %vm2685, %v4420, %v4266
      %v4771 = vsel %vm2685, %v4422, %v4267
      %v4772 = vsel %vm2685, %v4424, %v4268
      %v4773 = vsel %vm2685, %v4426, %v4269
      %v4774 = vsel %vm2685, %v4428, %v4270
      %v4775 = vsel %vm2685, %v4430, %v4271
      %v4776 = vsel %vm2685, %v4432, %v4272
      %v4777 = vsel %vm2685, %v4434, %v4273
      %v4778 = vsel %vm2685, %v4436, %v4274
      %v4779 = vsel %vm2685, %v4438, %v4275
      %v4780 = vsel %vm2685, %v4440, %v4276
      %v4781 = vsel %vm2685, %v4442, %v4277
      %v4782 = vsel %vm2685, 0.0, %v4278
      %v4783 = vsel %vm2685, 0.0, %v4279
      %v4784 = vsel %vm2685, %v4444, %v4280
      %v4785 = vsel %vm2685, %v4446, %v4281
      %v4786 = vsel %vm2685, %v4448, %v4282
      %v4787 = vsel %vm2685, %v4450, %v4283
      %v4788 = vsel %vm2685, %v4452, %v4284
      %v4789 = vsel %vm2685, %v4454, %v4285
      %v4790 = vsel %vm2685, %v4456, %v4286
      %v4791 = vsel %vm2685, %v4458, %v4287
      %v4792 = vsel %vm2685, %v4460, %v4288
      %v4793 = vsel %vm2685, %v4462, %v4289
      %v4794 = vsel %vm2685, %v4464, %v4290
      %v4795 = vsel %vm2685, %v4466, %v4291
      %v4796 = vsel %vm2685, %v4468, %v4292
      %v4797 = vsel %vm2685, %v4470, %v4293
      %v4798 = vsel %vm2685, %v4472, %v4294
      %v4799 = vsel %vm2685, %v4474, %v4295
      %v4800 = vsel %vm2685, %v4476, %v4296
      %v4801 = vsel %vm2685, %v4478, %v4297
      %v4802 = vsel %vm2685, %v4480, %v4298
      %v4803 = vsel %vm2685, %v4482, %v4299
      %v4804 = vsel %vm2685, %v4484, %v4300
      %v4805 = vsel %vm2685, %v4486, %v4301
      %v4806 = vsel %vm2685, %v4488, %v4302
      %v4807 = vsel %vm2685, %v4490, %v4303
      %v4808 = vsel %vm2685, %v4492, %v4304
      %v4809 = vsel %vm2685, %v4494, %v4305
      %v4810 = vsel %vm2685, %v4496, %v4306
      %v4811 = vsel %vm2685, %v4498, %v4307
      %v4812 = vsel %vm2685, %v4500, %v4308
      %v4813 = vsel %vm2685, %v4502, %v4309
      %v4814 = vsel %vm2750, %v4750, %v4568
      %v4815 = vsel %vm2750, %v4751, %v4570
      %v4816 = vsel %vm2750, %v4752, %v4572
      %v4817 = vsel %vm2750, %v4753, %v4574
      %v4818 = vsel %vm2750, %v4754, %v4576
      %v4819 = vsel %vm2750, %v4755, %v4578
      %v4820 = vsel %vm2750, %v4756, %v4580
      %v4821 = vsel %vm2750, %v4757, %v4582
      %v4822 = vsel %vm2750, %v4758, %v4584
      %v4823 = vsel %vm2750, %v4759, %v4586
      %v4824 = vsel %vm2750, %v4760, %v4588
      %v4825 = vsel %vm2750, %v4761, %v4590
      %v4826 = vsel %vm2750, %v4762, %v4592
      %v4827 = vsel %vm2750, %v4763, %v4594
      %v4828 = vsel %vm2750, %v4764, %v4596
      %v4829 = vsel %vm2750, %v4765, %v4598
      %v4830 = vsel %vm2750, %v4766, %v4600
      %v4831 = vsel %vm2750, %v4767, %v4602
      %v4832 = vsel %vm2750, %v4768, %v4604
      %v4833 = vsel %vm2750, %v4769, %v4606
      %v4834 = vsel %vm2750, %v4770, %v4608
      %v4835 = vsel %vm2750, %v4771, %v4610
      %v4836 = vsel %vm2750, %v4772, %v4612
      %v4837 = vsel %vm2750, %v4773, %v4614
      %v4838 = vsel %vm2750, %v4774, %v4616
      %v4839 = vsel %vm2750, %v4775, %v4618
      %v4840 = vsel %vm2750, %v4776, %v4620
      %v4841 = vsel %vm2750, %v4777, %v4622
      %v4842 = vsel %vm2750, %v4778, %v4624
      %v4843 = vsel %vm2750, %v4779, %v4626
      %v4844 = vsel %vm2750, %v4780, %v4628
      %v4845 = vsel %vm2750, %v4781, %v4628
      %v4846 = vsel %vm2750, %v4782, %v4630
      %v4847 = vsel %vm2750, %v4783, %v4632
      %v4848 = vsel %vm2750, %v4784, %v4634
      %v4849 = vsel %vm2750, %v4785, %v4636
      %v4850 = vsel %vm2750, %v4786, %v4638
      %v4851 = vsel %vm2750, %v4787, %v4640
      %v4852 = vsel %vm2750, %v4788, %v4642
      %v4853 = vsel %vm2750, %v4789, %v4644
      %v4854 = vsel %vm2750, %v4790, %v4646
      %v4855 = vsel %vm2750, %v4791, %v4648
      %v4856 = vsel %vm2750, %v4792, %v4650
      %v4857 = vsel %vm2750, %v4793, %v4652
      %v4858 = vsel %vm2750, %v4794, %v4654
      %v4859 = vsel %vm2750, %v4795, %v4656
      %v4860 = vsel %vm2750, %v4796, %v4658
      %v4861 = vsel %vm2750, %v4797, %v4660
      %v4862 = vsel %vm2750, %v4798, %v4662
      %v4863 = vsel %vm2750, %v4799, %v4664
      %v4864 = vsel %vm2750, %v4800, %v4666
      %v4865 = vsel %vm2750, %v4801, %v4668
      %v4866 = vsel %vm2750, %v4802, %v4670
      %v4867 = vsel %vm2750, %v4803, %v4672
      %v4868 = vsel %vm2750, %v4804, %v4674
      %v4869 = vsel %vm2750, %v4805, %v4676
      %v4870 = vsel %vm2750, %v4806, %v4678
      %v4871 = vsel %vm2750, %v4807, %v4680
      %v4872 = vsel %vm2750, %v4808, %v4682
      %v4873 = vsel %vm2750, %v4809, %v4684
      %v4874 = vsel %vm2750, %v4810, %v4686
      %v4875 = vsel %vm2750, %v4811, %v4688
      %v4876 = vsel %vm2750, %v4812, %v4628
      %v4877 = vsel %vm2750, %v4813, %v4628
      %v4879 = vsel %vm2815, %v4814, 0
      %v4882 = vsel %vm2815, %v4815, 0
      %v4885 = vsel %vm2815, %v4816, 0
      %v4888 = vsel %vm2815, %v4817, 0
      %v4891 = vsel %vm2815, %v4818, 0
      %v4894 = vsel %vm2815, %v4819, 0
      %v4897 = vsel %vm2815, %v4820, 0
      %v4900 = vsel %vm2815, %v4821, 0
      %v4903 = vsel %vm2815, %v4822, 0
      %v4906 = vsel %vm2815, %v4823, 0
      %v4909 = vsel %vm2815, %v4824, 0
      %v4912 = vsel %vm2815, %v4825, 0
      %v4915 = vsel %vm2815, %v4826, 0
      %v4918 = vsel %vm2815, %v4827, 0
      %v4921 = vsel %vm2815, %v4828, 0
      %v4924 = vsel %vm2815, %v4829, 0
      %v4927 = vsel %vm2815, %v4830, 0
      %v4930 = vsel %vm2815, %v4831, 0
      %v4933 = vsel %vm2815, %v4832, 0
      %v4936 = vsel %vm2815, %v4833, 0
      %v4939 = vsel %vm2815, %v4834, 0
      %v4942 = vsel %vm2815, %v4835, 0
      %v4945 = vsel %vm2815, %v4836, 0
      %v4948 = vsel %vm2815, %v4837, 0
      %v4951 = vsel %vm2815, %v4838, 0
      %v4954 = vsel %vm2815, %v4839, 0
      %v4957 = vsel %vm2815, %v4840, 0
      %v4960 = vsel %vm2815, %v4841, 0
      %v4963 = vsel %vm2815, %v4842, 0
      %v4966 = vsel %vm2815, %v4843, 0
      %v4969 = vsel %vm2815, %v4844, 0
      %v4972 = vsel %vm2815, %v4845, 0
      %v4975 = vsel %vm2815, %v4846, 0
      %v4978 = vsel %vm2815, %v4847, 0
      %v4981 = vsel %vm2815, %v4848, 0
      %v4984 = vsel %vm2815, %v4849, 0
      %v4987 = vsel %vm2815, %v4850, 0
      %v4990 = vsel %vm2815, %v4851, 0
      %v4993 = vsel %vm2815, %v4852, 0
      %v4996 = vsel %vm2815, %v4853, 0
      %v4999 = vsel %vm2815, %v4854, 0
      %v5002 = vsel %vm2815, %v4855, 0
      %v5005 = vsel %vm2815, %v4856, 0
      %v5008 = vsel %vm2815, %v4857, 0
      %v5011 = vsel %vm2815, %v4858, 0
      %v5014 = vsel %vm2815, %v4859, 0
      %v5017 = vsel %vm2815, %v4860, 0
      %v5020 = vsel %vm2815, %v4861, 0
      %v5023 = vsel %vm2815, %v4862, 0
      %v5026 = vsel %vm2815, %v4863, 0
      %v5029 = vsel %vm2815, %v4864, 0
      %v5032 = vsel %vm2815, %v4865, 0
      %v5035 = vsel %vm2815, %v4866, 0
      %v5038 = vsel %vm2815, %v4867, 0
      %v5041 = vsel %vm2815, %v4868, 0
      %v5044 = vsel %vm2815, %v4869, 0
      %v5047 = vsel %vm2815, %v4870, 0
      %v5050 = vsel %vm2815, %v4871, 0
      %v5053 = vsel %vm2815, %v4872, 0
      %v5056 = vsel %vm2815, %v4873, 0
      %v5059 = vsel %vm2815, %v4874, 0
      %v5062 = vsel %vm2815, %v4875, 0
      %v5065 = vsel %vm2815, %v4876, 0
      %v5068 = vsel %vm2815, %v4877, 0
      %5070 = vmatpush.msra.mxu0 0.0
      %5071 = vmatpush.msra.mxu0 0.0
      %5072 = vmatpush.msra.mxu0 0.0
      %5073 = vmatpush.msra.mxu0 0.0
      %5074 = vmatpush.msra.mxu0 %v4321
      %5075 = vmatpush.msra.mxu0 %v4320
      %5076 = vmatpush.msra.mxu0 %v4319
      %5077 = vmatpush.msra.mxu0 %v4318
      %5078 = vmatpush.msra.mxu0 %v4317
      %5079 = vmatpush.msra.mxu0 %v4316
      %5080 = vmatpush.msra.mxu0 %v4315
      %5081 = vmatpush.msra.mxu0 %v4314
      %5082 = vmatpush.msra.mxu0 %v4313
      %5083 = vmatpush.msra.mxu0 %v4312
      %5084 = vmatpush.msra.mxu0 %v4311
      %5085 = vmatpush.msra.mxu0 %v4310
      %5086 = vmatmul.f32.gmra.mxu0 %v4879
      %v5087 = vpop.f32.mrf.mxu0
      %v5088 = vadd.f32 0.0, %v5087
      %5089 = vmatmul.f32.gmra.mxu0 %v4882
      %v5090 = vpop.f32.mrf.mxu0
      %v5091 = vadd.f32 0.0, %v5090
      %5092 = vmatmul.f32.gmra.mxu0 %v4885
      %v5093 = vpop.f32.mrf.mxu0
      %v5094 = vadd.f32 0.0, %v5093
      %5095 = vmatmul.f32.gmra.mxu0 %v4888
      %v5096 = vpop.f32.mrf.mxu0
      %v5097 = vadd.f32 0.0, %v5096
      %5098 = vmatmul.f32.gmra.mxu0 %v4891
      %v5099 = vpop.f32.mrf.mxu0
      %v5100 = vadd.f32 0.0, %v5099
      %5101 = vmatmul.f32.gmra.mxu0 %v4894
      %v5102 = vpop.f32.mrf.mxu0
      %v5103 = vadd.f32 0.0, %v5102
      %5104 = vmatmul.f32.gmra.mxu0 %v4897
      %v5105 = vpop.f32.mrf.mxu0
      %v5106 = vadd.f32 0.0, %v5105
      %5107 = vmatmul.f32.gmra.mxu0 %v4900
      %v5108 = vpop.f32.mrf.mxu0
      %v5109 = vadd.f32 0.0, %v5108
      %5110 = vmatmul.f32.gmra.mxu0 %v4903
      %v5111 = vpop.f32.mrf.mxu0
      %v5112 = vadd.f32 0.0, %v5111
      %5113 = vmatmul.f32.gmra.mxu0 %v4906
      %v5114 = vpop.f32.mrf.mxu0
      %v5115 = vadd.f32 0.0, %v5114
      %5116 = vmatmul.f32.gmra.mxu0 %v4909
      %v5117 = vpop.f32.mrf.mxu0
      %v5118 = vadd.f32 0.0, %v5117
      %5119 = vmatmul.f32.gmra.mxu0 %v4912
      %v5120 = vpop.f32.mrf.mxu0
      %v5121 = vadd.f32 0.0, %v5120
      %5122 = vmatmul.f32.gmra.mxu0 %v4915
      %v5123 = vpop.f32.mrf.mxu0
      %v5124 = vadd.f32 0.0, %v5123
      %5125 = vmatmul.f32.gmra.mxu0 %v4918
      %v5126 = vpop.f32.mrf.mxu0
      %v5127 = vadd.f32 0.0, %v5126
      %5128 = vmatmul.f32.gmra.mxu0 %v4921
      %v5129 = vpop.f32.mrf.mxu0
      %v5130 = vadd.f32 0.0, %v5129
      %5131 = vmatmul.f32.gmra.mxu0 %v4924
      %v5132 = vpop.f32.mrf.mxu0
      %v5133 = vadd.f32 0.0, %v5132
      %5134 = vmatmul.f32.gmra.mxu0 %v4927
      %v5135 = vpop.f32.mrf.mxu0
      %v5136 = vadd.f32 0.0, %v5135
      %5137 = vmatmul.f32.gmra.mxu0 %v4930
      %v5138 = vpop.f32.mrf.mxu0
      %v5139 = vadd.f32 0.0, %v5138
      %5140 = vmatmul.f32.gmra.mxu0 %v4933
      %v5141 = vpop.f32.mrf.mxu0
      %v5142 = vadd.f32 0.0, %v5141
      %5143 = vmatmul.f32.gmra.mxu0 %v4936
      %v5144 = vpop.f32.mrf.mxu0
      %v5145 = vadd.f32 0.0, %v5144
      %5146 = vmatmul.f32.gmra.mxu0 %v4939
      %v5147 = vpop.f32.mrf.mxu0
      %v5148 = vadd.f32 0.0, %v5147
      %5149 = vmatmul.f32.gmra.mxu0 %v4942
      %v5150 = vpop.f32.mrf.mxu0
      %v5151 = vadd.f32 0.0, %v5150
      %5152 = vmatmul.f32.gmra.mxu0 %v4945
      %v5153 = vpop.f32.mrf.mxu0
      %v5154 = vadd.f32 0.0, %v5153
      %5155 = vmatmul.f32.gmra.mxu0 %v4948
      %v5156 = vpop.f32.mrf.mxu0
      %v5157 = vadd.f32 0.0, %v5156
      %5158 = vmatmul.f32.gmra.mxu0 %v4951
      %v5159 = vpop.f32.mrf.mxu0
      %v5160 = vadd.f32 0.0, %v5159
      %5161 = vmatmul.f32.gmra.mxu0 %v4954
      %v5162 = vpop.f32.mrf.mxu0
      %v5163 = vadd.f32 0.0, %v5162
      %5164 = vmatmul.f32.gmra.mxu0 %v4957
      %v5165 = vpop.f32.mrf.mxu0
      %v5166 = vadd.f32 0.0, %v5165
      %5167 = vmatmul.f32.gmra.mxu0 %v4960
      %v5168 = vpop.f32.mrf.mxu0
      %v5169 = vadd.f32 0.0, %v5168
      %5170 = vmatmul.f32.gmra.mxu0 %v4963
      %v5171 = vpop.f32.mrf.mxu0
      %v5172 = vadd.f32 0.0, %v5171
      %5173 = vmatmul.f32.gmra.mxu0 %v4966
      %v5174 = vpop.f32.mrf.mxu0
      %v5175 = vadd.f32 0.0, %v5174
      %5176 = vmatmul.f32.gmra.mxu0 %v4969
      %v5177 = vpop.f32.mrf.mxu0
      %v5178 = vadd.f32 0.0, %v5177
      %5179 = vmatmul.f32.gmra.mxu0 %v4972
      %v5180 = vpop.f32.mrf.mxu0
      %v5181 = vadd.f32 0.0, %v5180
      %5182 = vmatmul.f32.gmra.mxu0 %v4975
      %v5183 = vpop.f32.mrf.mxu0
      %v5184 = vadd.f32 0.0, %v5183
      %5185 = vmatmul.f32.gmra.mxu0 %v4978
      %v5186 = vpop.f32.mrf.mxu0
      %v5187 = vadd.f32 0.0, %v5186
      %5188 = vmatmul.f32.gmra.mxu0 %v4981
      %v5189 = vpop.f32.mrf.mxu0
      %v5190 = vadd.f32 0.0, %v5189
      %5191 = vmatmul.f32.gmra.mxu0 %v4984
      %v5192 = vpop.f32.mrf.mxu0
      %v5193 = vadd.f32 0.0, %v5192
      %5194 = vmatmul.f32.gmra.mxu0 %v4987
      %v5195 = vpop.f32.mrf.mxu0
      %v5196 = vadd.f32 0.0, %v5195
      %5197 = vmatmul.f32.gmra.mxu0 %v4990
      %v5198 = vpop.f32.mrf.mxu0
      %v5199 = vadd.f32 0.0, %v5198
      %5200 = vmatmul.f32.gmra.mxu0 %v4993
      %v5201 = vpop.f32.mrf.mxu0
      %v5202 = vadd.f32 0.0, %v5201
      %5203 = vmatmul.f32.gmra.mxu0 %v4996
      %v5204 = vpop.f32.mrf.mxu0
      %v5205 = vadd.f32 0.0, %v5204
      %5206 = vmatmul.f32.gmra.mxu0 %v4999
      %v5207 = vpop.f32.mrf.mxu0
      %v5208 = vadd.f32 0.0, %v5207
      %5209 = vmatmul.f32.gmra.mxu0 %v5002
      %v5210 = vpop.f32.mrf.mxu0
      %v5211 = vadd.f32 0.0, %v5210
      %5212 = vmatmul.f32.gmra.mxu0 %v5005
      %v5213 = vpop.f32.mrf.mxu0
      %v5214 = vadd.f32 0.0, %v5213
      %5215 = vmatmul.f32.gmra.mxu0 %v5008
      %v5216 = vpop.f32.mrf.mxu0
      %v5217 = vadd.f32 0.0, %v5216
      %5218 = vmatmul.f32.gmra.mxu0 %v5011
      %v5219 = vpop.f32.mrf.mxu0
      %v5220 = vadd.f32 0.0, %v5219
      %5221 = vmatmul.f32.gmra.mxu0 %v5014
      %v5222 = vpop.f32.mrf.mxu0
      %v5223 = vadd.f32 0.0, %v5222
      %5224 = vmatmul.f32.gmra.mxu0 %v5017
      %v5225 = vpop.f32.mrf.mxu0
      %v5226 = vadd.f32 0.0, %v5225
      %5227 = vmatmul.f32.gmra.mxu0 %v5020
      %v5228 = vpop.f32.mrf.mxu0
      %v5229 = vadd.f32 0.0, %v5228
      %5230 = vmatmul.f32.gmra.mxu0 %v5023
      %v5231 = vpop.f32.mrf.mxu0
      %v5232 = vadd.f32 0.0, %v5231
      %5233 = vmatmul.f32.gmra.mxu0 %v5026
      %v5234 = vpop.f32.mrf.mxu0
      %v5235 = vadd.f32 0.0, %v5234
      %5236 = vmatmul.f32.gmra.mxu0 %v5029
      %v5237 = vpop.f32.mrf.mxu0
      %v5238 = vadd.f32 0.0, %v5237
      %5239 = vmatmul.f32.gmra.mxu0 %v5032
      %v5240 = vpop.f32.mrf.mxu0
      %v5241 = vadd.f32 0.0, %v5240
      %5242 = vmatmul.f32.gmra.mxu0 %v5035
      %v5243 = vpop.f32.mrf.mxu0
      %v5244 = vadd.f32 0.0, %v5243
      %5245 = vmatmul.f32.gmra.mxu0 %v5038
      %v5246 = vpop.f32.mrf.mxu0
      %v5247 = vadd.f32 0.0, %v5246
      %5248 = vmatmul.f32.gmra.mxu0 %v5041
      %v5249 = vpop.f32.mrf.mxu0
      %v5250 = vadd.f32 0.0, %v5249
      %5251 = vmatmul.f32.gmra.mxu0 %v5044
      %v5252 = vpop.f32.mrf.mxu0
      %v5253 = vadd.f32 0.0, %v5252
      %5254 = vmatmul.f32.gmra.mxu0 %v5047
      %v5255 = vpop.f32.mrf.mxu0
      %v5256 = vadd.f32 0.0, %v5255
      %5257 = vmatmul.f32.gmra.mxu0 %v5050
      %v5258 = vpop.f32.mrf.mxu0
      %v5259 = vadd.f32 0.0, %v5258
      %5260 = vmatmul.f32.gmra.mxu0 %v5053
      %v5261 = vpop.f32.mrf.mxu0
      %v5262 = vadd.f32 0.0, %v5261
      %5263 = vmatmul.f32.gmra.mxu0 %v5056
      %v5264 = vpop.f32.mrf.mxu0
      %v5265 = vadd.f32 0.0, %v5264
      %5266 = vmatmul.f32.gmra.mxu0 %v5059
      %v5267 = vpop.f32.mrf.mxu0
      %v5268 = vadd.f32 0.0, %v5267
      %5269 = vmatmul.f32.gmra.mxu0 %v5062
      %v5270 = vpop.f32.mrf.mxu0
      %v5271 = vadd.f32 0.0, %v5270
      %5272 = vmatmul.f32.gmra.mxu0 %v5065
      %v5273 = vpop.f32.mrf.mxu0
      %v5274 = vadd.f32 0.0, %v5273
      %5275 = vmatmul.f32.gmra.mxu0 %v5068
      %v5276 = vpop.f32.mrf.mxu0
      %v5277 = vadd.f32 0.0, %v5276
      %5278 = vdwg.mxu0
      %v5343 = vrot.slane %v5088, 7
      %v5344 = vrot.slane %v5091, 7
      %v5345 = vsel %vm1777, %v5343, %v5344
      %v5346 = vrot.slane %v5094, 7
      %v5347 = vrot.slane %v5097, 7
      %v5348 = vsel %vm1777, %v5346, %v5347
      %v5349 = vrot.slane %v5100, 7
      %v5350 = vrot.slane %v5103, 7
      %v5351 = vsel %vm1777, %v5349, %v5350
      %v5352 = vrot.slane %v5106, 7
      %v5353 = vrot.slane %v5109, 7
      %v5354 = vsel %vm1777, %v5352, %v5353
      %v5355 = vrot.slane %v5112, 7
      %v5356 = vrot.slane %v5115, 7
      %v5357 = vsel %vm1777, %v5355, %v5356
      %v5358 = vrot.slane %v5118, 7
      %v5359 = vrot.slane %v5121, 7
      %v5360 = vsel %vm1777, %v5358, %v5359
      %v5361 = vrot.slane %v5124, 7
      %v5362 = vrot.slane %v5127, 7
      %v5363 = vsel %vm1777, %v5361, %v5362
      %v5364 = vrot.slane %v5130, 7
      %v5365 = vrot.slane %v5133, 7
      %v5366 = vsel %vm1777, %v5364, %v5365
      %v5367 = vrot.slane %v5136, 7
      %v5368 = vrot.slane %v5139, 7
      %v5369 = vsel %vm1777, %v5367, %v5368
      %v5370 = vrot.slane %v5142, 7
      %v5371 = vrot.slane %v5145, 7
      %v5372 = vsel %vm1777, %v5370, %v5371
      %v5373 = vrot.slane %v5148, 7
      %v5374 = vrot.slane %v5151, 7
      %v5375 = vsel %vm1777, %v5373, %v5374
      %v5376 = vrot.slane %v5154, 7
      %v5377 = vrot.slane %v5157, 7
      %v5378 = vsel %vm1777, %v5376, %v5377
      %v5379 = vrot.slane %v5160, 7
      %v5380 = vrot.slane %v5163, 7
      %v5381 = vsel %vm1777, %v5379, %v5380
      %v5382 = vrot.slane %v5166, 7
      %v5383 = vrot.slane %v5169, 7
      %v5384 = vsel %vm1777, %v5382, %v5383
      %v5385 = vrot.slane %v5172, 7
      %v5386 = vrot.slane %v5175, 7
      %v5387 = vsel %vm1777, %v5385, %v5386
      %v5388 = vrot.slane %v5178, 7
      %v5389 = vrot.slane %v5181, 7
      %v5390 = vsel %vm1777, %v5388, %v5389
      %v5391 = vrot.slane %v5184, 7
      %v5392 = vrot.slane %v5187, 7
      %v5393 = vsel %vm1777, %v5391, %v5392
      %v5394 = vrot.slane %v5190, 7
      %v5395 = vrot.slane %v5193, 7
      %v5396 = vsel %vm1777, %v5394, %v5395
      %v5397 = vrot.slane %v5196, 7
      %v5398 = vrot.slane %v5199, 7
      %v5399 = vsel %vm1777, %v5397, %v5398
      %v5400 = vrot.slane %v5202, 7
      %v5401 = vrot.slane %v5205, 7
      %v5402 = vsel %vm1777, %v5400, %v5401
      %v5403 = vrot.slane %v5208, 7
      %v5404 = vrot.slane %v5211, 7
      %v5405 = vsel %vm1777, %v5403, %v5404
      %v5406 = vrot.slane %v5214, 7
      %v5407 = vrot.slane %v5217, 7
      %v5408 = vsel %vm1777, %v5406, %v5407
      %v5409 = vrot.slane %v5220, 7
      %v5410 = vrot.slane %v5223, 7
      %v5411 = vsel %vm1777, %v5409, %v5410
      %v5412 = vrot.slane %v5226, 7
      %v5413 = vrot.slane %v5229, 7
      %v5414 = vsel %vm1777, %v5412, %v5413
      %v5415 = vrot.slane %v5232, 7
      %v5416 = vrot.slane %v5235, 7
      %v5417 = vsel %vm1777, %v5415, %v5416
      %v5418 = vrot.slane %v5238, 7
      %v5419 = vrot.slane %v5241, 7
      %v5420 = vsel %vm1777, %v5418, %v5419
      %v5421 = vrot.slane %v5244, 7
      %v5422 = vrot.slane %v5247, 7
      %v5423 = vsel %vm1777, %v5421, %v5422
      %v5424 = vrot.slane %v5250, 7
      %v5425 = vrot.slane %v5253, 7
      %v5426 = vsel %vm1777, %v5424, %v5425
      %v5427 = vrot.slane %v5256, 7
      %v5428 = vrot.slane %v5259, 7
      %v5429 = vsel %vm1777, %v5427, %v5428
      %v5430 = vrot.slane %v5262, 7
      %v5431 = vrot.slane %v5265, 7
      %v5432 = vsel %vm1777, %v5430, %v5431
      %v5433 = vrot.slane %v5268, 7
      %v5434 = vrot.slane %v5271, 7
      %v5435 = vsel %vm1777, %v5433, %v5434
      %v5436 = vrot.slane %v5274, 7
      %v5437 = vrot.slane %v5277, 7
      %v5438 = vsel %vm1777, %v5436, %v5437
      %v5471 = vsel %vm1777, 0.0, %v5343
      %v5472 = vsel %vm1777, 0.0, %v5346
      %v5473 = vsel %vm1777, 0.0, %v5349
      %v5474 = vsel %vm1777, 0.0, %v5352
      %v5475 = vsel %vm1777, 0.0, %v5355
      %v5476 = vsel %vm1777, 0.0, %v5358
      %v5477 = vsel %vm1777, 0.0, %v5361
      %v5478 = vsel %vm1777, 0.0, %v5364
      %v5479 = vsel %vm1777, 0.0, %v5367
      %v5480 = vsel %vm1777, 0.0, %v5370
      %v5481 = vsel %vm1777, 0.0, %v5373
      %v5482 = vsel %vm1777, 0.0, %v5376
      %v5483 = vsel %vm1777, 0.0, %v5379
      %v5484 = vsel %vm1777, 0.0, %v5382
      %v5485 = vsel %vm1777, 0.0, %v5385
      %v5486 = vsel %vm1777, 0.0, %v5388
      %v5487 = vsel %vm1777, 0.0, %v5391
      %v5488 = vsel %vm1777, 0.0, %v5394
      %v5489 = vsel %vm1777, 0.0, %v5397
      %v5490 = vsel %vm1777, 0.0, %v5400
      %v5491 = vsel %vm1777, 0.0, %v5403
      %v5492 = vsel %vm1777, 0.0, %v5406
      %v5493 = vsel %vm1777, 0.0, %v5409
      %v5494 = vsel %vm1777, 0.0, %v5412
      %v5495 = vsel %vm1777, 0.0, %v5415
      %v5496 = vsel %vm1777, 0.0, %v5418
      %v5497 = vsel %vm1777, 0.0, %v5421
      %v5498 = vsel %vm1777, 0.0, %v5424
      %v5499 = vsel %vm1777, 0.0, %v5427
      %v5500 = vsel %vm1777, 0.0, %v5430
      %v5501 = vsel %vm1777, 0.0, %v5433
      %v5502 = vsel %vm1777, 0.0, %v5436
      %5535 = vrot.lane.b32.xlu0 %v5471, 32
      %v5536 = vpop.permute.xlu0 %5535
      %5537 = vrot.lane.b32.xlu0 %v5345, 32
      %v5538 = vpop.permute.xlu0 %5537
      %5539 = vrot.lane.b32.xlu0 %v5472, 32
      %v5540 = vpop.permute.xlu0 %5539
      %5541 = vrot.lane.b32.xlu0 %v5348, 32
      %v5542 = vpop.permute.xlu0 %5541
      %5543 = vrot.lane.b32.xlu0 %v5473, 32
      %v5544 = vpop.permute.xlu0 %5543
      %5545 = vrot.lane.b32.xlu0 %v5351, 32
      %v5546 = vpop.permute.xlu0 %5545
      %5547 = vrot.lane.b32.xlu0 %v5474, 32
      %v5548 = vpop.permute.xlu0 %5547
      %5549 = vrot.lane.b32.xlu0 %v5354, 32
      %v5550 = vpop.permute.xlu0 %5549
      %5551 = vrot.lane.b32.xlu0 %v5475, 32
      %v5552 = vpop.permute.xlu0 %5551
      %5553 = vrot.lane.b32.xlu0 %v5357, 32
      %v5554 = vpop.permute.xlu0 %5553
      %5555 = vrot.lane.b32.xlu0 %v5476, 32
      %v5556 = vpop.permute.xlu0 %5555
      %5557 = vrot.lane.b32.xlu0 %v5360, 32
      %v5558 = vpop.permute.xlu0 %5557
      %5559 = vrot.lane.b32.xlu0 %v5477, 32
      %v5560 = vpop.permute.xlu0 %5559
      %5561 = vrot.lane.b32.xlu0 %v5363, 32
      %v5562 = vpop.permute.xlu0 %5561
      %5563 = vrot.lane.b32.xlu0 %v5478, 32
      %v5564 = vpop.permute.xlu0 %5563
      %5565 = vrot.lane.b32.xlu0 %v5366, 32
      %v5566 = vpop.permute.xlu0 %5565
      %5567 = vrot.lane.b32.xlu0 %v5479, 32
      %v5568 = vpop.permute.xlu0 %5567
      %5569 = vrot.lane.b32.xlu0 %v5369, 32
      %v5570 = vpop.permute.xlu0 %5569
      %5571 = vrot.lane.b32.xlu0 %v5480, 32
      %v5572 = vpop.permute.xlu0 %5571
      %5573 = vrot.lane.b32.xlu0 %v5372, 32
      %v5574 = vpop.permute.xlu0 %5573
      %5575 = vrot.lane.b32.xlu0 %v5481, 32
      %v5576 = vpop.permute.xlu0 %5575
      %5577 = vrot.lane.b32.xlu0 %v5375, 32
      %v5578 = vpop.permute.xlu0 %5577
      %5579 = vrot.lane.b32.xlu0 %v5482, 32
      %v5580 = vpop.permute.xlu0 %5579
      %5581 = vrot.lane.b32.xlu0 %v5378, 32
      %v5582 = vpop.permute.xlu0 %5581
      %5583 = vrot.lane.b32.xlu0 %v5483, 32
      %v5584 = vpop.permute.xlu0 %5583
      %5585 = vrot.lane.b32.xlu0 %v5381, 32
      %v5586 = vpop.permute.xlu0 %5585
      %5587 = vrot.lane.b32.xlu0 %v5484, 32
      %v5588 = vpop.permute.xlu0 %5587
      %5589 = vrot.lane.b32.xlu0 %v5384, 32
      %v5590 = vpop.permute.xlu0 %5589
      %5591 = vrot.lane.b32.xlu0 %v5485, 32
      %v5592 = vpop.permute.xlu0 %5591
      %5593 = vrot.lane.b32.xlu0 %v5387, 32
      %v5594 = vpop.permute.xlu0 %5593
      %5595 = vrot.lane.b32.xlu0 %v5486, 32
      %v5596 = vpop.permute.xlu0 %5595
      %5597 = vrot.lane.b32.xlu0 %v5390, 32
      %v5598 = vpop.permute.xlu0 %5597
      %5599 = vrot.lane.b32.xlu0 %v5487, 32
      %v5600 = vpop.permute.xlu0 %5599
      %5601 = vrot.lane.b32.xlu0 %v5393, 32
      %v5602 = vpop.permute.xlu0 %5601
      %5603 = vrot.lane.b32.xlu0 %v5488, 32
      %v5604 = vpop.permute.xlu0 %5603
      %5605 = vrot.lane.b32.xlu0 %v5396, 32
      %v5606 = vpop.permute.xlu0 %5605
      %5607 = vrot.lane.b32.xlu0 %v5489, 32
      %v5608 = vpop.permute.xlu0 %5607
      %5609 = vrot.lane.b32.xlu0 %v5399, 32
      %v5610 = vpop.permute.xlu0 %5609
      %5611 = vrot.lane.b32.xlu0 %v5490, 32
      %v5612 = vpop.permute.xlu0 %5611
      %5613 = vrot.lane.b32.xlu0 %v5402, 32
      %v5614 = vpop.permute.xlu0 %5613
      %5615 = vrot.lane.b32.xlu0 %v5491, 32
      %v5616 = vpop.permute.xlu0 %5615
      %5617 = vrot.lane.b32.xlu0 %v5405, 32
      %v5618 = vpop.permute.xlu0 %5617
      %5619 = vrot.lane.b32.xlu0 %v5492, 32
      %v5620 = vpop.permute.xlu0 %5619
      %5621 = vrot.lane.b32.xlu0 %v5408, 32
      %v5622 = vpop.permute.xlu0 %5621
      %5623 = vrot.lane.b32.xlu0 %v5493, 32
      %v5624 = vpop.permute.xlu0 %5623
      %5625 = vrot.lane.b32.xlu0 %v5411, 32
      %v5626 = vpop.permute.xlu0 %5625
      %5627 = vrot.lane.b32.xlu0 %v5494, 32
      %v5628 = vpop.permute.xlu0 %5627
      %5629 = vrot.lane.b32.xlu0 %v5414, 32
      %v5630 = vpop.permute.xlu0 %5629
      %5631 = vrot.lane.b32.xlu0 %v5495, 32
      %v5632 = vpop.permute.xlu0 %5631
      %5633 = vrot.lane.b32.xlu0 %v5417, 32
      %v5634 = vpop.permute.xlu0 %5633
      %5635 = vrot.lane.b32.xlu0 %v5496, 32
      %v5636 = vpop.permute.xlu0 %5635
      %5637 = vrot.lane.b32.xlu0 %v5420, 32
      %v5638 = vpop.permute.xlu0 %5637
      %5639 = vrot.lane.b32.xlu0 %v5497, 32
      %v5640 = vpop.permute.xlu0 %5639
      %5641 = vrot.lane.b32.xlu0 %v5423, 32
      %v5642 = vpop.permute.xlu0 %5641
      %5643 = vrot.lane.b32.xlu0 %v5498, 32
      %v5644 = vpop.permute.xlu0 %5643
      %5645 = vrot.lane.b32.xlu0 %v5426, 32
      %v5646 = vpop.permute.xlu0 %5645
      %5647 = vrot.lane.b32.xlu0 %v5499, 32
      %v5648 = vpop.permute.xlu0 %5647
      %5649 = vrot.lane.b32.xlu0 %v5429, 32
      %v5650 = vpop.permute.xlu0 %5649
      %5651 = vrot.lane.b32.xlu0 %v5500, 32
      %v5652 = vpop.permute.xlu0 %5651
      %5653 = vrot.lane.b32.xlu0 %v5432, 32
      %v5654 = vpop.permute.xlu0 %5653
      %5655 = vrot.lane.b32.xlu0 %v5501, 32
      %v5656 = vpop.permute.xlu0 %5655
      %5657 = vrot.lane.b32.xlu0 %v5435, 32
      %v5658 = vpop.permute.xlu0 %5657
      %5659 = vrot.lane.b32.xlu0 %v5502, 32
      %v5660 = vpop.permute.xlu0 %5659
      %5661 = vrot.lane.b32.xlu0 %v5438, 32
      %v5662 = vpop.permute.xlu0 %5661
      %v5727 = vadd.f32 %v5088, %v5536
      %v5728 = vadd.f32 %v5091, %v5538
      %v5729 = vadd.f32 %v5094, %v5540
      %v5730 = vadd.f32 %v5097, %v5542
      %v5731 = vadd.f32 %v5100, %v5544
      %v5732 = vadd.f32 %v5103, %v5546
      %v5733 = vadd.f32 %v5106, %v5548
      %v5734 = vadd.f32 %v5109, %v5550
      %v5735 = vadd.f32 %v5112, %v5552
      %v5736 = vadd.f32 %v5115, %v5554
      %v5737 = vadd.f32 %v5118, %v5556
      %v5738 = vadd.f32 %v5121, %v5558
      %v5739 = vadd.f32 %v5124, %v5560
      %v5740 = vadd.f32 %v5127, %v5562
      %v5741 = vadd.f32 %v5130, %v5564
      %v5742 = vadd.f32 %v5133, %v5566
      %v5743 = vadd.f32 %v5136, %v5568
      %v5744 = vadd.f32 %v5139, %v5570
      %v5745 = vadd.f32 %v5142, %v5572
      %v5746 = vadd.f32 %v5145, %v5574
      %v5747 = vadd.f32 %v5148, %v5576
      %v5748 = vadd.f32 %v5151, %v5578
      %v5749 = vadd.f32 %v5154, %v5580
      %v5750 = vadd.f32 %v5157, %v5582
      %v5751 = vadd.f32 %v5160, %v5584
      %v5752 = vadd.f32 %v5163, %v5586
      %v5753 = vadd.f32 %v5166, %v5588
      %v5754 = vadd.f32 %v5169, %v5590
      %v5755 = vadd.f32 %v5172, %v5592
      %v5756 = vadd.f32 %v5175, %v5594
      %v5757 = vadd.f32 %v5178, %v5596
      %v5758 = vadd.f32 %v5181, %v5598
      %v5759 = vadd.f32 %v5184, %v5600
      %v5760 = vadd.f32 %v5187, %v5602
      %v5761 = vadd.f32 %v5190, %v5604
      %v5762 = vadd.f32 %v5193, %v5606
      %v5763 = vadd.f32 %v5196, %v5608
      %v5764 = vadd.f32 %v5199, %v5610
      %v5765 = vadd.f32 %v5202, %v5612
      %v5766 = vadd.f32 %v5205, %v5614
      %v5767 = vadd.f32 %v5208, %v5616
      %v5768 = vadd.f32 %v5211, %v5618
      %v5769 = vadd.f32 %v5214, %v5620
      %v5770 = vadd.f32 %v5217, %v5622
      %v5771 = vadd.f32 %v5220, %v5624
      %v5772 = vadd.f32 %v5223, %v5626
      %v5773 = vadd.f32 %v5226, %v5628
      %v5774 = vadd.f32 %v5229, %v5630
      %v5775 = vadd.f32 %v5232, %v5632
      %v5776 = vadd.f32 %v5235, %v5634
      %v5777 = vadd.f32 %v5238, %v5636
      %v5778 = vadd.f32 %v5241, %v5638
      %v5779 = vadd.f32 %v5244, %v5640
      %v5780 = vadd.f32 %v5247, %v5642
      %v5781 = vadd.f32 %v5250, %v5644
      %v5782 = vadd.f32 %v5253, %v5646
      %v5783 = vadd.f32 %v5256, %v5648
      %v5784 = vadd.f32 %v5259, %v5650
      %v5785 = vadd.f32 %v5262, %v5652
      %v5786 = vadd.f32 %v5265, %v5654
      %v5787 = vadd.f32 %v5268, %v5656
      %v5788 = vadd.f32 %v5271, %v5658
      %v5789 = vadd.f32 %v5274, %v5660
      %v5790 = vadd.f32 %v5277, %v5662
      %v5791 = vrot.slane %v5088, 1
      %v5792 = vrot.slane %v5091, 1
      %v5793 = vsel %vm1975, %v5791, %v5792
      %v5794 = vrot.slane %v5094, 1
      %v5795 = vrot.slane %v5097, 1
      %v5796 = vsel %vm1975, %v5794, %v5795
      %v5797 = vrot.slane %v5100, 1
      %v5798 = vrot.slane %v5103, 1
      %v5799 = vsel %vm1975, %v5797, %v5798
      %v5800 = vrot.slane %v5106, 1
      %v5801 = vrot.slane %v5109, 1
      %v5802 = vsel %vm1975, %v5800, %v5801
      %v5803 = vrot.slane %v5112, 1
      %v5804 = vrot.slane %v5115, 1
      %v5805 = vsel %vm1975, %v5803, %v5804
      %v5806 = vrot.slane %v5118, 1
      %v5807 = vrot.slane %v5121, 1
      %v5808 = vsel %vm1975, %v5806, %v5807
      %v5809 = vrot.slane %v5124, 1
      %v5810 = vrot.slane %v5127, 1
      %v5811 = vsel %vm1975, %v5809, %v5810
      %v5812 = vrot.slane %v5130, 1
      %v5813 = vrot.slane %v5133, 1
      %v5814 = vsel %vm1975, %v5812, %v5813
      %v5815 = vrot.slane %v5136, 1
      %v5816 = vrot.slane %v5139, 1
      %v5817 = vsel %vm1975, %v5815, %v5816
      %v5818 = vrot.slane %v5142, 1
      %v5819 = vrot.slane %v5145, 1
      %v5820 = vsel %vm1975, %v5818, %v5819
      %v5821 = vrot.slane %v5148, 1
      %v5822 = vrot.slane %v5151, 1
      %v5823 = vsel %vm1975, %v5821, %v5822
      %v5824 = vrot.slane %v5154, 1
      %v5825 = vrot.slane %v5157, 1
      %v5826 = vsel %vm1975, %v5824, %v5825
      %v5827 = vrot.slane %v5160, 1
      %v5828 = vrot.slane %v5163, 1
      %v5829 = vsel %vm1975, %v5827, %v5828
      %v5830 = vrot.slane %v5166, 1
      %v5831 = vrot.slane %v5169, 1
      %v5832 = vsel %vm1975, %v5830, %v5831
      %v5833 = vrot.slane %v5172, 1
      %v5834 = vrot.slane %v5175, 1
      %v5835 = vsel %vm1975, %v5833, %v5834
      %v5836 = vrot.slane %v5178, 1
      %v5837 = vrot.slane %v5181, 1
      %v5838 = vsel %vm1975, %v5836, %v5837
      %v5839 = vrot.slane %v5184, 1
      %v5840 = vrot.slane %v5187, 1
      %v5841 = vsel %vm1975, %v5839, %v5840
      %v5842 = vrot.slane %v5190, 1
      %v5843 = vrot.slane %v5193, 1
      %v5844 = vsel %vm1975, %v5842, %v5843
      %v5845 = vrot.slane %v5196, 1
      %v5846 = vrot.slane %v5199, 1
      %v5847 = vsel %vm1975, %v5845, %v5846
      %v5848 = vrot.slane %v5202, 1
      %v5849 = vrot.slane %v5205, 1
      %v5850 = vsel %vm1975, %v5848, %v5849
      %v5851 = vrot.slane %v5208, 1
      %v5852 = vrot.slane %v5211, 1
      %v5853 = vsel %vm1975, %v5851, %v5852
      %v5854 = vrot.slane %v5214, 1
      %v5855 = vrot.slane %v5217, 1
      %v5856 = vsel %vm1975, %v5854, %v5855
      %v5857 = vrot.slane %v5220, 1
      %v5858 = vrot.slane %v5223, 1
      %v5859 = vsel %vm1975, %v5857, %v5858
      %v5860 = vrot.slane %v5226, 1
      %v5861 = vrot.slane %v5229, 1
      %v5862 = vsel %vm1975, %v5860, %v5861
      %v5863 = vrot.slane %v5232, 1
      %v5864 = vrot.slane %v5235, 1
      %v5865 = vsel %vm1975, %v5863, %v5864
      %v5866 = vrot.slane %v5238, 1
      %v5867 = vrot.slane %v5241, 1
      %v5868 = vsel %vm1975, %v5866, %v5867
      %v5869 = vrot.slane %v5244, 1
      %v5870 = vrot.slane %v5247, 1
      %v5871 = vsel %vm1975, %v5869, %v5870
      %v5872 = vrot.slane %v5250, 1
      %v5873 = vrot.slane %v5253, 1
      %v5874 = vsel %vm1975, %v5872, %v5873
      %v5875 = vrot.slane %v5256, 1
      %v5876 = vrot.slane %v5259, 1
      %v5877 = vsel %vm1975, %v5875, %v5876
      %v5878 = vrot.slane %v5262, 1
      %v5879 = vrot.slane %v5265, 1
      %v5880 = vsel %vm1975, %v5878, %v5879
      %v5881 = vrot.slane %v5268, 1
      %v5882 = vrot.slane %v5271, 1
      %v5883 = vsel %vm1975, %v5881, %v5882
      %v5884 = vrot.slane %v5274, 1
      %v5885 = vrot.slane %v5277, 1
      %v5886 = vsel %vm1975, %v5884, %v5885
      %v5919 = vsel %vm1975, %v5792, 0.0
      %v5920 = vsel %vm1975, %v5795, 0.0
      %v5921 = vsel %vm1975, %v5798, 0.0
      %v5922 = vsel %vm1975, %v5801, 0.0
      %v5923 = vsel %vm1975, %v5804, 0.0
      %v5924 = vsel %vm1975, %v5807, 0.0
      %v5925 = vsel %vm1975, %v5810, 0.0
      %v5926 = vsel %vm1975, %v5813, 0.0
      %v5927 = vsel %vm1975, %v5816, 0.0
      %v5928 = vsel %vm1975, %v5819, 0.0
      %v5929 = vsel %vm1975, %v5822, 0.0
      %v5930 = vsel %vm1975, %v5825, 0.0
      %v5931 = vsel %vm1975, %v5828, 0.0
      %v5932 = vsel %vm1975, %v5831, 0.0
      %v5933 = vsel %vm1975, %v5834, 0.0
      %v5934 = vsel %vm1975, %v5837, 0.0
      %v5935 = vsel %vm1975, %v5840, 0.0
      %v5936 = vsel %vm1975, %v5843, 0.0
      %v5937 = vsel %vm1975, %v5846, 0.0
      %v5938 = vsel %vm1975, %v5849, 0.0
      %v5939 = vsel %vm1975, %v5852, 0.0
      %v5940 = vsel %vm1975, %v5855, 0.0
      %v5941 = vsel %vm1975, %v5858, 0.0
      %v5942 = vsel %vm1975, %v5861, 0.0
      %v5943 = vsel %vm1975, %v5864, 0.0
      %v5944 = vsel %vm1975, %v5867, 0.0
      %v5945 = vsel %vm1975, %v5870, 0.0
      %v5946 = vsel %vm1975, %v5873, 0.0
      %v5947 = vsel %vm1975, %v5876, 0.0
      %v5948 = vsel %vm1975, %v5879, 0.0
      %v5949 = vsel %vm1975, %v5882, 0.0
      %v5950 = vsel %vm1975, %v5885, 0.0
      %5983 = vrot.lane.b32.xlu0 %v5793, 96
      %v5984 = vpop.permute.xlu0 %5983
      %5985 = vrot.lane.b32.xlu0 %v5919, 96
      %v5986 = vpop.permute.xlu0 %5985
      %5987 = vrot.lane.b32.xlu0 %v5796, 96
      %v5988 = vpop.permute.xlu0 %5987
      %5989 = vrot.lane.b32.xlu0 %v5920, 96
      %v5990 = vpop.permute.xlu0 %5989
      %5991 = vrot.lane.b32.xlu0 %v5799, 96
      %v5992 = vpop.permute.xlu0 %5991
      %5993 = vrot.lane.b32.xlu0 %v5921, 96
      %v5994 = vpop.permute.xlu0 %5993
      %5995 = vrot.lane.b32.xlu0 %v5802, 96
      %v5996 = vpop.permute.xlu0 %5995
      %5997 = vrot.lane.b32.xlu0 %v5922, 96
      %v5998 = vpop.permute.xlu0 %5997
      %5999 = vrot.lane.b32.xlu0 %v5805, 96
      %v6000 = vpop.permute.xlu0 %5999
      %6001 = vrot.lane.b32.xlu0 %v5923, 96
      %v6002 = vpop.permute.xlu0 %6001
      %6003 = vrot.lane.b32.xlu0 %v5808, 96
      %v6004 = vpop.permute.xlu0 %6003
      %6005 = vrot.lane.b32.xlu0 %v5924, 96
      %v6006 = vpop.permute.xlu0 %6005
      %6007 = vrot.lane.b32.xlu0 %v5811, 96
      %v6008 = vpop.permute.xlu0 %6007
      %6009 = vrot.lane.b32.xlu0 %v5925, 96
      %v6010 = vpop.permute.xlu0 %6009
      %6011 = vrot.lane.b32.xlu0 %v5814, 96
      %v6012 = vpop.permute.xlu0 %6011
      %6013 = vrot.lane.b32.xlu0 %v5926, 96
      %v6014 = vpop.permute.xlu0 %6013
      %6015 = vrot.lane.b32.xlu0 %v5817, 96
      %v6016 = vpop.permute.xlu0 %6015
      %6017 = vrot.lane.b32.xlu0 %v5927, 96
      %v6018 = vpop.permute.xlu0 %6017
      %6019 = vrot.lane.b32.xlu0 %v5820, 96
      %v6020 = vpop.permute.xlu0 %6019
      %6021 = vrot.lane.b32.xlu0 %v5928, 96
      %v6022 = vpop.permute.xlu0 %6021
      %6023 = vrot.lane.b32.xlu0 %v5823, 96
      %v6024 = vpop.permute.xlu0 %6023
      %6025 = vrot.lane.b32.xlu0 %v5929, 96
      %v6026 = vpop.permute.xlu0 %6025
      %6027 = vrot.lane.b32.xlu0 %v5826, 96
      %v6028 = vpop.permute.xlu0 %6027
      %6029 = vrot.lane.b32.xlu0 %v5930, 96
      %v6030 = vpop.permute.xlu0 %6029
      %6031 = vrot.lane.b32.xlu0 %v5829, 96
      %v6032 = vpop.permute.xlu0 %6031
      %6033 = vrot.lane.b32.xlu0 %v5931, 96
      %v6034 = vpop.permute.xlu0 %6033
      %6035 = vrot.lane.b32.xlu0 %v5832, 96
      %v6036 = vpop.permute.xlu0 %6035
      %6037 = vrot.lane.b32.xlu0 %v5932, 96
      %v6038 = vpop.permute.xlu0 %6037
      %6039 = vrot.lane.b32.xlu0 %v5835, 96
      %v6040 = vpop.permute.xlu0 %6039
      %6041 = vrot.lane.b32.xlu0 %v5933, 96
      %v6042 = vpop.permute.xlu0 %6041
      %6043 = vrot.lane.b32.xlu0 %v5838, 96
      %v6044 = vpop.permute.xlu0 %6043
      %6045 = vrot.lane.b32.xlu0 %v5934, 96
      %v6046 = vpop.permute.xlu0 %6045
      %6047 = vrot.lane.b32.xlu0 %v5841, 96
      %v6048 = vpop.permute.xlu0 %6047
      %6049 = vrot.lane.b32.xlu0 %v5935, 96
      %v6050 = vpop.permute.xlu0 %6049
      %6051 = vrot.lane.b32.xlu0 %v5844, 96
      %v6052 = vpop.permute.xlu0 %6051
      %6053 = vrot.lane.b32.xlu0 %v5936, 96
      %v6054 = vpop.permute.xlu0 %6053
      %6055 = vrot.lane.b32.xlu0 %v5847, 96
      %v6056 = vpop.permute.xlu0 %6055
      %6057 = vrot.lane.b32.xlu0 %v5937, 96
      %v6058 = vpop.permute.xlu0 %6057
      %6059 = vrot.lane.b32.xlu0 %v5850, 96
      %v6060 = vpop.permute.xlu0 %6059
      %6061 = vrot.lane.b32.xlu0 %v5938, 96
      %v6062 = vpop.permute.xlu0 %6061
      %6063 = vrot.lane.b32.xlu0 %v5853, 96
      %v6064 = vpop.permute.xlu0 %6063
      %6065 = vrot.lane.b32.xlu0 %v5939, 96
      %v6066 = vpop.permute.xlu0 %6065
      %6067 = vrot.lane.b32.xlu0 %v5856, 96
      %v6068 = vpop.permute.xlu0 %6067
      %6069 = vrot.lane.b32.xlu0 %v5940, 96
      %v6070 = vpop.permute.xlu0 %6069
      %6071 = vrot.lane.b32.xlu0 %v5859, 96
      %v6072 = vpop.permute.xlu0 %6071
      %6073 = vrot.lane.b32.xlu0 %v5941, 96
      %v6074 = vpop.permute.xlu0 %6073
      %6075 = vrot.lane.b32.xlu0 %v5862, 96
      %v6076 = vpop.permute.xlu0 %6075
      %6077 = vrot.lane.b32.xlu0 %v5942, 96
      %v6078 = vpop.permute.xlu0 %6077
      %6079 = vrot.lane.b32.xlu0 %v5865, 96
      %v6080 = vpop.permute.xlu0 %6079
      %6081 = vrot.lane.b32.xlu0 %v5943, 96
      %v6082 = vpop.permute.xlu0 %6081
      %6083 = vrot.lane.b32.xlu0 %v5868, 96
      %v6084 = vpop.permute.xlu0 %6083
      %6085 = vrot.lane.b32.xlu0 %v5944, 96
      %v6086 = vpop.permute.xlu0 %6085
      %6087 = vrot.lane.b32.xlu0 %v5871, 96
      %v6088 = vpop.permute.xlu0 %6087
      %6089 = vrot.lane.b32.xlu0 %v5945, 96
      %v6090 = vpop.permute.xlu0 %6089
      %6091 = vrot.lane.b32.xlu0 %v5874, 96
      %v6092 = vpop.permute.xlu0 %6091
      %6093 = vrot.lane.b32.xlu0 %v5946, 96
      %v6094 = vpop.permute.xlu0 %6093
      %6095 = vrot.lane.b32.xlu0 %v5877, 96
      %v6096 = vpop.permute.xlu0 %6095
      %6097 = vrot.lane.b32.xlu0 %v5947, 96
      %v6098 = vpop.permute.xlu0 %6097
      %6099 = vrot.lane.b32.xlu0 %v5880, 96
      %v6100 = vpop.permute.xlu0 %6099
      %6101 = vrot.lane.b32.xlu0 %v5948, 96
      %v6102 = vpop.permute.xlu0 %6101
      %6103 = vrot.lane.b32.xlu0 %v5883, 96
      %v6104 = vpop.permute.xlu0 %6103
      %6105 = vrot.lane.b32.xlu0 %v5949, 96
      %v6106 = vpop.permute.xlu0 %6105
      %6107 = vrot.lane.b32.xlu0 %v5886, 96
      %v6108 = vpop.permute.xlu0 %6107
      %6109 = vrot.lane.b32.xlu0 %v5950, 96
      %v6110 = vpop.permute.xlu0 %6109
      %v6175 = vadd.f32 %v5727, %v5984
      %v6176 = vadd.f32 %v5728, %v5986
      %v6177 = vadd.f32 %v5729, %v5988
      %v6178 = vadd.f32 %v5730, %v5990
      %v6179 = vadd.f32 %v5731, %v5992
      %v6180 = vadd.f32 %v5732, %v5994
      %v6181 = vadd.f32 %v5733, %v5996
      %v6182 = vadd.f32 %v5734, %v5998
      %v6183 = vadd.f32 %v5735, %v6000
      %v6184 = vadd.f32 %v5736, %v6002
      %v6185 = vadd.f32 %v5737, %v6004
      %v6186 = vadd.f32 %v5738, %v6006
      %v6187 = vadd.f32 %v5739, %v6008
      %v6188 = vadd.f32 %v5740, %v6010
      %v6189 = vadd.f32 %v5741, %v6012
      %v6190 = vadd.f32 %v5742, %v6014
      %v6191 = vadd.f32 %v5743, %v6016
      %v6192 = vadd.f32 %v5744, %v6018
      %v6193 = vadd.f32 %v5745, %v6020
      %v6194 = vadd.f32 %v5746, %v6022
      %v6195 = vadd.f32 %v5747, %v6024
      %v6196 = vadd.f32 %v5748, %v6026
      %v6197 = vadd.f32 %v5749, %v6028
      %v6198 = vadd.f32 %v5750, %v6030
      %v6199 = vadd.f32 %v5751, %v6032
      %v6200 = vadd.f32 %v5752, %v6034
      %v6201 = vadd.f32 %v5753, %v6036
      %v6202 = vadd.f32 %v5754, %v6038
      %v6203 = vadd.f32 %v5755, %v6040
      %v6204 = vadd.f32 %v5756, %v6042
      %v6205 = vadd.f32 %v5757, %v6044
      %v6206 = vadd.f32 %v5758, %v6046
      %v6207 = vadd.f32 %v5759, %v6048
      %v6208 = vadd.f32 %v5760, %v6050
      %v6209 = vadd.f32 %v5761, %v6052
      %v6210 = vadd.f32 %v5762, %v6054
      %v6211 = vadd.f32 %v5763, %v6056
      %v6212 = vadd.f32 %v5764, %v6058
      %v6213 = vadd.f32 %v5765, %v6060
      %v6214 = vadd.f32 %v5766, %v6062
      %v6215 = vadd.f32 %v5767, %v6064
      %v6216 = vadd.f32 %v5768, %v6066
      %v6217 = vadd.f32 %v5769, %v6068
      %v6218 = vadd.f32 %v5770, %v6070
      %v6219 = vadd.f32 %v5771, %v6072
      %v6220 = vadd.f32 %v5772, %v6074
      %v6221 = vadd.f32 %v5773, %v6076
      %v6222 = vadd.f32 %v5774, %v6078
      %v6223 = vadd.f32 %v5775, %v6080
      %v6224 = vadd.f32 %v5776, %v6082
      %v6225 = vadd.f32 %v5777, %v6084
      %v6226 = vadd.f32 %v5778, %v6086
      %v6227 = vadd.f32 %v5779, %v6088
      %v6228 = vadd.f32 %v5780, %v6090
      %v6229 = vadd.f32 %v5781, %v6092
      %v6230 = vadd.f32 %v5782, %v6094
      %v6231 = vadd.f32 %v5783, %v6096
      %v6232 = vadd.f32 %v5784, %v6098
      %v6233 = vadd.f32 %v5785, %v6100
      %v6234 = vadd.f32 %v5786, %v6102
      %v6235 = vadd.f32 %v5787, %v6104
      %v6236 = vadd.f32 %v5788, %v6106
      %v6237 = vadd.f32 %v5789, %v6108
      %v6238 = vadd.f32 %v5790, %v6110
      %v6240 = vperm.slane %v4322, 0
      %6241 = vrot.lane.b32.xlu0 %v6240, 32
      %v6242 = vpop.permute.xlu0 %6241
      %v6244 = vadd.f32 %v6175, %v6242
      %v6245 = vadd.f32 %v6176, %v6242
      %v6246 = vadd.f32 %v6177, %v6242
      %v6247 = vadd.f32 %v6178, %v6242
      %v6248 = vadd.f32 %v6179, %v6242
      %v6249 = vadd.f32 %v6180, %v6242
      %v6250 = vadd.f32 %v6181, %v6242
      %v6251 = vadd.f32 %v6182, %v6242
      %v6252 = vadd.f32 %v6183, %v6242
      %v6253 = vadd.f32 %v6184, %v6242
      %v6254 = vadd.f32 %v6185, %v6242
      %v6255 = vadd.f32 %v6186, %v6242
      %v6256 = vadd.f32 %v6187, %v6242
      %v6257 = vadd.f32 %v6188, %v6242
      %v6258 = vadd.f32 %v6189, %v6242
      %v6259 = vadd.f32 %v6190, %v6242
      %v6260 = vadd.f32 %v6191, %v6242
      %v6261 = vadd.f32 %v6192, %v6242
      %v6262 = vadd.f32 %v6193, %v6242
      %v6263 = vadd.f32 %v6194, %v6242
      %v6264 = vadd.f32 %v6195, %v6242
      %v6265 = vadd.f32 %v6196, %v6242
      %v6266 = vadd.f32 %v6197, %v6242
      %v6267 = vadd.f32 %v6198, %v6242
      %v6268 = vadd.f32 %v6199, %v6242
      %v6269 = vadd.f32 %v6200, %v6242
      %v6270 = vadd.f32 %v6201, %v6242
      %v6271 = vadd.f32 %v6202, %v6242
      %v6272 = vadd.f32 %v6203, %v6242
      %v6273 = vadd.f32 %v6204, %v6242
      %v6274 = vadd.f32 %v6205, %v6242
      %v6275 = vadd.f32 %v6206, %v6242
      %v6276 = vadd.f32 %v6207, %v6242
      %v6277 = vadd.f32 %v6208, %v6242
      %v6278 = vadd.f32 %v6209, %v6242
      %v6279 = vadd.f32 %v6210, %v6242
      %v6280 = vadd.f32 %v6211, %v6242
      %v6281 = vadd.f32 %v6212, %v6242
      %v6282 = vadd.f32 %v6213, %v6242
      %v6283 = vadd.f32 %v6214, %v6242
      %v6284 = vadd.f32 %v6215, %v6242
      %v6285 = vadd.f32 %v6216, %v6242
      %v6286 = vadd.f32 %v6217, %v6242
      %v6287 = vadd.f32 %v6218, %v6242
      %v6288 = vadd.f32 %v6219, %v6242
      %v6289 = vadd.f32 %v6220, %v6242
      %v6290 = vadd.f32 %v6221, %v6242
      %v6291 = vadd.f32 %v6222, %v6242
      %v6292 = vadd.f32 %v6223, %v6242
      %v6293 = vadd.f32 %v6224, %v6242
      %v6294 = vadd.f32 %v6225, %v6242
      %v6295 = vadd.f32 %v6226, %v6242
      %v6296 = vadd.f32 %v6227, %v6242
      %v6297 = vadd.f32 %v6228, %v6242
      %v6298 = vadd.f32 %v6229, %v6242
      %v6299 = vadd.f32 %v6230, %v6242
      %v6300 = vadd.f32 %v6231, %v6242
      %v6301 = vadd.f32 %v6232, %v6242
      %v6302 = vadd.f32 %v6233, %v6242
      %v6303 = vadd.f32 %v6234, %v6242
      %v6304 = vadd.f32 %v6235, %v6242
      %v6305 = vadd.f32 %v6236, %v6242
      %v6306 = vadd.f32 %v6237, %v6242
      %v6307 = vadd.f32 %v6238, %v6242
      %v6340 = vrot.slane %v6246, 7
      %vm6341 = vcmask 1041409
      %v6342 = vsel %vm6341, %v6340, %v6244
      %v6343 = vrot.slane %v6248, 6
      %vm6344 = vcmask 1042434
      %v6345 = vsel %vm6344, %v6343, %v6342
      %v6346 = vrot.slane %v6250, 5
      %vm6347 = vcmask 1043459
      %v6348 = vsel %vm6347, %v6346, %v6345
      %v6349 = vrot.slane %v6252, 4
      %vm6350 = vcmask 1044484
      %v6351 = vsel %vm6350, %v6349, %v6348
      %v6352 = vrot.slane %v6254, 3
      %vm6353 = vcmask 1045509
      %v6354 = vsel %vm6353, %v6352, %v6351
      %v6355 = vrot.slane %v6256, 2
      %vm6356 = vcmask 1046534
      %v6357 = vsel %vm6356, %v6355, %v6354
      %v6358 = vrot.slane %v6258, 1
      %vm6359 = vcmask 1047559
      %v6360 = vsel %vm6359, %v6358, %v6357
      %v6361 = vrot.slane %v6262, 7
      %v6362 = vsel %vm6341, %v6361, %v6260
      %v6363 = vrot.slane %v6264, 6
      %v6364 = vsel %vm6344, %v6363, %v6362
      %v6365 = vrot.slane %v6266, 5
      %v6366 = vsel %vm6347, %v6365, %v6364
      %v6367 = vrot.slane %v6268, 4
      %v6368 = vsel %vm6350, %v6367, %v6366
      %v6369 = vrot.slane %v6270, 3
      %v6370 = vsel %vm6353, %v6369, %v6368
      %v6371 = vrot.slane %v6272, 2
      %v6372 = vsel %vm6356, %v6371, %v6370
      %v6373 = vrot.slane %v6274, 1
      %v6374 = vsel %vm6359, %v6373, %v6372
      %v6375 = vrot.slane %v6278, 7
      %v6376 = vsel %vm6341, %v6375, %v6276
      %v6377 = vrot.slane %v6280, 6
      %v6378 = vsel %vm6344, %v6377, %v6376
      %v6379 = vrot.slane %v6282, 5
      %v6380 = vsel %vm6347, %v6379, %v6378
      %v6381 = vrot.slane %v6284, 4
      %v6382 = vsel %vm6350, %v6381, %v6380
      %v6383 = vrot.slane %v6286, 3
      %v6384 = vsel %vm6353, %v6383, %v6382
      %v6385 = vrot.slane %v6288, 2
      %v6386 = vsel %vm6356, %v6385, %v6384
      %v6387 = vrot.slane %v6290, 1
      %v6388 = vsel %vm6359, %v6387, %v6386
      %v6389 = vrot.slane %v6294, 7
      %v6390 = vsel %vm6341, %v6389, %v6292
      %v6391 = vrot.slane %v6296, 6
      %v6392 = vsel %vm6344, %v6391, %v6390
      %v6393 = vrot.slane %v6298, 5
      %v6394 = vsel %vm6347, %v6393, %v6392
      %v6395 = vrot.slane %v6300, 4
      %v6396 = vsel %vm6350, %v6395, %v6394
      %v6397 = vrot.slane %v6302, 3
      %v6398 = vsel %vm6353, %v6397, %v6396
      %v6399 = vrot.slane %v6304, 2
      %v6400 = vsel %vm6356, %v6399, %v6398
      %v6401 = vrot.slane %v6306, 1
      %v6402 = vsel %vm6359, %v6401, %v6400
      %6403 = vrot.lane.b32.xlu0 %v6360, 96
      %v6404 = vpop.permute.xlu0 %6403
      %6405 = vrot.lane.b32.xlu0 %v6374, 96
      %v6406 = vpop.permute.xlu0 %6405
      %6407 = vrot.lane.b32.xlu0 %v6388, 96
      %v6408 = vpop.permute.xlu0 %6407
      %6409 = vrot.lane.b32.xlu0 %v6402, 96
      %v6410 = vpop.permute.xlu0 %6409
      %v6415 = vrot.slane %v6244, 1
      %v6416 = vsel %vm6341, %v6246, %v6415
      %v6417 = vrot.slane %v6248, 7
      %v6418 = vsel %vm6344, %v6417, %v6416
      %v6419 = vrot.slane %v6250, 6
      %v6420 = vsel %vm6347, %v6419, %v6418
      %v6421 = vrot.slane %v6252, 5
      %v6422 = vsel %vm6350, %v6421, %v6420
      %v6423 = vrot.slane %v6254, 4
      %v6424 = vsel %vm6353, %v6423, %v6422
      %v6425 = vrot.slane %v6256, 3
      %v6426 = vsel %vm6356, %v6425, %v6424
      %v6427 = vrot.slane %v6258, 2
      %v6428 = vsel %vm6359, %v6427, %v6426
      %v6429 = vrot.slane %v6260, 1
      %v6430 = vsel %vm6341, %v6262, %v6429
      %v6431 = vrot.slane %v6264, 7
      %v6432 = vsel %vm6344, %v6431, %v6430
      %v6433 = vrot.slane %v6266, 6
      %v6434 = vsel %vm6347, %v6433, %v6432
      %v6435 = vrot.slane %v6268, 5
      %v6436 = vsel %vm6350, %v6435, %v6434
      %v6437 = vrot.slane %v6270, 4
      %v6438 = vsel %vm6353, %v6437, %v6436
      %v6439 = vrot.slane %v6272, 3
      %v6440 = vsel %vm6356, %v6439, %v6438
      %v6441 = vrot.slane %v6274, 2
      %v6442 = vsel %vm6359, %v6441, %v6440
      %v6443 = vrot.slane %v6276, 1
      %v6444 = vsel %vm6341, %v6278, %v6443
      %v6445 = vrot.slane %v6280, 7
      %v6446 = vsel %vm6344, %v6445, %v6444
      %v6447 = vrot.slane %v6282, 6
      %v6448 = vsel %vm6347, %v6447, %v6446
      %v6449 = vrot.slane %v6284, 5
      %v6450 = vsel %vm6350, %v6449, %v6448
      %v6451 = vrot.slane %v6286, 4
      %v6452 = vsel %vm6353, %v6451, %v6450
      %v6453 = vrot.slane %v6288, 3
      %v6454 = vsel %vm6356, %v6453, %v6452
      %v6455 = vrot.slane %v6290, 2
      %v6456 = vsel %vm6359, %v6455, %v6454
      %v6457 = vrot.slane %v6292, 1
      %v6458 = vsel %vm6341, %v6294, %v6457
      %v6459 = vrot.slane %v6296, 7
      %v6460 = vsel %vm6344, %v6459, %v6458
      %v6461 = vrot.slane %v6298, 6
      %v6462 = vsel %vm6347, %v6461, %v6460
      %v6463 = vrot.slane %v6300, 5
      %v6464 = vsel %vm6350, %v6463, %v6462
      %v6465 = vrot.slane %v6302, 4
      %v6466 = vsel %vm6353, %v6465, %v6464
      %v6467 = vrot.slane %v6304, 3
      %v6468 = vsel %vm6356, %v6467, %v6466
      %v6469 = vrot.slane %v6306, 2
      %v6470 = vsel %vm6359, %v6469, %v6468
      %v6475 = vrot.slane %v6244, 2
      %v6476 = vrot.slane %v6246, 1
      %v6477 = vsel %vm6341, %v6476, %v6475
      %v6478 = vsel %vm6344, %v6248, %v6477
      %v6479 = vrot.slane %v6250, 7
      %v6480 = vsel %vm6347, %v6479, %v6478
      %v6481 = vrot.slane %v6252, 6
      %v6482 = vsel %vm6350, %v6481, %v6480
      %v6483 = vrot.slane %v6254, 5
      %v6484 = vsel %vm6353, %v6483, %v6482
      %v6485 = vrot.slane %v6256, 4
      %v6486 = vsel %vm6356, %v6485, %v6484
      %v6487 = vrot.slane %v6258, 3
      %v6488 = vsel %vm6359, %v6487, %v6486
      %v6489 = vrot.slane %v6260, 2
      %v6490 = vrot.slane %v6262, 1
      %v6491 = vsel %vm6341, %v6490, %v6489
      %v6492 = vsel %vm6344, %v6264, %v6491
      %v6493 = vrot.slane %v6266, 7
      %v6494 = vsel %vm6347, %v6493, %v6492
      %v6495 = vrot.slane %v6268, 6
      %v6496 = vsel %vm6350, %v6495, %v6494
      %v6497 = vrot.slane %v6270, 5
      %v6498 = vsel %vm6353, %v6497, %v6496
      %v6499 = vrot.slane %v6272, 4
      %v6500 = vsel %vm6356, %v6499, %v6498
      %v6501 = vrot.slane %v6274, 3
      %v6502 = vsel %vm6359, %v6501, %v6500
      %v6503 = vrot.slane %v6276, 2
      %v6504 = vrot.slane %v6278, 1
      %v6505 = vsel %vm6341, %v6504, %v6503
      %v6506 = vsel %vm6344, %v6280, %v6505
      %v6507 = vrot.slane %v6282, 7
      %v6508 = vsel %vm6347, %v6507, %v6506
      %v6509 = vrot.slane %v6284, 6
      %v6510 = vsel %vm6350, %v6509, %v6508
      %v6511 = vrot.slane %v6286, 5
      %v6512 = vsel %vm6353, %v6511, %v6510
      %v6513 = vrot.slane %v6288, 4
      %v6514 = vsel %vm6356, %v6513, %v6512
      %v6515 = vrot.slane %v6290, 3
      %v6516 = vsel %vm6359, %v6515, %v6514
      %v6517 = vrot.slane %v6292, 2
      %v6518 = vrot.slane %v6294, 1
      %v6519 = vsel %vm6341, %v6518, %v6517
      %v6520 = vsel %vm6344, %v6296, %v6519
      %v6521 = vrot.slane %v6298, 7
      %v6522 = vsel %vm6347, %v6521, %v6520
      %v6523 = vrot.slane %v6300, 6
      %v6524 = vsel %vm6350, %v6523, %v6522
      %v6525 = vrot.slane %v6302, 5
      %v6526 = vsel %vm6353, %v6525, %v6524
      %v6527 = vrot.slane %v6304, 4
      %v6528 = vsel %vm6356, %v6527, %v6526
      %v6529 = vrot.slane %v6306, 3
      %v6530 = vsel %vm6359, %v6529, %v6528
      %6531 = vrot.lane.b32.xlu0 %v6488, 32
      %v6532 = vpop.permute.xlu0 %6531
      %6533 = vrot.lane.b32.xlu0 %v6502, 32
      %v6534 = vpop.permute.xlu0 %6533
      %6535 = vrot.lane.b32.xlu0 %v6516, 32
      %v6536 = vpop.permute.xlu0 %6535
      %6537 = vrot.lane.b32.xlu0 %v6530, 32
      %v6538 = vpop.permute.xlu0 %6537
      %v6543 = vrot.slane %v6244, 3
      %v6544 = vrot.slane %v6246, 2
      %v6545 = vsel %vm6341, %v6544, %v6543
      %v6546 = vrot.slane %v6248, 1
      %v6547 = vsel %vm6344, %v6546, %v6545
      %v6548 = vsel %vm6347, %v6250, %v6547
      %v6549 = vrot.slane %v6252, 7
      %v6550 = vsel %vm6350, %v6549, %v6548
      %v6551 = vrot.slane %v6254, 6
      %v6552 = vsel %vm6353, %v6551, %v6550
      %v6553 = vrot.slane %v6256, 5
      %v6554 = vsel %vm6356, %v6553, %v6552
      %v6555 = vrot.slane %v6258, 4
      %v6556 = vsel %vm6359, %v6555, %v6554
      %v6557 = vrot.slane %v6260, 3
      %v6558 = vrot.slane %v6262, 2
      %v6559 = vsel %vm6341, %v6558, %v6557
      %v6560 = vrot.slane %v6264, 1
      %v6561 = vsel %vm6344, %v6560, %v6559
      %v6562 = vsel %vm6347, %v6266, %v6561
      %v6563 = vrot.slane %v6268, 7
      %v6564 = vsel %vm6350, %v6563, %v6562
      %v6565 = vrot.slane %v6270, 6
      %v6566 = vsel %vm6353, %v6565, %v6564
      %v6567 = vrot.slane %v6272, 5
      %v6568 = vsel %vm6356, %v6567, %v6566
      %v6569 = vrot.slane %v6274, 4
      %v6570 = vsel %vm6359, %v6569, %v6568
      %v6571 = vrot.slane %v6276, 3
      %v6572 = vrot.slane %v6278, 2
      %v6573 = vsel %vm6341, %v6572, %v6571
      %v6574 = vrot.slane %v6280, 1
      %v6575 = vsel %vm6344, %v6574, %v6573
      %v6576 = vsel %vm6347, %v6282, %v6575
      %v6577 = vrot.slane %v6284, 7
      %v6578 = vsel %vm6350, %v6577, %v6576
      %v6579 = vrot.slane %v6286, 6
      %v6580 = vsel %vm6353, %v6579, %v6578
      %v6581 = vrot.slane %v6288, 5
      %v6582 = vsel %vm6356, %v6581, %v6580
      %v6583 = vrot.slane %v6290, 4
      %v6584 = vsel %vm6359, %v6583, %v6582
      %v6585 = vrot.slane %v6292, 3
      %v6586 = vrot.slane %v6294, 2
      %v6587 = vsel %vm6341, %v6586, %v6585
      %v6588 = vrot.slane %v6296, 1
      %v6589 = vsel %vm6344, %v6588, %v6587
      %v6590 = vsel %vm6347, %v6298, %v6589
      %v6591 = vrot.slane %v6300, 7
      %v6592 = vsel %vm6350, %v6591, %v6590
      %v6593 = vrot.slane %v6302, 6
      %v6594 = vsel %vm6353, %v6593, %v6592
      %v6595 = vrot.slane %v6304, 5
      %v6596 = vsel %vm6356, %v6595, %v6594
      %v6597 = vrot.slane %v6306, 4
      %v6598 = vsel %vm6359, %v6597, %v6596
      %6599 = vrot.lane.b32.xlu0 %v6556, 64
      %v6600 = vpop.permute.xlu0 %6599
      %6601 = vrot.lane.b32.xlu0 %v6570, 64
      %v6602 = vpop.permute.xlu0 %6601
      %6603 = vrot.lane.b32.xlu0 %v6584, 64
      %v6604 = vpop.permute.xlu0 %6603
      %6605 = vrot.lane.b32.xlu0 %v6598, 64
      %v6606 = vpop.permute.xlu0 %6605
      %v6611 = vrot.slane %v6244, 4
      %v6612 = vrot.slane %v6246, 3
      %v6613 = vsel %vm6341, %v6612, %v6611
      %v6614 = vrot.slane %v6248, 2
      %v6615 = vsel %vm6344, %v6614, %v6613
      %v6616 = vrot.slane %v6250, 1
      %v6617 = vsel %vm6347, %v6616, %v6615
      %v6618 = vsel %vm6350, %v6252, %v6617
      %v6619 = vrot.slane %v6254, 7
      %v6620 = vsel %vm6353, %v6619, %v6618
      %v6621 = vrot.slane %v6256, 6
      %v6622 = vsel %vm6356, %v6621, %v6620
      %v6623 = vrot.slane %v6258, 5
      %v6624 = vsel %vm6359, %v6623, %v6622
      %v6625 = vrot.slane %v6260, 4
      %v6626 = vrot.slane %v6262, 3
      %v6627 = vsel %vm6341, %v6626, %v6625
      %v6628 = vrot.slane %v6264, 2
      %v6629 = vsel %vm6344, %v6628, %v6627
      %v6630 = vrot.slane %v6266, 1
      %v6631 = vsel %vm6347, %v6630, %v6629
      %v6632 = vsel %vm6350, %v6268, %v6631
      %v6633 = vrot.slane %v6270, 7
      %v6634 = vsel %vm6353, %v6633, %v6632
      %v6635 = vrot.slane %v6272, 6
      %v6636 = vsel %vm6356, %v6635, %v6634
      %v6637 = vrot.slane %v6274, 5
      %v6638 = vsel %vm6359, %v6637, %v6636
      %v6639 = vrot.slane %v6276, 4
      %v6640 = vrot.slane %v6278, 3
      %v6641 = vsel %vm6341, %v6640, %v6639
      %v6642 = vrot.slane %v6280, 2
      %v6643 = vsel %vm6344, %v6642, %v6641
      %v6644 = vrot.slane %v6282, 1
      %v6645 = vsel %vm6347, %v6644, %v6643
      %v6646 = vsel %vm6350, %v6284, %v6645
      %v6647 = vrot.slane %v6286, 7
      %v6648 = vsel %vm6353, %v6647, %v6646
      %v6649 = vrot.slane %v6288, 6
      %v6650 = vsel %vm6356, %v6649, %v6648
      %v6651 = vrot.slane %v6290, 5
      %v6652 = vsel %vm6359, %v6651, %v6650
      %v6653 = vrot.slane %v6292, 4
      %v6654 = vrot.slane %v6294, 3
      %v6655 = vsel %vm6341, %v6654, %v6653
      %v6656 = vrot.slane %v6296, 2
      %v6657 = vsel %vm6344, %v6656, %v6655
      %v6658 = vrot.slane %v6298, 1
      %v6659 = vsel %vm6347, %v6658, %v6657
      %v6660 = vsel %vm6350, %v6300, %v6659
      %v6661 = vrot.slane %v6302, 7
      %v6662 = vsel %vm6353, %v6661, %v6660
      %v6663 = vrot.slane %v6304, 6
      %v6664 = vsel %vm6356, %v6663, %v6662
      %v6665 = vrot.slane %v6306, 5
      %v6666 = vsel %vm6359, %v6665, %v6664
      %6667 = vrot.lane.b32.xlu0 %v6624, 96
      %v6668 = vpop.permute.xlu0 %6667
      %6669 = vrot.lane.b32.xlu0 %v6638, 96
      %v6670 = vpop.permute.xlu0 %6669
      %6671 = vrot.lane.b32.xlu0 %v6652, 96
      %v6672 = vpop.permute.xlu0 %6671
      %6673 = vrot.lane.b32.xlu0 %v6666, 96
      %v6674 = vpop.permute.xlu0 %6673
      %v6679 = vrot.slane %v6244, 5
      %v6680 = vrot.slane %v6246, 4
      %v6681 = vsel %vm6341, %v6680, %v6679
      %v6682 = vrot.slane %v6248, 3
      %v6683 = vsel %vm6344, %v6682, %v6681
      %v6684 = vrot.slane %v6250, 2
      %v6685 = vsel %vm6347, %v6684, %v6683
      %v6686 = vrot.slane %v6252, 1
      %v6687 = vsel %vm6350, %v6686, %v6685
      %v6688 = vsel %vm6353, %v6254, %v6687
      %v6689 = vrot.slane %v6256, 7
      %v6690 = vsel %vm6356, %v6689, %v6688
      %v6691 = vrot.slane %v6258, 6
      %v6692 = vsel %vm6359, %v6691, %v6690
      %v6693 = vrot.slane %v6260, 5
      %v6694 = vrot.slane %v6262, 4
      %v6695 = vsel %vm6341, %v6694, %v6693
      %v6696 = vrot.slane %v6264, 3
      %v6697 = vsel %vm6344, %v6696, %v6695
      %v6698 = vrot.slane %v6266, 2
      %v6699 = vsel %vm6347, %v6698, %v6697
      %v6700 = vrot.slane %v6268, 1
      %v6701 = vsel %vm6350, %v6700, %v6699
      %v6702 = vsel %vm6353, %v6270, %v6701
      %v6703 = vrot.slane %v6272, 7
      %v6704 = vsel %vm6356, %v6703, %v6702
      %v6705 = vrot.slane %v6274, 6
      %v6706 = vsel %vm6359, %v6705, %v6704
      %v6707 = vrot.slane %v6276, 5
      %v6708 = vrot.slane %v6278, 4
      %v6709 = vsel %vm6341, %v6708, %v6707
      %v6710 = vrot.slane %v6280, 3
      %v6711 = vsel %vm6344, %v6710, %v6709
      %v6712 = vrot.slane %v6282, 2
      %v6713 = vsel %vm6347, %v6712, %v6711
      %v6714 = vrot.slane %v6284, 1
      %v6715 = vsel %vm6350, %v6714, %v6713
      %v6716 = vsel %vm6353, %v6286, %v6715
      %v6717 = vrot.slane %v6288, 7
      %v6718 = vsel %vm6356, %v6717, %v6716
      %v6719 = vrot.slane %v6290, 6
      %v6720 = vsel %vm6359, %v6719, %v6718
      %v6721 = vrot.slane %v6292, 5
      %v6722 = vrot.slane %v6294, 4
      %v6723 = vsel %vm6341, %v6722, %v6721
      %v6724 = vrot.slane %v6296, 3
      %v6725 = vsel %vm6344, %v6724, %v6723
      %v6726 = vrot.slane %v6298, 2
      %v6727 = vsel %vm6347, %v6726, %v6725
      %v6728 = vrot.slane %v6300, 1
      %v6729 = vsel %vm6350, %v6728, %v6727
      %v6730 = vsel %vm6353, %v6302, %v6729
      %v6731 = vrot.slane %v6304, 7
      %v6732 = vsel %vm6356, %v6731, %v6730
      %v6733 = vrot.slane %v6306, 6
      %v6734 = vsel %vm6359, %v6733, %v6732
      %v6739 = vrot.slane %v6244, 6
      %v6740 = vrot.slane %v6246, 5
      %v6741 = vsel %vm6341, %v6740, %v6739
      %v6742 = vrot.slane %v6248, 4
      %v6743 = vsel %vm6344, %v6742, %v6741
      %v6744 = vrot.slane %v6250, 3
      %v6745 = vsel %vm6347, %v6744, %v6743
      %v6746 = vrot.slane %v6252, 2
      %v6747 = vsel %vm6350, %v6746, %v6745
      %v6748 = vrot.slane %v6254, 1
      %v6749 = vsel %vm6353, %v6748, %v6747
      %v6750 = vsel %vm6356, %v6256, %v6749
      %v6751 = vrot.slane %v6258, 7
      %v6752 = vsel %vm6359, %v6751, %v6750
      %v6753 = vrot.slane %v6260, 6
      %v6754 = vrot.slane %v6262, 5
      %v6755 = vsel %vm6341, %v6754, %v6753
      %v6756 = vrot.slane %v6264, 4
      %v6757 = vsel %vm6344, %v6756, %v6755
      %v6758 = vrot.slane %v6266, 3
      %v6759 = vsel %vm6347, %v6758, %v6757
      %v6760 = vrot.slane %v6268, 2
      %v6761 = vsel %vm6350, %v6760, %v6759
      %v6762 = vrot.slane %v6270, 1
      %v6763 = vsel %vm6353, %v6762, %v6761
      %v6764 = vsel %vm6356, %v6272, %v6763
      %v6765 = vrot.slane %v6274, 7
      %v6766 = vsel %vm6359, %v6765, %v6764
      %v6767 = vrot.slane %v6276, 6
      %v6768 = vrot.slane %v6278, 5
      %v6769 = vsel %vm6341, %v6768, %v6767
      %v6770 = vrot.slane %v6280, 4
      %v6771 = vsel %vm6344, %v6770, %v6769
      %v6772 = vrot.slane %v6282, 3
      %v6773 = vsel %vm6347, %v6772, %v6771
      %v6774 = vrot.slane %v6284, 2
      %v6775 = vsel %vm6350, %v6774, %v6773
      %v6776 = vrot.slane %v6286, 1
      %v6777 = vsel %vm6353, %v6776, %v6775
      %v6778 = vsel %vm6356, %v6288, %v6777
      %v6779 = vrot.slane %v6290, 7
      %v6780 = vsel %vm6359, %v6779, %v6778
      %v6781 = vrot.slane %v6292, 6
      %v6782 = vrot.slane %v6294, 5
      %v6783 = vsel %vm6341, %v6782, %v6781
      %v6784 = vrot.slane %v6296, 4
      %v6785 = vsel %vm6344, %v6784, %v6783
      %v6786 = vrot.slane %v6298, 3
      %v6787 = vsel %vm6347, %v6786, %v6785
      %v6788 = vrot.slane %v6300, 2
      %v6789 = vsel %vm6350, %v6788, %v6787
      %v6790 = vrot.slane %v6302, 1
      %v6791 = vsel %vm6353, %v6790, %v6789
      %v6792 = vsel %vm6356, %v6304, %v6791
      %v6793 = vrot.slane %v6306, 7
      %v6794 = vsel %vm6359, %v6793, %v6792
      %6795 = vrot.lane.b32.xlu0 %v6752, 32
      %v6796 = vpop.permute.xlu0 %6795
      %6797 = vrot.lane.b32.xlu0 %v6766, 32
      %v6798 = vpop.permute.xlu0 %6797
      %6799 = vrot.lane.b32.xlu0 %v6780, 32
      %v6800 = vpop.permute.xlu0 %6799
      %6801 = vrot.lane.b32.xlu0 %v6794, 32
      %v6802 = vpop.permute.xlu0 %6801
      %v6807 = vrot.slane %v6244, 7
      %v6808 = vrot.slane %v6246, 6
      %v6809 = vsel %vm6341, %v6808, %v6807
      %v6810 = vrot.slane %v6248, 5
      %v6811 = vsel %vm6344, %v6810, %v6809
      %v6812 = vrot.slane %v6250, 4
      %v6813 = vsel %vm6347, %v6812, %v6811
      %v6814 = vrot.slane %v6252, 3
      %v6815 = vsel %vm6350, %v6814, %v6813
      %v6816 = vrot.slane %v6254, 2
      %v6817 = vsel %vm6353, %v6816, %v6815
      %v6818 = vrot.slane %v6256, 1
      %v6819 = vsel %vm6356, %v6818, %v6817
      %v6820 = vsel %vm6359, %v6258, %v6819
      %v6821 = vrot.slane %v6260, 7
      %v6822 = vrot.slane %v6262, 6
      %v6823 = vsel %vm6341, %v6822, %v6821
      %v6824 = vrot.slane %v6264, 5
      %v6825 = vsel %vm6344, %v6824, %v6823
      %v6826 = vrot.slane %v6266, 4
      %v6827 = vsel %vm6347, %v6826, %v6825
      %v6828 = vrot.slane %v6268, 3
      %v6829 = vsel %vm6350, %v6828, %v6827
      %v6830 = vrot.slane %v6270, 2
      %v6831 = vsel %vm6353, %v6830, %v6829
      %v6832 = vrot.slane %v6272, 1
      %v6833 = vsel %vm6356, %v6832, %v6831
      %v6834 = vsel %vm6359, %v6274, %v6833
      %v6835 = vrot.slane %v6276, 7
      %v6836 = vrot.slane %v6278, 6
      %v6837 = vsel %vm6341, %v6836, %v6835
      %v6838 = vrot.slane %v6280, 5
      %v6839 = vsel %vm6344, %v6838, %v6837
      %v6840 = vrot.slane %v6282, 4
      %v6841 = vsel %vm6347, %v6840, %v6839
      %v6842 = vrot.slane %v6284, 3
      %v6843 = vsel %vm6350, %v6842, %v6841
      %v6844 = vrot.slane %v6286, 2
      %v6845 = vsel %vm6353, %v6844, %v6843
      %v6846 = vrot.slane %v6288, 1
      %v6847 = vsel %vm6356, %v6846, %v6845
      %v6848 = vsel %vm6359, %v6290, %v6847
      %v6849 = vrot.slane %v6292, 7
      %v6850 = vrot.slane %v6294, 6
      %v6851 = vsel %vm6341, %v6850, %v6849
      %v6852 = vrot.slane %v6296, 5
      %v6853 = vsel %vm6344, %v6852, %v6851
      %v6854 = vrot.slane %v6298, 4
      %v6855 = vsel %vm6347, %v6854, %v6853
      %v6856 = vrot.slane %v6300, 3
      %v6857 = vsel %vm6350, %v6856, %v6855
      %v6858 = vrot.slane %v6302, 2
      %v6859 = vsel %vm6353, %v6858, %v6857
      %v6860 = vrot.slane %v6304, 1
      %v6861 = vsel %vm6356, %v6860, %v6859
      %v6862 = vsel %vm6359, %v6306, %v6861
      %6863 = vrot.lane.b32.xlu0 %v6820, 64
      %v6864 = vpop.permute.xlu0 %6863
      %6865 = vrot.lane.b32.xlu0 %v6834, 64
      %v6866 = vpop.permute.xlu0 %6865
      %6867 = vrot.lane.b32.xlu0 %v6848, 64
      %v6868 = vpop.permute.xlu0 %6867
      %6869 = vrot.lane.b32.xlu0 %v6862, 64
      %v6870 = vpop.permute.xlu0 %6869
      %v6907 = vrot.slane %v6247, 7
      %v6908 = vsel %vm6341, %v6907, %v6245
      %v6909 = vrot.slane %v6249, 6
      %v6910 = vsel %vm6344, %v6909, %v6908
      %v6911 = vrot.slane %v6251, 5
      %v6912 = vsel %vm6347, %v6911, %v6910
      %v6913 = vrot.slane %v6253, 4
      %v6914 = vsel %vm6350, %v6913, %v6912
      %v6915 = vrot.slane %v6255, 3
      %v6916 = vsel %vm6353, %v6915, %v6914
      %v6917 = vrot.slane %v6257, 2
      %v6918 = vsel %vm6356, %v6917, %v6916
      %v6919 = vrot.slane %v6259, 1
      %v6920 = vsel %vm6359, %v6919, %v6918
      %v6921 = vrot.slane %v6263, 7
      %v6922 = vsel %vm6341, %v6921, %v6261
      %v6923 = vrot.slane %v6265, 6
      %v6924 = vsel %vm6344, %v6923, %v6922
      %v6925 = vrot.slane %v6267, 5
      %v6926 = vsel %vm6347, %v6925, %v6924
      %v6927 = vrot.slane %v6269, 4
      %v6928 = vsel %vm6350, %v6927, %v6926
      %v6929 = vrot.slane %v6271, 3
      %v6930 = vsel %vm6353, %v6929, %v6928
      %v6931 = vrot.slane %v6273, 2
      %v6932 = vsel %vm6356, %v6931, %v6930
      %v6933 = vrot.slane %v6275, 1
      %v6934 = vsel %vm6359, %v6933, %v6932
      %v6935 = vrot.slane %v6279, 7
      %v6936 = vsel %vm6341, %v6935, %v6277
      %v6937 = vrot.slane %v6281, 6
      %v6938 = vsel %vm6344, %v6937, %v6936
      %v6939 = vrot.slane %v6283, 5
      %v6940 = vsel %vm6347, %v6939, %v6938
      %v6941 = vrot.slane %v6285, 4
      %v6942 = vsel %vm6350, %v6941, %v6940
      %v6943 = vrot.slane %v6287, 3
      %v6944 = vsel %vm6353, %v6943, %v6942
      %v6945 = vrot.slane %v6289, 2
      %v6946 = vsel %vm6356, %v6945, %v6944
      %v6947 = vrot.slane %v6291, 1
      %v6948 = vsel %vm6359, %v6947, %v6946
      %v6949 = vrot.slane %v6295, 7
      %v6950 = vsel %vm6341, %v6949, %v6293
      %v6951 = vrot.slane %v6297, 6
      %v6952 = vsel %vm6344, %v6951, %v6950
      %v6953 = vrot.slane %v6299, 5
      %v6954 = vsel %vm6347, %v6953, %v6952
      %v6955 = vrot.slane %v6301, 4
      %v6956 = vsel %vm6350, %v6955, %v6954
      %v6957 = vrot.slane %v6303, 3
      %v6958 = vsel %vm6353, %v6957, %v6956
      %v6959 = vrot.slane %v6305, 2
      %v6960 = vsel %vm6356, %v6959, %v6958
      %v6961 = vrot.slane %v6307, 1
      %v6962 = vsel %vm6359, %v6961, %v6960
      %6963 = vrot.lane.b32.xlu0 %v6920, 96
      %v6964 = vpop.permute.xlu0 %6963
      %6965 = vrot.lane.b32.xlu0 %v6934, 96
      %v6966 = vpop.permute.xlu0 %6965
      %6967 = vrot.lane.b32.xlu0 %v6948, 96
      %v6968 = vpop.permute.xlu0 %6967
      %6969 = vrot.lane.b32.xlu0 %v6962, 96
      %v6970 = vpop.permute.xlu0 %6969
      %v6975 = vrot.slane %v6245, 1
      %v6976 = vsel %vm6341, %v6247, %v6975
      %v6977 = vrot.slane %v6249, 7
      %v6978 = vsel %vm6344, %v6977, %v6976
      %v6979 = vrot.slane %v6251, 6
      %v6980 = vsel %vm6347, %v6979, %v6978
      %v6981 = vrot.slane %v6253, 5
      %v6982 = vsel %vm6350, %v6981, %v6980
      %v6983 = vrot.slane %v6255, 4
      %v6984 = vsel %vm6353, %v6983, %v6982
      %v6985 = vrot.slane %v6257, 3
      %v6986 = vsel %vm6356, %v6985, %v6984
      %v6987 = vrot.slane %v6259, 2
      %v6988 = vsel %vm6359, %v6987, %v6986
      %v6989 = vrot.slane %v6261, 1
      %v6990 = vsel %vm6341, %v6263, %v6989
      %v6991 = vrot.slane %v6265, 7
      %v6992 = vsel %vm6344, %v6991, %v6990
      %v6993 = vrot.slane %v6267, 6
      %v6994 = vsel %vm6347, %v6993, %v6992
      %v6995 = vrot.slane %v6269, 5
      %v6996 = vsel %vm6350, %v6995, %v6994
      %v6997 = vrot.slane %v6271, 4
      %v6998 = vsel %vm6353, %v6997, %v6996
      %v6999 = vrot.slane %v6273, 3
      %v7000 = vsel %vm6356, %v6999, %v6998
      %v7001 = vrot.slane %v6275, 2
      %v7002 = vsel %vm6359, %v7001, %v7000
      %v7003 = vrot.slane %v6277, 1
      %v7004 = vsel %vm6341, %v6279, %v7003
      %v7005 = vrot.slane %v6281, 7
      %v7006 = vsel %vm6344, %v7005, %v7004
      %v7007 = vrot.slane %v6283, 6
      %v7008 = vsel %vm6347, %v7007, %v7006
      %v7009 = vrot.slane %v6285, 5
      %v7010 = vsel %vm6350, %v7009, %v7008
      %v7011 = vrot.slane %v6287, 4
      %v7012 = vsel %vm6353, %v7011, %v7010
      %v7013 = vrot.slane %v6289, 3
      %v7014 = vsel %vm6356, %v7013, %v7012
      %v7015 = vrot.slane %v6291, 2
      %v7016 = vsel %vm6359, %v7015, %v7014
      %v7017 = vrot.slane %v6293, 1
      %v7018 = vsel %vm6341, %v6295, %v7017
      %v7019 = vrot.slane %v6297, 7
      %v7020 = vsel %vm6344, %v7019, %v7018
      %v7021 = vrot.slane %v6299, 6
      %v7022 = vsel %vm6347, %v7021, %v7020
      %v7023 = vrot.slane %v6301, 5
      %v7024 = vsel %vm6350, %v7023, %v7022
      %v7025 = vrot.slane %v6303, 4
      %v7026 = vsel %vm6353, %v7025, %v7024
      %v7027 = vrot.slane %v6305, 3
      %v7028 = vsel %vm6356, %v7027, %v7026
      %v7029 = vrot.slane %v6307, 2
      %v7030 = vsel %vm6359, %v7029, %v7028
      %v7035 = vrot.slane %v6245, 2
      %v7036 = vrot.slane %v6247, 1
      %v7037 = vsel %vm6341, %v7036, %v7035
      %v7038 = vsel %vm6344, %v6249, %v7037
      %v7039 = vrot.slane %v6251, 7
      %v7040 = vsel %vm6347, %v7039, %v7038
      %v7041 = vrot.slane %v6253, 6
      %v7042 = vsel %vm6350, %v7041, %v7040
      %v7043 = vrot.slane %v6255, 5
      %v7044 = vsel %vm6353, %v7043, %v7042
      %v7045 = vrot.slane %v6257, 4
      %v7046 = vsel %vm6356, %v7045, %v7044
      %v7047 = vrot.slane %v6259, 3
      %v7048 = vsel %vm6359, %v7047, %v7046
      %v7049 = vrot.slane %v6261, 2
      %v7050 = vrot.slane %v6263, 1
      %v7051 = vsel %vm6341, %v7050, %v7049
      %v7052 = vsel %vm6344, %v6265, %v7051
      %v7053 = vrot.slane %v6267, 7
      %v7054 = vsel %vm6347, %v7053, %v7052
      %v7055 = vrot.slane %v6269, 6
      %v7056 = vsel %vm6350, %v7055, %v7054
      %v7057 = vrot.slane %v6271, 5
      %v7058 = vsel %vm6353, %v7057, %v7056
      %v7059 = vrot.slane %v6273, 4
      %v7060 = vsel %vm6356, %v7059, %v7058
      %v7061 = vrot.slane %v6275, 3
      %v7062 = vsel %vm6359, %v7061, %v7060
      %v7063 = vrot.slane %v6277, 2
      %v7064 = vrot.slane %v6279, 1
      %v7065 = vsel %vm6341, %v7064, %v7063
      %v7066 = vsel %vm6344, %v6281, %v7065
      %v7067 = vrot.slane %v6283, 7
      %v7068 = vsel %vm6347, %v7067, %v7066
      %v7069 = vrot.slane %v6285, 6
      %v7070 = vsel %vm6350, %v7069, %v7068
      %v7071 = vrot.slane %v6287, 5
      %v7072 = vsel %vm6353, %v7071, %v7070
      %v7073 = vrot.slane %v6289, 4
      %v7074 = vsel %vm6356, %v7073, %v7072
      %v7075 = vrot.slane %v6291, 3
      %v7076 = vsel %vm6359, %v7075, %v7074
      %v7077 = vrot.slane %v6293, 2
      %v7078 = vrot.slane %v6295, 1
      %v7079 = vsel %vm6341, %v7078, %v7077
      %v7080 = vsel %vm6344, %v6297, %v7079
      %v7081 = vrot.slane %v6299, 7
      %v7082 = vsel %vm6347, %v7081, %v7080
      %v7083 = vrot.slane %v6301, 6
      %v7084 = vsel %vm6350, %v7083, %v7082
      %v7085 = vrot.slane %v6303, 5
      %v7086 = vsel %vm6353, %v7085, %v7084
      %v7087 = vrot.slane %v6305, 4
      %v7088 = vsel %vm6356, %v7087, %v7086
      %v7089 = vrot.slane %v6307, 3
      %v7090 = vsel %vm6359, %v7089, %v7088
      %7091 = vrot.lane.b32.xlu0 %v7048, 32
      %v7092 = vpop.permute.xlu0 %7091
      %7093 = vrot.lane.b32.xlu0 %v7062, 32
      %v7094 = vpop.permute.xlu0 %7093
      %7095 = vrot.lane.b32.xlu0 %v7076, 32
      %v7096 = vpop.permute.xlu0 %7095
      %7097 = vrot.lane.b32.xlu0 %v7090, 32
      %v7098 = vpop.permute.xlu0 %7097
      %v7103 = vrot.slane %v6245, 3
      %v7104 = vrot.slane %v6247, 2
      %v7105 = vsel %vm6341, %v7104, %v7103
      %v7106 = vrot.slane %v6249, 1
      %v7107 = vsel %vm6344, %v7106, %v7105
      %v7108 = vsel %vm6347, %v6251, %v7107
      %v7109 = vrot.slane %v6253, 7
      %v7110 = vsel %vm6350, %v7109, %v7108
      %v7111 = vrot.slane %v6255, 6
      %v7112 = vsel %vm6353, %v7111, %v7110
      %v7113 = vrot.slane %v6257, 5
      %v7114 = vsel %vm6356, %v7113, %v7112
      %v7115 = vrot.slane %v6259, 4
      %v7116 = vsel %vm6359, %v7115, %v7114
      %v7117 = vrot.slane %v6261, 3
      %v7118 = vrot.slane %v6263, 2
      %v7119 = vsel %vm6341, %v7118, %v7117
      %v7120 = vrot.slane %v6265, 1
      %v7121 = vsel %vm6344, %v7120, %v7119
      %v7122 = vsel %vm6347, %v6267, %v7121
      %v7123 = vrot.slane %v6269, 7
      %v7124 = vsel %vm6350, %v7123, %v7122
      %v7125 = vrot.slane %v6271, 6
      %v7126 = vsel %vm6353, %v7125, %v7124
      %v7127 = vrot.slane %v6273, 5
      %v7128 = vsel %vm6356, %v7127, %v7126
      %v7129 = vrot.slane %v6275, 4
      %v7130 = vsel %vm6359, %v7129, %v7128
      %v7131 = vrot.slane %v6277, 3
      %v7132 = vrot.slane %v6279, 2
      %v7133 = vsel %vm6341, %v7132, %v7131
      %v7134 = vrot.slane %v6281, 1
      %v7135 = vsel %vm6344, %v7134, %v7133
      %v7136 = vsel %vm6347, %v6283, %v7135
      %v7137 = vrot.slane %v6285, 7
      %v7138 = vsel %vm6350, %v7137, %v7136
      %v7139 = vrot.slane %v6287, 6
      %v7140 = vsel %vm6353, %v7139, %v7138
      %v7141 = vrot.slane %v6289, 5
      %v7142 = vsel %vm6356, %v7141, %v7140
      %v7143 = vrot.slane %v6291, 4
      %v7144 = vsel %vm6359, %v7143, %v7142
      %v7145 = vrot.slane %v6293, 3
      %v7146 = vrot.slane %v6295, 2
      %v7147 = vsel %vm6341, %v7146, %v7145
      %v7148 = vrot.slane %v6297, 1
      %v7149 = vsel %vm6344, %v7148, %v7147
      %v7150 = vsel %vm6347, %v6299, %v7149
      %v7151 = vrot.slane %v6301, 7
      %v7152 = vsel %vm6350, %v7151, %v7150
      %v7153 = vrot.slane %v6303, 6
      %v7154 = vsel %vm6353, %v7153, %v7152
      %v7155 = vrot.slane %v6305, 5
      %v7156 = vsel %vm6356, %v7155, %v7154
      %v7157 = vrot.slane %v6307, 4
      %v7158 = vsel %vm6359, %v7157, %v7156
      %7159 = vrot.lane.b32.xlu0 %v7116, 64
      %v7160 = vpop.permute.xlu0 %7159
      %7161 = vrot.lane.b32.xlu0 %v7130, 64
      %v7162 = vpop.permute.xlu0 %7161
      %7163 = vrot.lane.b32.xlu0 %v7144, 64
      %v7164 = vpop.permute.xlu0 %7163
      %7165 = vrot.lane.b32.xlu0 %v7158, 64
      %v7166 = vpop.permute.xlu0 %7165
      %v7171 = vrot.slane %v6245, 4
      %v7172 = vrot.slane %v6247, 3
      %v7173 = vsel %vm6341, %v7172, %v7171
      %v7174 = vrot.slane %v6249, 2
      %v7175 = vsel %vm6344, %v7174, %v7173
      %v7176 = vrot.slane %v6251, 1
      %v7177 = vsel %vm6347, %v7176, %v7175
      %v7178 = vsel %vm6350, %v6253, %v7177
      %v7179 = vrot.slane %v6255, 7
      %v7180 = vsel %vm6353, %v7179, %v7178
      %v7181 = vrot.slane %v6257, 6
      %v7182 = vsel %vm6356, %v7181, %v7180
      %v7183 = vrot.slane %v6259, 5
      %v7184 = vsel %vm6359, %v7183, %v7182
      %v7185 = vrot.slane %v6261, 4
      %v7186 = vrot.slane %v6263, 3
      %v7187 = vsel %vm6341, %v7186, %v7185
      %v7188 = vrot.slane %v6265, 2
      %v7189 = vsel %vm6344, %v7188, %v7187
      %v7190 = vrot.slane %v6267, 1
      %v7191 = vsel %vm6347, %v7190, %v7189
      %v7192 = vsel %vm6350, %v6269, %v7191
      %v7193 = vrot.slane %v6271, 7
      %v7194 = vsel %vm6353, %v7193, %v7192
      %v7195 = vrot.slane %v6273, 6
      %v7196 = vsel %vm6356, %v7195, %v7194
      %v7197 = vrot.slane %v6275, 5
      %v7198 = vsel %vm6359, %v7197, %v7196
      %v7199 = vrot.slane %v6277, 4
      %v7200 = vrot.slane %v6279, 3
      %v7201 = vsel %vm6341, %v7200, %v7199
      %v7202 = vrot.slane %v6281, 2
      %v7203 = vsel %vm6344, %v7202, %v7201
      %v7204 = vrot.slane %v6283, 1
      %v7205 = vsel %vm6347, %v7204, %v7203
      %v7206 = vsel %vm6350, %v6285, %v7205
      %v7207 = vrot.slane %v6287, 7
      %v7208 = vsel %vm6353, %v7207, %v7206
      %v7209 = vrot.slane %v6289, 6
      %v7210 = vsel %vm6356, %v7209, %v7208
      %v7211 = vrot.slane %v6291, 5
      %v7212 = vsel %vm6359, %v7211, %v7210
      %v7213 = vrot.slane %v6293, 4
      %v7214 = vrot.slane %v6295, 3
      %v7215 = vsel %vm6341, %v7214, %v7213
      %v7216 = vrot.slane %v6297, 2
      %v7217 = vsel %vm6344, %v7216, %v7215
      %v7218 = vrot.slane %v6299, 1
      %v7219 = vsel %vm6347, %v7218, %v7217
      %v7220 = vsel %vm6350, %v6301, %v7219
      %v7221 = vrot.slane %v6303, 7
      %v7222 = vsel %vm6353, %v7221, %v7220
      %v7223 = vrot.slane %v6305, 6
      %v7224 = vsel %vm6356, %v7223, %v7222
      %v7225 = vrot.slane %v6307, 5
      %v7226 = vsel %vm6359, %v7225, %v7224
      %7227 = vrot.lane.b32.xlu0 %v7184, 96
      %v7228 = vpop.permute.xlu0 %7227
      %7229 = vrot.lane.b32.xlu0 %v7198, 96
      %v7230 = vpop.permute.xlu0 %7229
      %7231 = vrot.lane.b32.xlu0 %v7212, 96
      %v7232 = vpop.permute.xlu0 %7231
      %7233 = vrot.lane.b32.xlu0 %v7226, 96
      %v7234 = vpop.permute.xlu0 %7233
      %v7239 = vrot.slane %v6245, 5
      %v7240 = vrot.slane %v6247, 4
      %v7241 = vsel %vm6341, %v7240, %v7239
      %v7242 = vrot.slane %v6249, 3
      %v7243 = vsel %vm6344, %v7242, %v7241
      %v7244 = vrot.slane %v6251, 2
      %v7245 = vsel %vm6347, %v7244, %v7243
      %v7246 = vrot.slane %v6253, 1
      %v7247 = vsel %vm6350, %v7246, %v7245
      %v7248 = vsel %vm6353, %v6255, %v7247
      %v7249 = vrot.slane %v6257, 7
      %v7250 = vsel %vm6356, %v7249, %v7248
      %v7251 = vrot.slane %v6259, 6
      %v7252 = vsel %vm6359, %v7251, %v7250
      %v7253 = vrot.slane %v6261, 5
      %v7254 = vrot.slane %v6263, 4
      %v7255 = vsel %vm6341, %v7254, %v7253
      %v7256 = vrot.slane %v6265, 3
      %v7257 = vsel %vm6344, %v7256, %v7255
      %v7258 = vrot.slane %v6267, 2
      %v7259 = vsel %vm6347, %v7258, %v7257
      %v7260 = vrot.slane %v6269, 1
      %v7261 = vsel %vm6350, %v7260, %v7259
      %v7262 = vsel %vm6353, %v6271, %v7261
      %v7263 = vrot.slane %v6273, 7
      %v7264 = vsel %vm6356, %v7263, %v7262
      %v7265 = vrot.slane %v6275, 6
      %v7266 = vsel %vm6359, %v7265, %v7264
      %v7267 = vrot.slane %v6277, 5
      %v7268 = vrot.slane %v6279, 4
      %v7269 = vsel %vm6341, %v7268, %v7267
      %v7270 = vrot.slane %v6281, 3
      %v7271 = vsel %vm6344, %v7270, %v7269
      %v7272 = vrot.slane %v6283, 2
      %v7273 = vsel %vm6347, %v7272, %v7271
      %v7274 = vrot.slane %v6285, 1
      %v7275 = vsel %vm6350, %v7274, %v7273
      %v7276 = vsel %vm6353, %v6287, %v7275
      %v7277 = vrot.slane %v6289, 7
      %v7278 = vsel %vm6356, %v7277, %v7276
      %v7279 = vrot.slane %v6291, 6
      %v7280 = vsel %vm6359, %v7279, %v7278
      %v7281 = vrot.slane %v6293, 5
      %v7282 = vrot.slane %v6295, 4
      %v7283 = vsel %vm6341, %v7282, %v7281
      %v7284 = vrot.slane %v6297, 3
      %v7285 = vsel %vm6344, %v7284, %v7283
      %v7286 = vrot.slane %v6299, 2
      %v7287 = vsel %vm6347, %v7286, %v7285
      %v7288 = vrot.slane %v6301, 1
      %v7289 = vsel %vm6350, %v7288, %v7287
      %v7290 = vsel %vm6353, %v6303, %v7289
      %v7291 = vrot.slane %v6305, 7
      %v7292 = vsel %vm6356, %v7291, %v7290
      %v7293 = vrot.slane %v6307, 6
      %v7294 = vsel %vm6359, %v7293, %v7292
      %v7299 = vrot.slane %v6245, 6
      %v7300 = vrot.slane %v6247, 5
      %v7301 = vsel %vm6341, %v7300, %v7299
      %v7302 = vrot.slane %v6249, 4
      %v7303 = vsel %vm6344, %v7302, %v7301
      %v7304 = vrot.slane %v6251, 3
      %v7305 = vsel %vm6347, %v7304, %v7303
      %v7306 = vrot.slane %v6253, 2
      %v7307 = vsel %vm6350, %v7306, %v7305
      %v7308 = vrot.slane %v6255, 1
      %v7309 = vsel %vm6353, %v7308, %v7307
      %v7310 = vsel %vm6356, %v6257, %v7309
      %v7311 = vrot.slane %v6259, 7
      %v7312 = vsel %vm6359, %v7311, %v7310
      %v7313 = vrot.slane %v6261, 6
      %v7314 = vrot.slane %v6263, 5
      %v7315 = vsel %vm6341, %v7314, %v7313
      %v7316 = vrot.slane %v6265, 4
      %v7317 = vsel %vm6344, %v7316, %v7315
      %v7318 = vrot.slane %v6267, 3
      %v7319 = vsel %vm6347, %v7318, %v7317
      %v7320 = vrot.slane %v6269, 2
      %v7321 = vsel %vm6350, %v7320, %v7319
      %v7322 = vrot.slane %v6271, 1
      %v7323 = vsel %vm6353, %v7322, %v7321
      %v7324 = vsel %vm6356, %v6273, %v7323
      %v7325 = vrot.slane %v6275, 7
      %v7326 = vsel %vm6359, %v7325, %v7324
      %v7327 = vrot.slane %v6277, 6
      %v7328 = vrot.slane %v6279, 5
      %v7329 = vsel %vm6341, %v7328, %v7327
      %v7330 = vrot.slane %v6281, 4
      %v7331 = vsel %vm6344, %v7330, %v7329
      %v7332 = vrot.slane %v6283, 3
      %v7333 = vsel %vm6347, %v7332, %v7331
      %v7334 = vrot.slane %v6285, 2
      %v7335 = vsel %vm6350, %v7334, %v7333
      %v7336 = vrot.slane %v6287, 1
      %v7337 = vsel %vm6353, %v7336, %v7335
      %v7338 = vsel %vm6356, %v6289, %v7337
      %v7339 = vrot.slane %v6291, 7
      %v7340 = vsel %vm6359, %v7339, %v7338
      %v7341 = vrot.slane %v6293, 6
      %v7342 = vrot.slane %v6295, 5
      %v7343 = vsel %vm6341, %v7342, %v7341
      %v7344 = vrot.slane %v6297, 4
      %v7345 = vsel %vm6344, %v7344, %v7343
      %v7346 = vrot.slane %v6299, 3
      %v7347 = vsel %vm6347, %v7346, %v7345
      %v7348 = vrot.slane %v6301, 2
      %v7349 = vsel %vm6350, %v7348, %v7347
      %v7350 = vrot.slane %v6303, 1
      %v7351 = vsel %vm6353, %v7350, %v7349
      %v7352 = vsel %vm6356, %v6305, %v7351
      %v7353 = vrot.slane %v6307, 7
      %v7354 = vsel %vm6359, %v7353, %v7352
      %7355 = vrot.lane.b32.xlu0 %v7312, 32
      %v7356 = vpop.permute.xlu0 %7355
      %7357 = vrot.lane.b32.xlu0 %v7326, 32
      %v7358 = vpop.permute.xlu0 %7357
      %7359 = vrot.lane.b32.xlu0 %v7340, 32
      %v7360 = vpop.permute.xlu0 %7359
      %7361 = vrot.lane.b32.xlu0 %v7354, 32
      %v7362 = vpop.permute.xlu0 %7361
      %v7367 = vrot.slane %v6245, 7
      %v7368 = vrot.slane %v6247, 6
      %v7369 = vsel %vm6341, %v7368, %v7367
      %v7370 = vrot.slane %v6249, 5
      %v7371 = vsel %vm6344, %v7370, %v7369
      %v7372 = vrot.slane %v6251, 4
      %v7373 = vsel %vm6347, %v7372, %v7371
      %v7374 = vrot.slane %v6253, 3
      %v7375 = vsel %vm6350, %v7374, %v7373
      %v7376 = vrot.slane %v6255, 2
      %v7377 = vsel %vm6353, %v7376, %v7375
      %v7378 = vrot.slane %v6257, 1
      %v7379 = vsel %vm6356, %v7378, %v7377
      %v7380 = vsel %vm6359, %v6259, %v7379
      %v7381 = vrot.slane %v6261, 7
      %v7382 = vrot.slane %v6263, 6
      %v7383 = vsel %vm6341, %v7382, %v7381
      %v7384 = vrot.slane %v6265, 5
      %v7385 = vsel %vm6344, %v7384, %v7383
      %v7386 = vrot.slane %v6267, 4
      %v7387 = vsel %vm6347, %v7386, %v7385
      %v7388 = vrot.slane %v6269, 3
      %v7389 = vsel %vm6350, %v7388, %v7387
      %v7390 = vrot.slane %v6271, 2
      %v7391 = vsel %vm6353, %v7390, %v7389
      %v7392 = vrot.slane %v6273, 1
      %v7393 = vsel %vm6356, %v7392, %v7391
      %v7394 = vsel %vm6359, %v6275, %v7393
      %v7395 = vrot.slane %v6277, 7
      %v7396 = vrot.slane %v6279, 6
      %v7397 = vsel %vm6341, %v7396, %v7395
      %v7398 = vrot.slane %v6281, 5
      %v7399 = vsel %vm6344, %v7398, %v7397
      %v7400 = vrot.slane %v6283, 4
      %v7401 = vsel %vm6347, %v7400, %v7399
      %v7402 = vrot.slane %v6285, 3
      %v7403 = vsel %vm6350, %v7402, %v7401
      %v7404 = vrot.slane %v6287, 2
      %v7405 = vsel %vm6353, %v7404, %v7403
      %v7406 = vrot.slane %v6289, 1
      %v7407 = vsel %vm6356, %v7406, %v7405
      %v7408 = vsel %vm6359, %v6291, %v7407
      %v7409 = vrot.slane %v6293, 7
      %v7410 = vrot.slane %v6295, 6
      %v7411 = vsel %vm6341, %v7410, %v7409
      %v7412 = vrot.slane %v6297, 5
      %v7413 = vsel %vm6344, %v7412, %v7411
      %v7414 = vrot.slane %v6299, 4
      %v7415 = vsel %vm6347, %v7414, %v7413
      %v7416 = vrot.slane %v6301, 3
      %v7417 = vsel %vm6350, %v7416, %v7415
      %v7418 = vrot.slane %v6303, 2
      %v7419 = vsel %vm6353, %v7418, %v7417
      %v7420 = vrot.slane %v6305, 1
      %v7421 = vsel %vm6356, %v7420, %v7419
      %v7422 = vsel %vm6359, %v6307, %v7421
      %7423 = vrot.lane.b32.xlu0 %v7380, 64
      %v7424 = vpop.permute.xlu0 %7423
      %7425 = vrot.lane.b32.xlu0 %v7394, 64
      %v7426 = vpop.permute.xlu0 %7425
      %7427 = vrot.lane.b32.xlu0 %v7408, 64
      %v7428 = vpop.permute.xlu0 %7427
      %7429 = vrot.lane.b32.xlu0 %v7422, 64
      %v7430 = vpop.permute.xlu0 %7429
      %v7435 = vsel %vm2685, %v6404, %v6428
      %v7436 = vsel %vm2685, %v6406, %v6442
      %v7437 = vsel %vm2685, %v6408, %v6456
      %v7438 = vsel %vm2685, %v6410, %v6470
      %v7439 = vsel %vm2750, %v7435, %v6532
      %v7440 = vsel %vm2750, %v7436, %v6534
      %v7441 = vsel %vm2750, %v7437, %v6536
      %v7442 = vsel %vm2750, %v7438, %v6538
      %v7443 = vsel %vm2815, %v7439, %v6600
      %v7444 = vsel %vm2815, %v7440, %v6602
      %v7445 = vsel %vm2815, %v7441, %v6604
      %v7446 = vsel %vm2815, %v7442, %v6606
      %v7447 = vsel %vm2685, %v6668, %v6692
      %v7448 = vsel %vm2685, %v6670, %v6706
      %v7449 = vsel %vm2685, %v6672, %v6720
      %v7450 = vsel %vm2685, %v6674, %v6734
      %v7451 = vsel %vm2750, %v7447, %v6796
      %v7452 = vsel %vm2750, %v7448, %v6798
      %v7453 = vsel %vm2750, %v7449, %v6800
      %v7454 = vsel %vm2750, %v7450, %v6802
      %v7455 = vsel %vm2815, %v7451, %v6864
      %v7456 = vsel %vm2815, %v7452, %v6866
      %v7457 = vsel %vm2815, %v7453, %v6868
      %v7458 = vsel %vm2815, %v7454, %v6870
      %v7459 = vsel %vm2685, %v6964, %v6988
      %v7460 = vsel %vm2685, %v6966, %v7002
      %v7461 = vsel %vm2685, %v6968, %v7016
      %v7462 = vsel %vm2685, %v6970, %v7030
      %v7463 = vsel %vm2750, %v7459, %v7092
      %v7464 = vsel %vm2750, %v7460, %v7094
      %v7465 = vsel %vm2750, %v7461, %v7096
      %v7466 = vsel %vm2750, %v7462, %v7098
      %v7467 = vsel %vm2815, %v7463, %v7160
      %v7468 = vsel %vm2815, %v7464, %v7162
      %v7469 = vsel %vm2815, %v7465, %v7164
      %v7470 = vsel %vm2815, %v7466, %v7166
      %v7471 = vsel %vm2685, %v7228, %v7252
      %v7472 = vsel %vm2685, %v7230, %v7266
      %v7473 = vsel %vm2685, %v7232, %v7280
      %v7474 = vsel %vm2685, %v7234, %v7294
      %v7475 = vsel %vm2750, %v7471, %v7356
      %v7476 = vsel %vm2750, %v7472, %v7358
      %v7477 = vsel %vm2750, %v7473, %v7360
      %v7478 = vsel %vm2750, %v7474, %v7362
      %v7479 = vsel %vm2815, %v7475, %v7424
      %v7480 = vsel %vm2815, %v7476, %v7426
      %v7481 = vsel %vm2815, %v7477, %v7428
      %v7482 = vsel %vm2815, %v7478, %v7430
      %v7483 = vadd.f32 %v233, %v7443
      %v7484 = vadd.f32 %v234, %v7455
      %v7485 = vadd.f32 %v235, %v7467
      %v7486 = vadd.f32 %v236, %v7479
      %v7487 = vadd.f32 %v237, %v7444
      %v7488 = vadd.f32 %v238, %v7456
      %v7489 = vadd.f32 %v239, %v7468
      %v7490 = vadd.f32 %v240, %v7480
      %v7491 = vadd.f32 %v241, %v7445
      %v7492 = vadd.f32 %v242, %v7457
      %v7493 = vadd.f32 %v243, %v7469
      %v7494 = vadd.f32 %v244, %v7481
      %v7495 = vadd.f32 %v245, %v7446
      %v7496 = vadd.f32 %v246, %v7458
      %v7497 = vadd.f32 %v247, %v7470
      %v7498 = vadd.f32 %v248, %v7482
      %7499 = vst [vmem:[%s231] sm:$0xff] %v7483
      %7500 = vst [vmem:[%s231 + $0x8] sm:$0xff] %v7484
      %7501 = vst [vmem:[%s231 + $0x10] sm:$0xff] %v7485
      %7502 = vst [vmem:[%s231 + $0x18] sm:$0xff] %v7486
      %7503 = vst [vmem:[%s231 + $0x20] sm:$0xff] %v7487
      %7504 = vst [vmem:[%s231 + $0x28] sm:$0xff] %v7488
      %7505 = vst [vmem:[%s231 + $0x30] sm:$0xff] %v7489
      %7506 = vst [vmem:[%s231 + $0x38] sm:$0xff] %v7490
      %7507 = vst [vmem:[%s231 + $0x40] sm:$0xff] %v7491
      %7508 = vst [vmem:[%s231 + $0x48] sm:$0xff] %v7492
      %7509 = vst [vmem:[%s231 + $0x50] sm:$0xff] %v7493
      %7510 = vst [vmem:[%s231 + $0x58] sm:$0xff] %v7494
      %7511 = vst [vmem:[%s231 + $0x60] sm:$0xff] %v7495
      %7512 = vst [vmem:[%s231 + $0x68] sm:$0xff] %v7496
      %7513 = vst [vmem:[%s231 + $0x70] sm:$0xff] %v7497
      %7514 = vst [vmem:[%s231 + $0x78] sm:$0xff] %v7498
      %s7515 = smul.u32 2, %s16
      %p7516 = scmp.lt.s32.totalorder %s7515, 5
      %s7517 = scalar_select %p7516, %s7515, 5
      %s7518 = smul.addr %s7517, 8
      %s7519 = smul.addr %s7518, 8
      %s7520 = scalar_lea.vmem %s5, %s7519
      // Predicated region
      $region41: #{residual_block_nobn_3d.1} parent=39 // pred_check
        %p7521 = pneg %p144
      $region42: #{residual_block_nobn_3d.1} parent=39 // pred_check_branch
        %7523 = sbr.rel (%p7521) target = $region44
      $region43: #{residual_block_nobn_3d.1} parent=39 // pred_region
        %s7524 = smul.u32 2, %s16
      $region44: #{residual_block_nobn_3d.1} parent=39 // pred_fallthru
        _
    $region40: #{residual_block_nobn_3d.1} parent=5 // pred_fallthru
      _
    %p7525 = scmp.le.s32.totalorder 2, %s11
    // Predicated region
    $region45: #{residual_block_nobn_3d.1} parent=5 // pred_check
      %p7526 = pneg %p7525
    $region46: #{residual_block_nobn_3d.1} parent=5 // pred_check_branch
      %7528 = sbr.rel (%p7526) target = $region48
    $region47: #{residual_block_nobn_3d.1} parent=5 // pred_region
      %s7529 = ssub.s32 %s11, 2
      // Predicated region
      $region49: #{residual_block_nobn_3d.1} parent=47 // pred_check
        %p7530 = pneg %p150
      $region50: #{residual_block_nobn_3d.1} parent=47 // pred_check_branch
        %7532 = sbr.rel (%p7530) target = $region52
      $region51: #{residual_block_nobn_3d.1} parent=47 // pred_region
        %s7533 = smul.u32 2, %s17
        %p7534 = scmp.lt.s32.totalorder %s7533, 5
        %s7535 = scalar_select %p7534, %s7533, 5
        %s7536 = smul.addr %s7535, 8
        %s7537 = smul.addr %s7536, 8
        %s7538 = scalar_lea.vmem %s5, %s7537
      $region52: #{residual_block_nobn_3d.1} parent=47 // pred_fallthru
        _
    $region48: #{residual_block_nobn_3d.1} parent=5 // pred_fallthru
      _
  $region6: #{residual_block_nobn_3d.1} parent=0 // loop_footer
    %s15 = sadd.s32 1, %s11
  $region7: #{residual_block_nobn_3d.1} parent=0 // loop_footer_branch
    %10 = sbr.rel target = $region3
  $region8: #{residual_block_nobn_3d.1} parent=0 // loop_exit
    _

</llo_original>
